<compile_context>
chip_gen: v7x
topology: tpu7x:2x2x1
jax: 0.10.0
libtpu: 0.0.40
codegen_flags: <defaults>
</compile_context>

<pallas_src>
import functools
import math

import jax
import jax.numpy as jnp
from jax import lax
from jax.experimental import pallas as pl
from jax.experimental.pallas import tpu as pltpu

LANE = 128
CONV_PAD = 8                      # zero rows in front of xp for causal shifts


def _round_up(v, m):
    return (v + m - 1) // m * m


# --------------------------------------------------------------------------
# Fused kernel: Mamba mixer + norm2 + MLP + residual + norm3
# --------------------------------------------------------------------------
def _gat_mamba_kernel(x_ref, wxz_ref, cw_ref, cb_ref, wdbc_ref, dtb_ref,
                      at_ref, d_ref, wout_ref,
                      g2_ref, be2_ref, w1_ref, bb1_ref, w2_ref, bb2_ref,
                      g3_ref, be3_ref, o_ref,
                      xp_scr, y_scr,
                      *, seq_len, d_state, d_conv, num_graphs):
    L, ds, K, B = seq_len, d_state, d_conv, num_graphs
    x = x_ref[...]                                       # (N, Cp), graph-major
    N, Cp = x.shape
    PAD = xp_scr.shape[0] - N

    # ---- fused in_proj (no bias): one 256-lane matmul, split xp / z ----
    xz = jnp.dot(x, wxz_ref[...], preferred_element_type=jnp.float32)   # (N, 2Cp)
    xp = xz[:, :Cp]
    z = xz[:, Cp:]

    # ---- depthwise causal conv1d + SiLU (no (N,N) matmuls) ----
    # zero-padded scratch; each tap is a shifted window read + boundary mask.
    xp_scr[pl.ds(0, PAD), :] = jnp.zeros((PAD, Cp), jnp.float32)
    xp_scr[pl.ds(PAD, N), :] = xp
    cw = cw_ref[...]                                     # (K, Cp)
    acc = xp * cw[K - 1:K, :] + cb_ref[...]              # shift-0 tap
    rows = lax.broadcasted_iota(jnp.int32, (N, 1), 0)
    for s in range(1, K):                                # K static (=4)
        shifted = xp_scr[pl.ds(PAD - s, N), :]           # xp[r - s] (global)
        acc = acc + cw[K - 1 - s:K - s, :] * jnp.where(rows % L >= s, shifted, 0.0)
    u = acc * jax.nn.sigmoid(acc)                        # SiLU, (N, Cp)

    # ---- fused dt / B / C projection: one 384-lane matmul ----
    proj = jnp.dot(u, wdbc_ref[...], preferred_element_type=jnp.float32)  # (N, 3Cp)
    dt_raw = proj[:, :Cp] + dtb_ref[...]
    dt = jnp.where(dt_raw > 20.0, dt_raw,
                   jnp.log(1.0 + jnp.exp(jnp.minimum(dt_raw, 20.0))))    # softplus
    bmat = proj[:, Cp:Cp + ds]                           # (N, ds) lane-aligned
    cmat = proj[:, 2 * Cp:2 * Cp + ds]                   # (N, ds) lane-aligned
    dtu = dt * u
    a_t = at_ref[...]                                    # (ds, Cp) = (-exp(A_log)).T

    # (ds, ds) identity mask: lane->sublane move of a single B/C row via
    # masked lane-reduce (VPU/XLU only, no one-hot MXU matmul, no reshape).
    eye = (lax.broadcasted_iota(jnp.int32, (ds, ds), 0) ==
           lax.broadcasted_iota(jnp.int32, (ds, ds), 1))

    # ---- selective scan: one independent state per graph, L serial steps ----
    # All exp / broadcast expansion is independent of h, so under full unroll
    # it overlaps with the (short) h-update chain.
    hs = [jnp.zeros((ds, Cp), jnp.float32) for _ in range(B)]
    for t in range(L):                                   # static trip count
        for g in range(B):
            n = g * L + t                                # static row index
            da = jnp.exp(dt[n:n + 1, :] * a_t)                            # (ds,Cp)
            b_col = jnp.sum(jnp.where(eye, bmat[n:n + 1, :], 0.0),
                            axis=1, keepdims=True)                        # (ds,1)
            c_col = jnp.sum(jnp.where(eye, cmat[n:n + 1, :], 0.0),
                            axis=1, keepdims=True)                        # (ds,1)
            h = da * hs[g] + dtu[n:n + 1, :] * b_col                      # (ds,Cp)
            hs[g] = h
            y_scr[pl.ds(n, 1), :] = jnp.sum(h * c_col, axis=0, keepdims=True)

    # ---- skip term, SiLU gate, out_proj ----
    y = (y_scr[...] + d_ref[...] * u) * (z * jax.nn.sigmoid(z))
    h1 = jnp.dot(y, wout_ref[...], preferred_element_type=jnp.float32)    # (N, Cp)

    # ---- norm2 (BatchNorm, batch stats) -> MLP -> residual -> norm3 ----
    eps = 1e-5
    m2 = jnp.mean(h1, axis=0, keepdims=True)
    v2 = jnp.mean((h1 - m2) ** 2, axis=0, keepdims=True)
    hn = (h1 - m2) * lax.rsqrt(v2 + eps) * g2_ref[...] + be2_ref[...]
    z1 = jnp.maximum(
        jnp.dot(hn, w1_ref[...], preferred_element_type=jnp.float32) + bb1_ref[...],
        0.0)
    z2 = jnp.dot(z1, w2_ref[...], preferred_element_type=jnp.float32) + bb2_ref[...]
    out = hn + z2
    m3 = jnp.mean(out, axis=0, keepdims=True)
    v3 = jnp.mean((out - m3) ** 2, axis=0, keepdims=True)
    o_ref[...] = ((out - m3) * lax.rsqrt(v3 + eps) * g3_ref[...]
                  + be3_ref[...]).astype(o_ref.dtype)


# --------------------------------------------------------------------------
# Wrapper: lane-dense zero padding + host-side weight fusion, one pallas_call
# --------------------------------------------------------------------------
def gat_mamba_forward(x, num_graphs, seq_len, p):
    N, C = x.shape
    assert N == num_graphs * seq_len, "equal-size graphs assumed"
    Cp = _round_up(C, LANE)
    C2p = _round_up(2 * C, LANE)
    ds = p['A_logT'].shape[0]
    K = p['conv_w'].shape[0]
    assert K - 1 <= CONV_PAD

    def pad2(a, r, c):
        return jnp.pad(a, ((0, r - a.shape[0]), (0, c - a.shape[1])))

    # Host-side weight fusion (zero padding provably keeps padded lanes at 0).
    wxz = jnp.concatenate([pad2(p['W_xT'], Cp, Cp), pad2(p['W_zT'], Cp, Cp)], axis=1)
    wdtc = p['W_dt_inT'] @ p['W_dtT']                    # merged low-rank dt proj
    wdbc = jnp.concatenate([pad2(wdtc, Cp, Cp),
                            pad2(p['W_BT'], Cp, Cp),
                            pad2(p['W_CT'], Cp, Cp)], axis=1)   # (Cp, 3Cp)

    args = (
        pad2(x, N, Cp),
        wxz,
        pad2(p['conv_w'], K, Cp), pad2(p['conv_b'], 1, Cp),
        wdbc, pad2(p['dt_bias'], 1, Cp),
        pad2(-jnp.exp(p['A_logT']), ds, Cp),             # A hoisted to host
        pad2(p['D'], 1, Cp), pad2(p['W_outT'], Cp, Cp),
        pad2(p['norm2_g'], 1, Cp), pad2(p['norm2_b'], 1, Cp),
        pad2(p['W1T'], Cp, C2p), pad2(p['mlp_b1'], 1, C2p),
        pad2(p['W2T'], C2p, Cp), pad2(p['mlp_b2'], 1, Cp),
        pad2(p['norm3_g'], 1, Cp), pad2(p['norm3_b'], 1, Cp),
    )

    kernel = functools.partial(_gat_mamba_kernel, seq_len=seq_len,
                               d_state=ds, d_conv=K, num_graphs=num_graphs)
    out = pl.pallas_call(
        kernel,
        out_shape=jax.ShapeDtypeStruct((N, Cp), jnp.float32),
        scratch_shapes=[
            pltpu.VMEM((CONV_PAD + N, Cp), jnp.float32),   # zero-padded xp
            pltpu.VMEM((N, Cp), jnp.float32),              # SSM output y
        ],
    )(*args)
    return out[:, :C]


# --------------------------------------------------------------------------
# Deterministic parameter init (shapes follow the module's __init__)
# --------------------------------------------------------------------------
def init_params(key, C, d_state=16, d_conv=4):
    d_inner = C                      # expand = 1
    dt_rank = math.ceil(C / 16)
    ks = jax.random.split(key, 12)

    def unif(k, shape, scale):
        return jax.random.uniform(k, shape, jnp.float32, -scale, scale)

    W_in = unif(ks[0], (2 * d_inner, C), 1.0 / math.sqrt(C))              # in_proj
    conv_w = unif(ks[1], (d_inner, d_conv), 1.0 / math.sqrt(d_conv))
    conv_b = unif(ks[2], (d_inner,), 1.0 / math.sqrt(d_conv))
    W_xproj = unif(ks[3], (dt_rank + 2 * d_state, d_inner), 1.0 / math.sqrt(d_inner))
    W_dt = unif(ks[4], (d_inner, dt_rank), dt_rank ** -0.5)
    dt0 = jnp.exp(jax.random.uniform(ks[5], (d_inner,), jnp.float32,
                                     math.log(1e-3), math.log(1e-1)))
    dt0 = jnp.clip(dt0, 1e-4)
    dt_bias = dt0 + jnp.log(-jnp.expm1(-dt0))                             # inv softplus
    A_log = jnp.log(jnp.tile(jnp.arange(1, d_state + 1, dtype=jnp.float32)[None, :],
                             (d_inner, 1)))
    Dv = jnp.ones((d_inner,), jnp.float32)
    W_out = unif(ks[6], (C, d_inner), 1.0 / math.sqrt(d_inner))

    W1 = unif(ks[7], (2 * C, C), 1.0 / math.sqrt(C))
    b1 = unif(ks[8], (2 * C,), 1.0 / math.sqrt(C))
    W2 = unif(ks[9], (C, 2 * C), 1.0 / math.sqrt(2 * C))
    b2 = unif(ks[10], (C,), 1.0 / math.sqrt(2 * C))

    return dict(
        W_xT=W_in[:d_inner].T, W_zT=W_in[d_inner:].T,
        conv_w=conv_w.T, conv_b=conv_b[None, :],
        W_dt_inT=W_xproj[:dt_rank].T,
        W_BT=W_xproj[dt_rank:dt_rank + d_state].T,
        W_CT=W_xproj[dt_rank + d_state:].T,
        W_dtT=W_dt.T, dt_bias=dt_bias[None, :],
        A_logT=A_log.T, D=Dv[None, :], W_outT=W_out.T,
        W1T=W1.T, mlp_b1=b1[None, :], W2T=W2.T, mlp_b2=b2[None, :],
        norm2_g=jnp.ones((1, C), jnp.float32), norm2_b=jnp.zeros((1, C), jnp.float32),
        norm3_g=jnp.ones((1, C), jnp.float32), norm3_b=jnp.zeros((1, C), jnp.float32),
    )


# --------------------------------------------------------------------------
# Pure-JAX reference (same math, unpadded) for a sanity check
# --------------------------------------------------------------------------
def mamba_ref(x_dense, p):
    B, L, C = x_dense.shape

    def one(x):
        xp = x @ p['W_xT']
        z = x @ p['W_zT']
        K = p['conv_w'].shape[0]
        acc = jnp.zeros((L, C), jnp.float32) + p['conv_b']
        for k in range(K):
            s = K - 1 - k
            shifted = xp if s == 0 else jnp.concatenate(
                [jnp.zeros((s, C), jnp.float32), xp[:L - s]], axis=0)
            acc = acc + p['conv_w'][k:k + 1] * shifted
        u = acc * jax.nn.sigmoid(acc)
        dt = jax.nn.softplus(u @ p['W_dt_inT'] @ p['W_dtT'] + p['dt_bias'])
        Bm = u @ p['W_BT']
        Cm = u @ p['W_CT']
        A = -jnp.exp(p['A_logT'].T)                     # (C, ds)

        def step(h, inp):
            dt_t, u_t, B_t, C_t = inp
            h = jnp.exp(dt_t[:, None] * A) * h + (dt_t * u_t)[:, None] * B_t[None, :]
            y_t = h @ C_t + p['D'][0] * u_t
            return h, y_t

        h0 = jnp.zeros((C, p['A_logT'].shape[0]), jnp.float32)
        _, ys = lax.scan(step, h0, (dt, u, Bm, Cm))
        y = ys * (z * jax.nn.sigmoid(z))
        return y @ p['W_outT']

    return jax.vmap(one)(x_dense)


def post_ref(h, p):
    eps = 1e-5

    def bn(v, g, b):
        m = v.mean(0, keepdims=True)
        var = ((v - m) ** 2).mean(0, keepdims=True)
        return (v - m) / jnp.sqrt(var + eps) * g + b

    h = bn(h, p['norm2_g'], p['norm2_b'])
    z = jnp.maximum(h @ p['W1T'] + p['mlp_b1'], 0.0) @ p['W2T'] + p['mlp_b2']
    out = h + z
    return bn(out, p['norm3_g'], p['norm3_b'])


# --------------------------------------------------------------------------
if __name__ == "__main__":
    key = jax.random.PRNGKey(0)
    C, d_state, d_conv = 32, 16, 4
    B, L = 2, 8                        # 2 graphs, 8 nodes each
    N = B * L

    kx, kp = jax.random.split(key)
    x = jax.random.normal(kx, (N, C), jnp.float32)         # node features
    batch = jnp.repeat(jnp.arange(B), L)                    # graph assignment
    params = init_params(kp, C, d_state, d_conv)

    # to_dense_batch with equal-size graphs == identity ordering, all-True mask.
    out = gat_mamba_forward(x, B, L, params)
    out = jax.block_until_ready(out)

    ref = post_ref(mamba_ref(x.reshape(B, L, C), params).reshape(N, C), params)
    err = float(jnp.max(jnp.abs(out - ref)))
    assert jnp.allclose(out, ref, atol=2e-3, rtol=2e-3), f"max abs err {err}"

    print("KERNEL_OK")
</pallas_src>

<mosaic_0001>
module attributes {stable_mosaic.version = 11 : i64} {
  func.func @_gat_mamba_kernel(%arg0: memref<16x128xf32, #tpu.memory_space<vmem>>, %arg1: memref<128x256xf32, #tpu.memory_space<vmem>>, %arg2: memref<4x128xf32, #tpu.memory_space<vmem>>, %arg3: memref<1x128xf32, #tpu.memory_space<vmem>>, %arg4: memref<128x384xf32, #tpu.memory_space<vmem>>, %arg5: memref<1x128xf32, #tpu.memory_space<vmem>>, %arg6: memref<16x128xf32, #tpu.memory_space<vmem>>, %arg7: memref<1x128xf32, #tpu.memory_space<vmem>>, %arg8: memref<128x128xf32, #tpu.memory_space<vmem>>, %arg9: memref<1x128xf32, #tpu.memory_space<vmem>>, %arg10: memref<1x128xf32, #tpu.memory_space<vmem>>, %arg11: memref<128x128xf32, #tpu.memory_space<vmem>>, %arg12: memref<1x128xf32, #tpu.memory_space<vmem>>, %arg13: memref<128x128xf32, #tpu.memory_space<vmem>>, %arg14: memref<1x128xf32, #tpu.memory_space<vmem>>, %arg15: memref<1x128xf32, #tpu.memory_space<vmem>>, %arg16: memref<1x128xf32, #tpu.memory_space<vmem>>, %arg17: memref<16x128xf32, #tpu.memory_space<vmem>>, %arg18: memref<24x128xf32, #tpu.memory_space<vmem>>, %arg19: memref<16x128xf32, #tpu.memory_space<vmem>>) attributes {dimension_semantics = [], scalar_prefetch = 0 : i64, scratch_operands = 2 : i64, tpu.core_type = #tpu.core_type<tc>} {
    %c0 = arith.constant 0 : index
    %c0_0 = arith.constant 0 : index
    %0 = vector.load %arg0[%c0, %c0_0] : memref<16x128xf32, #tpu.memory_space<vmem>>, vector<16x128xf32>
    %c0_1 = arith.constant 0 : index
    %c0_2 = arith.constant 0 : index
    %1 = vector.load %arg1[%c0_1, %c0_2] : memref<128x256xf32, #tpu.memory_space<vmem>>, vector<128x256xf32>
    %cst = arith.constant dense<0.000000e+00> : vector<16x256xf32>
    %2 = tpu.matmul %0, %1, %cst {dimension_numbers = #tpu.dot_dimension_numbers<[1], [0], [0], [1], [0, 0, 1, 1], [], []>} : vector<16x128xf32>, vector<128x256xf32>, vector<16x256xf32> -> vector<16x256xf32>
    %3 = vector.extract_strided_slice %2 {offsets = [0, 0], sizes = [16, 128], strides = [1, 1]} : vector<16x256xf32> to vector<16x128xf32>
    %4 = vector.extract_strided_slice %2 {offsets = [0, 128], sizes = [16, 128], strides = [1, 1]} : vector<16x256xf32> to vector<16x128xf32>
    %cst_3 = arith.constant 0.000000e+00 : f32
    %5 = vector.broadcast %cst_3 : f32 to vector<8x128xf32>
    %c0_4 = arith.constant 0 : index
    %c0_5 = arith.constant 0 : index
    %6 = vector.load %arg18[%c0_4, %c0_5] : memref<24x128xf32, #tpu.memory_space<vmem>>, vector<8x128xf32>
    tpu.vector_store %arg18[%c0_4, %c0_5], %5 {strides = array<i32>} : memref<24x128xf32, #tpu.memory_space<vmem>>, vector<8x128xf32>,
    %c8 = arith.constant 8 : index
    %c0_6 = arith.constant 0 : index
    %7 = vector.load %arg18[%c8, %c0_6] : memref<24x128xf32, #tpu.memory_space<vmem>>, vector<16x128xf32>
    tpu.vector_store %arg18[%c8, %c0_6], %3 {strides = array<i32>} : memref<24x128xf32, #tpu.memory_space<vmem>>, vector<16x128xf32>,
    %c0_7 = arith.constant 0 : index
    %c0_8 = arith.constant 0 : index
    %8 = vector.load %arg2[%c0_7, %c0_8] : memref<4x128xf32, #tpu.memory_space<vmem>>, vector<4x128xf32>
    %9 = vector.extract_strided_slice %8 {offsets = [3, 0], sizes = [1, 128], strides = [1, 1]} : vector<4x128xf32> to vector<1x128xf32>
    %10 = vector.broadcast %9 : vector<1x128xf32> to vector<16x128xf32>
    %11 = arith.mulf %3, %10 : vector<16x128xf32>
    %c0_9 = arith.constant 0 : index
    %c0_10 = arith.constant 0 : index
    %12 = vector.load %arg3[%c0_9, %c0_10] : memref<1x128xf32, #tpu.memory_space<vmem>>, vector<1x128xf32>
    %13 = vector.broadcast %12 : vector<1x128xf32> to vector<16x128xf32>
    %14 = arith.addf %11, %13 : vector<16x128xf32>
    %15 = tpu.iota {dimensions = array<i32: 0>} : vector<16x1xi32>
    %c7 = arith.constant 7 : index
    %c0_11 = arith.constant 0 : index
    %16 = vector.load %arg18[%c7, %c0_11] : memref<24x128xf32, #tpu.memory_space<vmem>>, vector<16x128xf32>
    %17 = vector.extract_strided_slice %8 {offsets = [2, 0], sizes = [1, 128], strides = [1, 1]} : vector<4x128xf32> to vector<1x128xf32>
    %c8_i32 = arith.constant 8 : i32
    %c0_i32 = arith.constant 0 : i32
    %18 = arith.cmpi eq, %c8_i32, %c0_i32 : i32
    %c1_i32 = arith.constant 1 : i32
    %19 = arith.select %18, %c1_i32, %c8_i32 : i32
    %20 = vector.broadcast %19 : i32 to vector<16x1xi32>
    %21 = arith.remsi %15, %20 : vector<16x1xi32>
    %c0_i32_12 = arith.constant 0 : i32
    %22 = vector.broadcast %c0_i32_12 : i32 to vector<16x1xi32>
    %23 = arith.cmpi ne, %21, %22 : vector<16x1xi32>
    %c0_i32_13 = arith.constant 0 : i32
    %24 = vector.broadcast %c0_i32_13 : i32 to vector<16x1xi32>
    %25 = arith.cmpi slt, %21, %24 : vector<16x1xi32>
    %c0_i32_14 = arith.constant 0 : i32
    %26 = arith.cmpi slt, %19, %c0_i32_14 : i32
    %27 = vector.broadcast %26 : i1 to vector<16x1xi1>
    %28 = vector.broadcast %27 : vector<16x1xi1> to vector<16x1xi1>
    %29 = arith.xori %25, %28 : vector<16x1xi1>
    %30 = arith.andi %29, %23 : vector<16x1xi1>
    %31 = vector.broadcast %19 : i32 to vector<16x1xi32>
    %32 = arith.addi %21, %31 : vector<16x1xi32>
    %33 = arith.select %30, %32, %21 : vector<16x1xi1>, vector<16x1xi32>
    %c1_i32_15 = arith.constant 1 : i32
    %34 = vector.broadcast %c1_i32_15 : i32 to vector<16x1xi32>
    %35 = arith.cmpi sge, %33, %34 : vector<16x1xi32>
    %cst_16 = arith.constant 0.000000e+00 : f32
    %36 = vector.shape_cast %35 : vector<16x1xi1> to vector<16x1xi1>
    %37 = vector.broadcast %36 : vector<16x1xi1> to vector<16x128xi1>
    %38 = vector.broadcast %cst_16 : f32 to vector<16x128xf32>
    %39 = arith.select %37, %16, %38 : vector<16x128xi1>, vector<16x128xf32>
    %40 = vector.broadcast %17 : vector<1x128xf32> to vector<16x128xf32>
    %41 = arith.mulf %40, %39 : vector<16x128xf32>
    %42 = arith.addf %14, %41 : vector<16x128xf32>
    %c6 = arith.constant 6 : index
    %c0_17 = arith.constant 0 : index
    %43 = vector.load %arg18[%c6, %c0_17] : memref<24x128xf32, #tpu.memory_space<vmem>>, vector<16x128xf32>
    %44 = vector.extract_strided_slice %8 {offsets = [1, 0], sizes = [1, 128], strides = [1, 1]} : vector<4x128xf32> to vector<1x128xf32>
    %c8_i32_18 = arith.constant 8 : i32
    %c0_i32_19 = arith.constant 0 : i32
    %45 = arith.cmpi eq, %c8_i32_18, %c0_i32_19 : i32
    %c1_i32_20 = arith.constant 1 : i32
    %46 = arith.select %45, %c1_i32_20, %c8_i32_18 : i32
    %47 = vector.broadcast %46 : i32 to vector<16x1xi32>
    %48 = arith.remsi %15, %47 : vector<16x1xi32>
    %c0_i32_21 = arith.constant 0 : i32
    %49 = vector.broadcast %c0_i32_21 : i32 to vector<16x1xi32>
    %50 = arith.cmpi ne, %48, %49 : vector<16x1xi32>
    %c0_i32_22 = arith.constant 0 : i32
    %51 = vector.broadcast %c0_i32_22 : i32 to vector<16x1xi32>
    %52 = arith.cmpi slt, %48, %51 : vector<16x1xi32>
    %c0_i32_23 = arith.constant 0 : i32
    %53 = arith.cmpi slt, %46, %c0_i32_23 : i32
    %54 = vector.broadcast %53 : i1 to vector<16x1xi1>
    %55 = vector.broadcast %54 : vector<16x1xi1> to vector<16x1xi1>
    %56 = arith.xori %52, %55 : vector<16x1xi1>
    %57 = arith.andi %56, %50 : vector<16x1xi1>
    %58 = vector.broadcast %46 : i32 to vector<16x1xi32>
    %59 = arith.addi %48, %58 : vector<16x1xi32>
    %60 = arith.select %57, %59, %48 : vector<16x1xi1>, vector<16x1xi32>
    %c2_i32 = arith.constant 2 : i32
    %61 = vector.broadcast %c2_i32 : i32 to vector<16x1xi32>
    %62 = arith.cmpi sge, %60, %61 : vector<16x1xi32>
    %cst_24 = arith.constant 0.000000e+00 : f32
    %63 = vector.shape_cast %62 : vector<16x1xi1> to vector<16x1xi1>
    %64 = vector.broadcast %63 : vector<16x1xi1> to vector<16x128xi1>
    %65 = vector.broadcast %cst_24 : f32 to vector<16x128xf32>
    %66 = arith.select %64, %43, %65 : vector<16x128xi1>, vector<16x128xf32>
    %67 = vector.broadcast %44 : vector<1x128xf32> to vector<16x128xf32>
    %68 = arith.mulf %67, %66 : vector<16x128xf32>
    %69 = arith.addf %42, %68 : vector<16x128xf32>
    %c5 = arith.constant 5 : index
    %c0_25 = arith.constant 0 : index
    %70 = vector.load %arg18[%c5, %c0_25] : memref<24x128xf32, #tpu.memory_space<vmem>>, vector<16x128xf32>
    %71 = vector.extract_strided_slice %8 {offsets = [0, 0], sizes = [1, 128], strides = [1, 1]} : vector<4x128xf32> to vector<1x128xf32>
    %c8_i32_26 = arith.constant 8 : i32
    %c0_i32_27 = arith.constant 0 : i32
    %72 = arith.cmpi eq, %c8_i32_26, %c0_i32_27 : i32
    %c1_i32_28 = arith.constant 1 : i32
    %73 = arith.select %72, %c1_i32_28, %c8_i32_26 : i32
    %74 = vector.broadcast %73 : i32 to vector<16x1xi32>
    %75 = arith.remsi %15, %74 : vector<16x1xi32>
    %c0_i32_29 = arith.constant 0 : i32
    %76 = vector.broadcast %c0_i32_29 : i32 to vector<16x1xi32>
    %77 = arith.cmpi ne, %75, %76 : vector<16x1xi32>
    %c0_i32_30 = arith.constant 0 : i32
    %78 = vector.broadcast %c0_i32_30 : i32 to vector<16x1xi32>
    %79 = arith.cmpi slt, %75, %78 : vector<16x1xi32>
    %c0_i32_31 = arith.constant 0 : i32
    %80 = arith.cmpi slt, %73, %c0_i32_31 : i32
    %81 = vector.broadcast %80 : i1 to vector<16x1xi1>
    %82 = vector.broadcast %81 : vector<16x1xi1> to vector<16x1xi1>
    %83 = arith.xori %79, %82 : vector<16x1xi1>
    %84 = arith.andi %83, %77 : vector<16x1xi1>
    %85 = vector.broadcast %73 : i32 to vector<16x1xi32>
    %86 = arith.addi %75, %85 : vector<16x1xi32>
    %87 = arith.select %84, %86, %75 : vector<16x1xi1>, vector<16x1xi32>
    %c3_i32 = arith.constant 3 : i32
    %88 = vector.broadcast %c3_i32 : i32 to vector<16x1xi32>
    %89 = arith.cmpi sge, %87, %88 : vector<16x1xi32>
    %cst_32 = arith.constant 0.000000e+00 : f32
    %90 = vector.shape_cast %89 : vector<16x1xi1> to vector<16x1xi1>
    %91 = vector.broadcast %90 : vector<16x1xi1> to vector<16x128xi1>
    %92 = vector.broadcast %cst_32 : f32 to vector<16x128xf32>
    %93 = arith.select %91, %70, %92 : vector<16x128xi1>, vector<16x128xf32>
    %94 = vector.broadcast %71 : vector<1x128xf32> to vector<16x128xf32>
    %95 = arith.mulf %94, %93 : vector<16x128xf32>
    %96 = arith.addf %69, %95 : vector<16x128xf32>
    %97 = arith.negf %96 : vector<16x128xf32>
    %98 = math.exp %97 : vector<16x128xf32>
    %cst_33 = arith.constant 1.000000e+00 : f32
    %99 = vector.broadcast %cst_33 : f32 to vector<16x128xf32>
    %100 = arith.addf %99, %98 : vector<16x128xf32>
    %101 = arith.divf %99, %100 : vector<16x128xf32>
    %102 = arith.mulf %96, %101 : vector<16x128xf32>
    %c0_34 = arith.constant 0 : index
    %c0_35 = arith.constant 0 : index
    %103 = vector.load %arg4[%c0_34, %c0_35] : memref<128x384xf32, #tpu.memory_space<vmem>>, vector<128x384xf32>
    %cst_36 = arith.constant dense<0.000000e+00> : vector<16x384xf32>
    %104 = tpu.matmul %102, %103, %cst_36 {dimension_numbers = #tpu.dot_dimension_numbers<[1], [0], [0], [1], [0, 0, 1, 1], [], []>} : vector<16x128xf32>, vector<128x384xf32>, vector<16x384xf32> -> vector<16x384xf32>
    %105 = vector.extract_strided_slice %104 {offsets = [0, 0], sizes = [16, 128], strides = [1, 1]} : vector<16x384xf32> to vector<16x128xf32>
    %c0_37 = arith.constant 0 : index
    %c0_38 = arith.constant 0 : index
    %106 = vector.load %arg5[%c0_37, %c0_38] : memref<1x128xf32, #tpu.memory_space<vmem>>, vector<1x128xf32>
    %107 = vector.broadcast %106 : vector<1x128xf32> to vector<16x128xf32>
    %108 = arith.addf %105, %107 : vector<16x128xf32>
    %cst_39 = arith.constant 2.000000e+01 : f32
    %109 = vector.broadcast %cst_39 : f32 to vector<16x128xf32>
    %110 = arith.cmpf ogt, %108, %109 : vector<16x128xf32>
    %cst_40 = arith.constant 2.000000e+01 : f32
    %111 = vector.broadcast %cst_40 : f32 to vector<16x128xf32>
    %112 = arith.minimumf %108, %111 : vector<16x128xf32>
    %113 = math.exp %112 : vector<16x128xf32>
    %cst_41 = arith.constant 1.000000e+00 : f32
    %114 = vector.broadcast %cst_41 : f32 to vector<16x128xf32>
    %115 = arith.addf %114, %113 : vector<16x128xf32>
    %116 = math.log %115 : vector<16x128xf32>
    %117 = arith.select %110, %108, %116 : vector<16x128xi1>, vector<16x128xf32>
    %118 = vector.extract_strided_slice %104 {offsets = [0, 128], sizes = [16, 16], strides = [1, 1]} : vector<16x384xf32> to vector<16x16xf32>
    %119 = vector.extract_strided_slice %104 {offsets = [0, 256], sizes = [16, 16], strides = [1, 1]} : vector<16x384xf32> to vector<16x16xf32>
    %120 = arith.mulf %117, %102 : vector<16x128xf32>
    %c0_42 = arith.constant 0 : index
    %c0_43 = arith.constant 0 : index
    %121 = vector.load %arg6[%c0_42, %c0_43] : memref<16x128xf32, #tpu.memory_space<vmem>>, vector<16x128xf32>
    %122 = tpu.iota {dimensions = array<i32: 0>} : vector<16x16xi32>
    %123 = tpu.iota {dimensions = array<i32: 1>} : vector<16x16xi32>
    %124 = arith.cmpi eq, %122, %123 : vector<16x16xi32>
    %cst_44 = arith.constant 0.000000e+00 : f32
    %125 = vector.broadcast %cst_44 : f32 to vector<16x128xf32>
    %cst_45 = arith.constant 0.000000e+00 : f32
    %126 = vector.broadcast %cst_45 : f32 to vector<16x128xf32>
    %127 = vector.extract_strided_slice %117 {offsets = [0, 0], sizes = [1, 128], strides = [1, 1]} : vector<16x128xf32> to vector<1x128xf32>
    %128 = vector.broadcast %127 : vector<1x128xf32> to vector<16x128xf32>
    %129 = arith.mulf %128, %121 : vector<16x128xf32>
    %130 = math.exp %129 : vector<16x128xf32>
    %131 = vector.extract_strided_slice %118 {offsets = [0, 0], sizes = [1, 16], strides = [1, 1]} : vector<16x16xf32> to vector<1x16xf32>
    %cst_46 = arith.constant 0.000000e+00 : f32
    %132 = vector.shape_cast %131 : vector<1x16xf32> to vector<1x16xf32>
    %133 = vector.broadcast %132 : vector<1x16xf32> to vector<16x16xf32>
    %134 = vector.broadcast %cst_46 : f32 to vector<16x16xf32>
    %135 = arith.select %124, %133, %134 : vector<16x16xi1>, vector<16x16xf32>
    %cst_47 = arith.constant dense<0.000000e+00> : vector<16xf32>
    %136 = vector.multi_reduction <add>, %135, %cst_47 [1] : vector<16x16xf32> to vector<16xf32>
    %137 = vector.shape_cast %136 : vector<16xf32> to vector<16x1xf32>
    %138 = vector.extract_strided_slice %119 {offsets = [0, 0], sizes = [1, 16], strides = [1, 1]} : vector<16x16xf32> to vector<1x16xf32>
    %cst_48 = arith.constant 0.000000e+00 : f32
    %139 = vector.shape_cast %138 : vector<1x16xf32> to vector<1x16xf32>
    %140 = vector.broadcast %139 : vector<1x16xf32> to vector<16x16xf32>
    %141 = vector.broadcast %cst_48 : f32 to vector<16x16xf32>
    %142 = arith.select %124, %140, %141 : vector<16x16xi1>, vector<16x16xf32>
    %cst_49 = arith.constant dense<0.000000e+00> : vector<16xf32>
    %143 = vector.multi_reduction <add>, %142, %cst_49 [1] : vector<16x16xf32> to vector<16xf32>
    %144 = vector.shape_cast %143 : vector<16xf32> to vector<16x1xf32>
    %145 = arith.mulf %130, %125 : vector<16x128xf32>
    %146 = vector.extract_strided_slice %120 {offsets = [0, 0], sizes = [1, 128], strides = [1, 1]} : vector<16x128xf32> to vector<1x128xf32>
    %147 = vector.broadcast %146 : vector<1x128xf32> to vector<16x128xf32>
    %148 = vector.broadcast %137 : vector<16x1xf32> to vector<16x128xf32>
    %149 = arith.mulf %147, %148 : vector<16x128xf32>
    %150 = arith.addf %145, %149 : vector<16x128xf32>
    %151 = vector.broadcast %144 : vector<16x1xf32> to vector<16x128xf32>
    %152 = arith.mulf %150, %151 : vector<16x128xf32>
    %cst_50 = arith.constant dense<0.000000e+00> : vector<128xf32>
    %153 = vector.multi_reduction <add>, %152, %cst_50 [0] : vector<16x128xf32> to vector<128xf32>
    %154 = vector.shape_cast %153 : vector<128xf32> to vector<1x128xf32>
    %c0_51 = arith.constant 0 : index
    %c0_52 = arith.constant 0 : index
    %155 = vector.load %arg19[%c0_51, %c0_52] : memref<16x128xf32, #tpu.memory_space<vmem>>, vector<1x128xf32>
    tpu.vector_store %arg19[%c0_51, %c0_52], %154 {strides = array<i32>} : memref<16x128xf32, #tpu.memory_space<vmem>>, vector<1x128xf32>,
    %156 = vector.extract_strided_slice %117 {offsets = [8, 0], sizes = [1, 128], strides = [1, 1]} : vector<16x128xf32> to vector<1x128xf32>
    %157 = vector.broadcast %156 : vector<1x128xf32> to vector<16x128xf32>
    %158 = arith.mulf %157, %121 : vector<16x128xf32>
    %159 = math.exp %158 : vector<16x128xf32>
    %160 = vector.extract_strided_slice %118 {offsets = [8, 0], sizes = [1, 16], strides = [1, 1]} : vector<16x16xf32> to vector<1x16xf32>
    %cst_53 = arith.constant 0.000000e+00 : f32
    %161 = vector.shape_cast %160 : vector<1x16xf32> to vector<1x16xf32>
    %162 = vector.broadcast %161 : vector<1x16xf32> to vector<16x16xf32>
    %163 = vector.broadcast %cst_53 : f32 to vector<16x16xf32>
    %164 = arith.select %124, %162, %163 : vector<16x16xi1>, vector<16x16xf32>
    %cst_54 = arith.constant dense<0.000000e+00> : vector<16xf32>
    %165 = vector.multi_reduction <add>, %164, %cst_54 [1] : vector<16x16xf32> to vector<16xf32>
    %166 = vector.shape_cast %165 : vector<16xf32> to vector<16x1xf32>
    %167 = vector.extract_strided_slice %119 {offsets = [8, 0], sizes = [1, 16], strides = [1, 1]} : vector<16x16xf32> to vector<1x16xf32>
    %cst_55 = arith.constant 0.000000e+00 : f32
    %168 = vector.shape_cast %167 : vector<1x16xf32> to vector<1x16xf32>
    %169 = vector.broadcast %168 : vector<1x16xf32> to vector<16x16xf32>
    %170 = vector.broadcast %cst_55 : f32 to vector<16x16xf32>
    %171 = arith.select %124, %169, %170 : vector<16x16xi1>, vector<16x16xf32>
    %cst_56 = arith.constant dense<0.000000e+00> : vector<16xf32>
    %172 = vector.multi_reduction <add>, %171, %cst_56 [1] : vector<16x16xf32> to vector<16xf32>
    %173 = vector.shape_cast %172 : vector<16xf32> to vector<16x1xf32>
    %174 = arith.mulf %159, %126 : vector<16x128xf32>
    %175 = vector.extract_strided_slice %120 {offsets = [8, 0], sizes = [1, 128], strides = [1, 1]} : vector<16x128xf32> to vector<1x128xf32>
    %176 = vector.broadcast %175 : vector<1x128xf32> to vector<16x128xf32>
    %177 = vector.broadcast %166 : vector<16x1xf32> to vector<16x128xf32>
    %178 = arith.mulf %176, %177 : vector<16x128xf32>
    %179 = arith.addf %174, %178 : vector<16x128xf32>
    %180 = vector.broadcast %173 : vector<16x1xf32> to vector<16x128xf32>
    %181 = arith.mulf %179, %180 : vector<16x128xf32>
    %cst_57 = arith.constant dense<0.000000e+00> : vector<128xf32>
    %182 = vector.multi_reduction <add>, %181, %cst_57 [0] : vector<16x128xf32> to vector<128xf32>
    %183 = vector.shape_cast %182 : vector<128xf32> to vector<1x128xf32>
    %c8_58 = arith.constant 8 : index
    %c0_59 = arith.constant 0 : index
    %184 = vector.load %arg19[%c8_58, %c0_59] : memref<16x128xf32, #tpu.memory_space<vmem>>, vector<1x128xf32>
    tpu.vector_store %arg19[%c8_58, %c0_59], %183 {strides = array<i32>} : memref<16x128xf32, #tpu.memory_space<vmem>>, vector<1x128xf32>,
    %185 = vector.extract_strided_slice %117 {offsets = [1, 0], sizes = [1, 128], strides = [1, 1]} : vector<16x128xf32> to vector<1x128xf32>
    %186 = vector.broadcast %185 : vector<1x128xf32> to vector<16x128xf32>
    %187 = arith.mulf %186, %121 : vector<16x128xf32>
    %188 = math.exp %187 : vector<16x128xf32>
    %189 = vector.extract_strided_slice %118 {offsets = [1, 0], sizes = [1, 16], strides = [1, 1]} : vector<16x16xf32> to vector<1x16xf32>
    %cst_60 = arith.constant 0.000000e+00 : f32
    %190 = vector.shape_cast %189 : vector<1x16xf32> to vector<1x16xf32>
    %191 = vector.broadcast %190 : vector<1x16xf32> to vector<16x16xf32>
    %192 = vector.broadcast %cst_60 : f32 to vector<16x16xf32>
    %193 = arith.select %124, %191, %192 : vector<16x16xi1>, vector<16x16xf32>
    %cst_61 = arith.constant dense<0.000000e+00> : vector<16xf32>
    %194 = vector.multi_reduction <add>, %193, %cst_61 [1] : vector<16x16xf32> to vector<16xf32>
    %195 = vector.shape_cast %194 : vector<16xf32> to vector<16x1xf32>
    %196 = vector.extract_strided_slice %119 {offsets = [1, 0], sizes = [1, 16], strides = [1, 1]} : vector<16x16xf32> to vector<1x16xf32>
    %cst_62 = arith.constant 0.000000e+00 : f32
    %197 = vector.shape_cast %196 : vector<1x16xf32> to vector<1x16xf32>
    %198 = vector.broadcast %197 : vector<1x16xf32> to vector<16x16xf32>
    %199 = vector.broadcast %cst_62 : f32 to vector<16x16xf32>
    %200 = arith.select %124, %198, %199 : vector<16x16xi1>, vector<16x16xf32>
    %cst_63 = arith.constant dense<0.000000e+00> : vector<16xf32>
    %201 = vector.multi_reduction <add>, %200, %cst_63 [1] : vector<16x16xf32> to vector<16xf32>
    %202 = vector.shape_cast %201 : vector<16xf32> to vector<16x1xf32>
    %203 = arith.mulf %188, %150 : vector<16x128xf32>
    %204 = vector.extract_strided_slice %120 {offsets = [1, 0], sizes = [1, 128], strides = [1, 1]} : vector<16x128xf32> to vector<1x128xf32>
    %205 = vector.broadcast %204 : vector<1x128xf32> to vector<16x128xf32>
    %206 = vector.broadcast %195 : vector<16x1xf32> to vector<16x128xf32>
    %207 = arith.mulf %205, %206 : vector<16x128xf32>
    %208 = arith.addf %203, %207 : vector<16x128xf32>
    %209 = vector.broadcast %202 : vector<16x1xf32> to vector<16x128xf32>
    %210 = arith.mulf %208, %209 : vector<16x128xf32>
    %cst_64 = arith.constant dense<0.000000e+00> : vector<128xf32>
    %211 = vector.multi_reduction <add>, %210, %cst_64 [0] : vector<16x128xf32> to vector<128xf32>
    %212 = vector.shape_cast %211 : vector<128xf32> to vector<1x128xf32>
    %c1 = arith.constant 1 : index
    %c0_65 = arith.constant 0 : index
    %213 = vector.load %arg19[%c1, %c0_65] : memref<16x128xf32, #tpu.memory_space<vmem>>, vector<1x128xf32>
    tpu.vector_store %arg19[%c1, %c0_65], %212 {strides = array<i32>} : memref<16x128xf32, #tpu.memory_space<vmem>>, vector<1x128xf32>,
    %214 = vector.extract_strided_slice %117 {offsets = [9, 0], sizes = [1, 128], strides = [1, 1]} : vector<16x128xf32> to vector<1x128xf32>
    %215 = vector.broadcast %214 : vector<1x128xf32> to vector<16x128xf32>
    %216 = arith.mulf %215, %121 : vector<16x128xf32>
    %217 = math.exp %216 : vector<16x128xf32>
    %218 = vector.extract_strided_slice %118 {offsets = [9, 0], sizes = [1, 16], strides = [1, 1]} : vector<16x16xf32> to vector<1x16xf32>
    %cst_66 = arith.constant 0.000000e+00 : f32
    %219 = vector.shape_cast %218 : vector<1x16xf32> to vector<1x16xf32>
    %220 = vector.broadcast %219 : vector<1x16xf32> to vector<16x16xf32>
    %221 = vector.broadcast %cst_66 : f32 to vector<16x16xf32>
    %222 = arith.select %124, %220, %221 : vector<16x16xi1>, vector<16x16xf32>
    %cst_67 = arith.constant dense<0.000000e+00> : vector<16xf32>
    %223 = vector.multi_reduction <add>, %222, %cst_67 [1] : vector<16x16xf32> to vector<16xf32>
    %224 = vector.shape_cast %223 : vector<16xf32> to vector<16x1xf32>
    %225 = vector.extract_strided_slice %119 {offsets = [9, 0], sizes = [1, 16], strides = [1, 1]} : vector<16x16xf32> to vector<1x16xf32>
    %cst_68 = arith.constant 0.000000e+00 : f32
    %226 = vector.shape_cast %225 : vector<1x16xf32> to vector<1x16xf32>
    %227 = vector.broadcast %226 : vector<1x16xf32> to vector<16x16xf32>
    %228 = vector.broadcast %cst_68 : f32 to vector<16x16xf32>
    %229 = arith.select %124, %227, %228 : vector<16x16xi1>, vector<16x16xf32>
    %cst_69 = arith.constant dense<0.000000e+00> : vector<16xf32>
    %230 = vector.multi_reduction <add>, %229, %cst_69 [1] : vector<16x16xf32> to vector<16xf32>
    %231 = vector.shape_cast %230 : vector<16xf32> to vector<16x1xf32>
    %232 = arith.mulf %217, %179 : vector<16x128xf32>
    %233 = vector.extract_strided_slice %120 {offsets = [9, 0], sizes = [1, 128], strides = [1, 1]} : vector<16x128xf32> to vector<1x128xf32>
    %234 = vector.broadcast %233 : vector<1x128xf32> to vector<16x128xf32>
    %235 = vector.broadcast %224 : vector<16x1xf32> to vector<16x128xf32>
    %236 = arith.mulf %234, %235 : vector<16x128xf32>
    %237 = arith.addf %232, %236 : vector<16x128xf32>
    %238 = vector.broadcast %231 : vector<16x1xf32> to vector<16x128xf32>
    %239 = arith.mulf %237, %238 : vector<16x128xf32>
    %cst_70 = arith.constant dense<0.000000e+00> : vector<128xf32>
    %240 = vector.multi_reduction <add>, %239, %cst_70 [0] : vector<16x128xf32> to vector<128xf32>
    %241 = vector.shape_cast %240 : vector<128xf32> to vector<1x128xf32>
    %c9 = arith.constant 9 : index
    %c0_71 = arith.constant 0 : index
    %242 = vector.load %arg19[%c9, %c0_71] : memref<16x128xf32, #tpu.memory_space<vmem>>, vector<1x128xf32>
    tpu.vector_store %arg19[%c9, %c0_71], %241 {strides = array<i32>} : memref<16x128xf32, #tpu.memory_space<vmem>>, vector<1x128xf32>,
    %243 = vector.extract_strided_slice %117 {offsets = [2, 0], sizes = [1, 128], strides = [1, 1]} : vector<16x128xf32> to vector<1x128xf32>
    %244 = vector.broadcast %243 : vector<1x128xf32> to vector<16x128xf32>
    %245 = arith.mulf %244, %121 : vector<16x128xf32>
    %246 = math.exp %245 : vector<16x128xf32>
    %247 = vector.extract_strided_slice %118 {offsets = [2, 0], sizes = [1, 16], strides = [1, 1]} : vector<16x16xf32> to vector<1x16xf32>
    %cst_72 = arith.constant 0.000000e+00 : f32
    %248 = vector.shape_cast %247 : vector<1x16xf32> to vector<1x16xf32>
    %249 = vector.broadcast %248 : vector<1x16xf32> to vector<16x16xf32>
    %250 = vector.broadcast %cst_72 : f32 to vector<16x16xf32>
    %251 = arith.select %124, %249, %250 : vector<16x16xi1>, vector<16x16xf32>
    %cst_73 = arith.constant dense<0.000000e+00> : vector<16xf32>
    %252 = vector.multi_reduction <add>, %251, %cst_73 [1] : vector<16x16xf32> to vector<16xf32>
    %253 = vector.shape_cast %252 : vector<16xf32> to vector<16x1xf32>
    %254 = vector.extract_strided_slice %119 {offsets = [2, 0], sizes = [1, 16], strides = [1, 1]} : vector<16x16xf32> to vector<1x16xf32>
    %cst_74 = arith.constant 0.000000e+00 : f32
    %255 = vector.shape_cast %254 : vector<1x16xf32> to vector<1x16xf32>
    %256 = vector.broadcast %255 : vector<1x16xf32> to vector<16x16xf32>
    %257 = vector.broadcast %cst_74 : f32 to vector<16x16xf32>
    %258 = arith.select %124, %256, %257 : vector<16x16xi1>, vector<16x16xf32>
    %cst_75 = arith.constant dense<0.000000e+00> : vector<16xf32>
    %259 = vector.multi_reduction <add>, %258, %cst_75 [1] : vector<16x16xf32> to vector<16xf32>
    %260 = vector.shape_cast %259 : vector<16xf32> to vector<16x1xf32>
    %261 = arith.mulf %246, %208 : vector<16x128xf32>
    %262 = vector.extract_strided_slice %120 {offsets = [2, 0], sizes = [1, 128], strides = [1, 1]} : vector<16x128xf32> to vector<1x128xf32>
    %263 = vector.broadcast %262 : vector<1x128xf32> to vector<16x128xf32>
    %264 = vector.broadcast %253 : vector<16x1xf32> to vector<16x128xf32>
    %265 = arith.mulf %263, %264 : vector<16x128xf32>
    %266 = arith.addf %261, %265 : vector<16x128xf32>
    %267 = vector.broadcast %260 : vector<16x1xf32> to vector<16x128xf32>
    %268 = arith.mulf %266, %267 : vector<16x128xf32>
    %cst_76 = arith.constant dense<0.000000e+00> : vector<128xf32>
    %269 = vector.multi_reduction <add>, %268, %cst_76 [0] : vector<16x128xf32> to vector<128xf32>
    %270 = vector.shape_cast %269 : vector<128xf32> to vector<1x128xf32>
    %c2 = arith.constant 2 : index
    %c0_77 = arith.constant 0 : index
    %271 = vector.load %arg19[%c2, %c0_77] : memref<16x128xf32, #tpu.memory_space<vmem>>, vector<1x128xf32>
    tpu.vector_store %arg19[%c2, %c0_77], %270 {strides = array<i32>} : memref<16x128xf32, #tpu.memory_space<vmem>>, vector<1x128xf32>,
    %272 = vector.extract_strided_slice %117 {offsets = [10, 0], sizes = [1, 128], strides = [1, 1]} : vector<16x128xf32> to vector<1x128xf32>
    %273 = vector.broadcast %272 : vector<1x128xf32> to vector<16x128xf32>
    %274 = arith.mulf %273, %121 : vector<16x128xf32>
    %275 = math.exp %274 : vector<16x128xf32>
    %276 = vector.extract_strided_slice %118 {offsets = [10, 0], sizes = [1, 16], strides = [1, 1]} : vector<16x16xf32> to vector<1x16xf32>
    %cst_78 = arith.constant 0.000000e+00 : f32
    %277 = vector.shape_cast %276 : vector<1x16xf32> to vector<1x16xf32>
    %278 = vector.broadcast %277 : vector<1x16xf32> to vector<16x16xf32>
    %279 = vector.broadcast %cst_78 : f32 to vector<16x16xf32>
    %280 = arith.select %124, %278, %279 : vector<16x16xi1>, vector<16x16xf32>
    %cst_79 = arith.constant dense<0.000000e+00> : vector<16xf32>
    %281 = vector.multi_reduction <add>, %280, %cst_79 [1] : vector<16x16xf32> to vector<16xf32>
    %282 = vector.shape_cast %281 : vector<16xf32> to vector<16x1xf32>
    %283 = vector.extract_strided_slice %119 {offsets = [10, 0], sizes = [1, 16], strides = [1, 1]} : vector<16x16xf32> to vector<1x16xf32>
    %cst_80 = arith.constant 0.000000e+00 : f32
    %284 = vector.shape_cast %283 : vector<1x16xf32> to vector<1x16xf32>
    %285 = vector.broadcast %284 : vector<1x16xf32> to vector<16x16xf32>
    %286 = vector.broadcast %cst_80 : f32 to vector<16x16xf32>
    %287 = arith.select %124, %285, %286 : vector<16x16xi1>, vector<16x16xf32>
    %cst_81 = arith.constant dense<0.000000e+00> : vector<16xf32>
    %288 = vector.multi_reduction <add>, %287, %cst_81 [1] : vector<16x16xf32> to vector<16xf32>
    %289 = vector.shape_cast %288 : vector<16xf32> to vector<16x1xf32>
    %290 = arith.mulf %275, %237 : vector<16x128xf32>
    %291 = vector.extract_strided_slice %120 {offsets = [10, 0], sizes = [1, 128], strides = [1, 1]} : vector<16x128xf32> to vector<1x128xf32>
    %292 = vector.broadcast %291 : vector<1x128xf32> to vector<16x128xf32>
    %293 = vector.broadcast %282 : vector<16x1xf32> to vector<16x128xf32>
    %294 = arith.mulf %292, %293 : vector<16x128xf32>
    %295 = arith.addf %290, %294 : vector<16x128xf32>
    %296 = vector.broadcast %289 : vector<16x1xf32> to vector<16x128xf32>
    %297 = arith.mulf %295, %296 : vector<16x128xf32>
    %cst_82 = arith.constant dense<0.000000e+00> : vector<128xf32>
    %298 = vector.multi_reduction <add>, %297, %cst_82 [0] : vector<16x128xf32> to vector<128xf32>
    %299 = vector.shape_cast %298 : vector<128xf32> to vector<1x128xf32>
    %c10 = arith.constant 10 : index
    %c0_83 = arith.constant 0 : index
    %300 = vector.load %arg19[%c10, %c0_83] : memref<16x128xf32, #tpu.memory_space<vmem>>, vector<1x128xf32>
    tpu.vector_store %arg19[%c10, %c0_83], %299 {strides = array<i32>} : memref<16x128xf32, #tpu.memory_space<vmem>>, vector<1x128xf32>,
    %301 = vector.extract_strided_slice %117 {offsets = [3, 0], sizes = [1, 128], strides = [1, 1]} : vector<16x128xf32> to vector<1x128xf32>
    %302 = vector.broadcast %301 : vector<1x128xf32> to vector<16x128xf32>
    %303 = arith.mulf %302, %121 : vector<16x128xf32>
    %304 = math.exp %303 : vector<16x128xf32>
    %305 = vector.extract_strided_slice %118 {offsets = [3, 0], sizes = [1, 16], strides = [1, 1]} : vector<16x16xf32> to vector<1x16xf32>
    %cst_84 = arith.constant 0.000000e+00 : f32
    %306 = vector.shape_cast %305 : vector<1x16xf32> to vector<1x16xf32>
    %307 = vector.broadcast %306 : vector<1x16xf32> to vector<16x16xf32>
    %308 = vector.broadcast %cst_84 : f32 to vector<16x16xf32>
    %309 = arith.select %124, %307, %308 : vector<16x16xi1>, vector<16x16xf32>
    %cst_85 = arith.constant dense<0.000000e+00> : vector<16xf32>
    %310 = vector.multi_reduction <add>, %309, %cst_85 [1] : vector<16x16xf32> to vector<16xf32>
    %311 = vector.shape_cast %310 : vector<16xf32> to vector<16x1xf32>
    %312 = vector.extract_strided_slice %119 {offsets = [3, 0], sizes = [1, 16], strides = [1, 1]} : vector<16x16xf32> to vector<1x16xf32>
    %cst_86 = arith.constant 0.000000e+00 : f32
    %313 = vector.shape_cast %312 : vector<1x16xf32> to vector<1x16xf32>
    %314 = vector.broadcast %313 : vector<1x16xf32> to vector<16x16xf32>
    %315 = vector.broadcast %cst_86 : f32 to vector<16x16xf32>
    %316 = arith.select %124, %314, %315 : vector<16x16xi1>, vector<16x16xf32>
    %cst_87 = arith.constant dense<0.000000e+00> : vector<16xf32>
    %317 = vector.multi_reduction <add>, %316, %cst_87 [1] : vector<16x16xf32> to vector<16xf32>
    %318 = vector.shape_cast %317 : vector<16xf32> to vector<16x1xf32>
    %319 = arith.mulf %304, %266 : vector<16x128xf32>
    %320 = vector.extract_strided_slice %120 {offsets = [3, 0], sizes = [1, 128], strides = [1, 1]} : vector<16x128xf32> to vector<1x128xf32>
    %321 = vector.broadcast %320 : vector<1x128xf32> to vector<16x128xf32>
    %322 = vector.broadcast %311 : vector<16x1xf32> to vector<16x128xf32>
    %323 = arith.mulf %321, %322 : vector<16x128xf32>
    %324 = arith.addf %319, %323 : vector<16x128xf32>
    %325 = vector.broadcast %318 : vector<16x1xf32> to vector<16x128xf32>
    %326 = arith.mulf %324, %325 : vector<16x128xf32>
    %cst_88 = arith.constant dense<0.000000e+00> : vector<128xf32>
    %327 = vector.multi_reduction <add>, %326, %cst_88 [0] : vector<16x128xf32> to vector<128xf32>
    %328 = vector.shape_cast %327 : vector<128xf32> to vector<1x128xf32>
    %c3 = arith.constant 3 : index
    %c0_89 = arith.constant 0 : index
    %329 = vector.load %arg19[%c3, %c0_89] : memref<16x128xf32, #tpu.memory_space<vmem>>, vector<1x128xf32>
    tpu.vector_store %arg19[%c3, %c0_89], %328 {strides = array<i32>} : memref<16x128xf32, #tpu.memory_space<vmem>>, vector<1x128xf32>,
    %330 = vector.extract_strided_slice %117 {offsets = [11, 0], sizes = [1, 128], strides = [1, 1]} : vector<16x128xf32> to vector<1x128xf32>
    %331 = vector.broadcast %330 : vector<1x128xf32> to vector<16x128xf32>
    %332 = arith.mulf %331, %121 : vector<16x128xf32>
    %333 = math.exp %332 : vector<16x128xf32>
    %334 = vector.extract_strided_slice %118 {offsets = [11, 0], sizes = [1, 16], strides = [1, 1]} : vector<16x16xf32> to vector<1x16xf32>
    %cst_90 = arith.constant 0.000000e+00 : f32
    %335 = vector.shape_cast %334 : vector<1x16xf32> to vector<1x16xf32>
    %336 = vector.broadcast %335 : vector<1x16xf32> to vector<16x16xf32>
    %337 = vector.broadcast %cst_90 : f32 to vector<16x16xf32>
    %338 = arith.select %124, %336, %337 : vector<16x16xi1>, vector<16x16xf32>
    %cst_91 = arith.constant dense<0.000000e+00> : vector<16xf32>
    %339 = vector.multi_reduction <add>, %338, %cst_91 [1] : vector<16x16xf32> to vector<16xf32>
    %340 = vector.shape_cast %339 : vector<16xf32> to vector<16x1xf32>
    %341 = vector.extract_strided_slice %119 {offsets = [11, 0], sizes = [1, 16], strides = [1, 1]} : vector<16x16xf32> to vector<1x16xf32>
    %cst_92 = arith.constant 0.000000e+00 : f32
    %342 = vector.shape_cast %341 : vector<1x16xf32> to vector<1x16xf32>
    %343 = vector.broadcast %342 : vector<1x16xf32> to vector<16x16xf32>
    %344 = vector.broadcast %cst_92 : f32 to vector<16x16xf32>
    %345 = arith.select %124, %343, %344 : vector<16x16xi1>, vector<16x16xf32>
    %cst_93 = arith.constant dense<0.000000e+00> : vector<16xf32>
    %346 = vector.multi_reduction <add>, %345, %cst_93 [1] : vector<16x16xf32> to vector<16xf32>
    %347 = vector.shape_cast %346 : vector<16xf32> to vector<16x1xf32>
    %348 = arith.mulf %333, %295 : vector<16x128xf32>
    %349 = vector.extract_strided_slice %120 {offsets = [11, 0], sizes = [1, 128], strides = [1, 1]} : vector<16x128xf32> to vector<1x128xf32>
    %350 = vector.broadcast %349 : vector<1x128xf32> to vector<16x128xf32>
    %351 = vector.broadcast %340 : vector<16x1xf32> to vector<16x128xf32>
    %352 = arith.mulf %350, %351 : vector<16x128xf32>
    %353 = arith.addf %348, %352 : vector<16x128xf32>
    %354 = vector.broadcast %347 : vector<16x1xf32> to vector<16x128xf32>
    %355 = arith.mulf %353, %354 : vector<16x128xf32>
    %cst_94 = arith.constant dense<0.000000e+00> : vector<128xf32>
    %356 = vector.multi_reduction <add>, %355, %cst_94 [0] : vector<16x128xf32> to vector<128xf32>
    %357 = vector.shape_cast %356 : vector<128xf32> to vector<1x128xf32>
    %c11 = arith.constant 11 : index
    %c0_95 = arith.constant 0 : index
    %358 = vector.load %arg19[%c11, %c0_95] : memref<16x128xf32, #tpu.memory_space<vmem>>, vector<1x128xf32>
    tpu.vector_store %arg19[%c11, %c0_95], %357 {strides = array<i32>} : memref<16x128xf32, #tpu.memory_space<vmem>>, vector<1x128xf32>,
    %359 = vector.extract_strided_slice %117 {offsets = [4, 0], sizes = [1, 128], strides = [1, 1]} : vector<16x128xf32> to vector<1x128xf32>
    %360 = vector.broadcast %359 : vector<1x128xf32> to vector<16x128xf32>
    %361 = arith.mulf %360, %121 : vector<16x128xf32>
    %362 = math.exp %361 : vector<16x128xf32>
    %363 = vector.extract_strided_slice %118 {offsets = [4, 0], sizes = [1, 16], strides = [1, 1]} : vector<16x16xf32> to vector<1x16xf32>
    %cst_96 = arith.constant 0.000000e+00 : f32
    %364 = vector.shape_cast %363 : vector<1x16xf32> to vector<1x16xf32>
    %365 = vector.broadcast %364 : vector<1x16xf32> to vector<16x16xf32>
    %366 = vector.broadcast %cst_96 : f32 to vector<16x16xf32>
    %367 = arith.select %124, %365, %366 : vector<16x16xi1>, vector<16x16xf32>
    %cst_97 = arith.constant dense<0.000000e+00> : vector<16xf32>
    %368 = vector.multi_reduction <add>, %367, %cst_97 [1] : vector<16x16xf32> to vector<16xf32>
    %369 = vector.shape_cast %368 : vector<16xf32> to vector<16x1xf32>
    %370 = vector.extract_strided_slice %119 {offsets = [4, 0], sizes = [1, 16], strides = [1, 1]} : vector<16x16xf32> to vector<1x16xf32>
    %cst_98 = arith.constant 0.000000e+00 : f32
    %371 = vector.shape_cast %370 : vector<1x16xf32> to vector<1x16xf32>
    %372 = vector.broadcast %371 : vector<1x16xf32> to vector<16x16xf32>
    %373 = vector.broadcast %cst_98 : f32 to vector<16x16xf32>
    %374 = arith.select %124, %372, %373 : vector<16x16xi1>, vector<16x16xf32>
    %cst_99 = arith.constant dense<0.000000e+00> : vector<16xf32>
    %375 = vector.multi_reduction <add>, %374, %cst_99 [1] : vector<16x16xf32> to vector<16xf32>
    %376 = vector.shape_cast %375 : vector<16xf32> to vector<16x1xf32>
    %377 = arith.mulf %362, %324 : vector<16x128xf32>
    %378 = vector.extract_strided_slice %120 {offsets = [4, 0], sizes = [1, 128], strides = [1, 1]} : vector<16x128xf32> to vector<1x128xf32>
    %379 = vector.broadcast %378 : vector<1x128xf32> to vector<16x128xf32>
    %380 = vector.broadcast %369 : vector<16x1xf32> to vector<16x128xf32>
    %381 = arith.mulf %379, %380 : vector<16x128xf32>
    %382 = arith.addf %377, %381 : vector<16x128xf32>
    %383 = vector.broadcast %376 : vector<16x1xf32> to vector<16x128xf32>
    %384 = arith.mulf %382, %383 : vector<16x128xf32>
    %cst_100 = arith.constant dense<0.000000e+00> : vector<128xf32>
    %385 = vector.multi_reduction <add>, %384, %cst_100 [0] : vector<16x128xf32> to vector<128xf32>
    %386 = vector.shape_cast %385 : vector<128xf32> to vector<1x128xf32>
    %c4 = arith.constant 4 : index
    %c0_101 = arith.constant 0 : index
    %387 = vector.load %arg19[%c4, %c0_101] : memref<16x128xf32, #tpu.memory_space<vmem>>, vector<1x128xf32>
    tpu.vector_store %arg19[%c4, %c0_101], %386 {strides = array<i32>} : memref<16x128xf32, #tpu.memory_space<vmem>>, vector<1x128xf32>,
    %388 = vector.extract_strided_slice %117 {offsets = [12, 0], sizes = [1, 128], strides = [1, 1]} : vector<16x128xf32> to vector<1x128xf32>
    %389 = vector.broadcast %388 : vector<1x128xf32> to vector<16x128xf32>
    %390 = arith.mulf %389, %121 : vector<16x128xf32>
    %391 = math.exp %390 : vector<16x128xf32>
    %392 = vector.extract_strided_slice %118 {offsets = [12, 0], sizes = [1, 16], strides = [1, 1]} : vector<16x16xf32> to vector<1x16xf32>
    %cst_102 = arith.constant 0.000000e+00 : f32
    %393 = vector.shape_cast %392 : vector<1x16xf32> to vector<1x16xf32>
    %394 = vector.broadcast %393 : vector<1x16xf32> to vector<16x16xf32>
    %395 = vector.broadcast %cst_102 : f32 to vector<16x16xf32>
    %396 = arith.select %124, %394, %395 : vector<16x16xi1>, vector<16x16xf32>
    %cst_103 = arith.constant dense<0.000000e+00> : vector<16xf32>
    %397 = vector.multi_reduction <add>, %396, %cst_103 [1] : vector<16x16xf32> to vector<16xf32>
    %398 = vector.shape_cast %397 : vector<16xf32> to vector<16x1xf32>
    %399 = vector.extract_strided_slice %119 {offsets = [12, 0], sizes = [1, 16], strides = [1, 1]} : vector<16x16xf32> to vector<1x16xf32>
    %cst_104 = arith.constant 0.000000e+00 : f32
    %400 = vector.shape_cast %399 : vector<1x16xf32> to vector<1x16xf32>
    %401 = vector.broadcast %400 : vector<1x16xf32> to vector<16x16xf32>
    %402 = vector.broadcast %cst_104 : f32 to vector<16x16xf32>
    %403 = arith.select %124, %401, %402 : vector<16x16xi1>, vector<16x16xf32>
    %cst_105 = arith.constant dense<0.000000e+00> : vector<16xf32>
    %404 = vector.multi_reduction <add>, %403, %cst_105 [1] : vector<16x16xf32> to vector<16xf32>
    %405 = vector.shape_cast %404 : vector<16xf32> to vector<16x1xf32>
    %406 = arith.mulf %391, %353 : vector<16x128xf32>
    %407 = vector.extract_strided_slice %120 {offsets = [12, 0], sizes = [1, 128], strides = [1, 1]} : vector<16x128xf32> to vector<1x128xf32>
    %408 = vector.broadcast %407 : vector<1x128xf32> to vector<16x128xf32>
    %409 = vector.broadcast %398 : vector<16x1xf32> to vector<16x128xf32>
    %410 = arith.mulf %408, %409 : vector<16x128xf32>
    %411 = arith.addf %406, %410 : vector<16x128xf32>
    %412 = vector.broadcast %405 : vector<16x1xf32> to vector<16x128xf32>
    %413 = arith.mulf %411, %412 : vector<16x128xf32>
    %cst_106 = arith.constant dense<0.000000e+00> : vector<128xf32>
    %414 = vector.multi_reduction <add>, %413, %cst_106 [0] : vector<16x128xf32> to vector<128xf32>
    %415 = vector.shape_cast %414 : vector<128xf32> to vector<1x128xf32>
    %c12 = arith.constant 12 : index
    %c0_107 = arith.constant 0 : index
    %416 = vector.load %arg19[%c12, %c0_107] : memref<16x128xf32, #tpu.memory_space<vmem>>, vector<1x128xf32>
    tpu.vector_store %arg19[%c12, %c0_107], %415 {strides = array<i32>} : memref<16x128xf32, #tpu.memory_space<vmem>>, vector<1x128xf32>,
    %417 = vector.extract_strided_slice %117 {offsets = [5, 0], sizes = [1, 128], strides = [1, 1]} : vector<16x128xf32> to vector<1x128xf32>
    %418 = vector.broadcast %417 : vector<1x128xf32> to vector<16x128xf32>
    %419 = arith.mulf %418, %121 : vector<16x128xf32>
    %420 = math.exp %419 : vector<16x128xf32>
    %421 = vector.extract_strided_slice %118 {offsets = [5, 0], sizes = [1, 16], strides = [1, 1]} : vector<16x16xf32> to vector<1x16xf32>
    %cst_108 = arith.constant 0.000000e+00 : f32
    %422 = vector.shape_cast %421 : vector<1x16xf32> to vector<1x16xf32>
    %423 = vector.broadcast %422 : vector<1x16xf32> to vector<16x16xf32>
    %424 = vector.broadcast %cst_108 : f32 to vector<16x16xf32>
    %425 = arith.select %124, %423, %424 : vector<16x16xi1>, vector<16x16xf32>
    %cst_109 = arith.constant dense<0.000000e+00> : vector<16xf32>
    %426 = vector.multi_reduction <add>, %425, %cst_109 [1] : vector<16x16xf32> to vector<16xf32>
    %427 = vector.shape_cast %426 : vector<16xf32> to vector<16x1xf32>
    %428 = vector.extract_strided_slice %119 {offsets = [5, 0], sizes = [1, 16], strides = [1, 1]} : vector<16x16xf32> to vector<1x16xf32>
    %cst_110 = arith.constant 0.000000e+00 : f32
    %429 = vector.shape_cast %428 : vector<1x16xf32> to vector<1x16xf32>
    %430 = vector.broadcast %429 : vector<1x16xf32> to vector<16x16xf32>
    %431 = vector.broadcast %cst_110 : f32 to vector<16x16xf32>
    %432 = arith.select %124, %430, %431 : vector<16x16xi1>, vector<16x16xf32>
    %cst_111 = arith.constant dense<0.000000e+00> : vector<16xf32>
    %433 = vector.multi_reduction <add>, %432, %cst_111 [1] : vector<16x16xf32> to vector<16xf32>
    %434 = vector.shape_cast %433 : vector<16xf32> to vector<16x1xf32>
    %435 = arith.mulf %420, %382 : vector<16x128xf32>
    %436 = vector.extract_strided_slice %120 {offsets = [5, 0], sizes = [1, 128], strides = [1, 1]} : vector<16x128xf32> to vector<1x128xf32>
    %437 = vector.broadcast %436 : vector<1x128xf32> to vector<16x128xf32>
    %438 = vector.broadcast %427 : vector<16x1xf32> to vector<16x128xf32>
    %439 = arith.mulf %437, %438 : vector<16x128xf32>
    %440 = arith.addf %435, %439 : vector<16x128xf32>
    %441 = vector.broadcast %434 : vector<16x1xf32> to vector<16x128xf32>
    %442 = arith.mulf %440, %441 : vector<16x128xf32>
    %cst_112 = arith.constant dense<0.000000e+00> : vector<128xf32>
    %443 = vector.multi_reduction <add>, %442, %cst_112 [0] : vector<16x128xf32> to vector<128xf32>
    %444 = vector.shape_cast %443 : vector<128xf32> to vector<1x128xf32>
    %c5_113 = arith.constant 5 : index
    %c0_114 = arith.constant 0 : index
    %445 = vector.load %arg19[%c5_113, %c0_114] : memref<16x128xf32, #tpu.memory_space<vmem>>, vector<1x128xf32>
    tpu.vector_store %arg19[%c5_113, %c0_114], %444 {strides = array<i32>} : memref<16x128xf32, #tpu.memory_space<vmem>>, vector<1x128xf32>,
    %446 = vector.extract_strided_slice %117 {offsets = [13, 0], sizes = [1, 128], strides = [1, 1]} : vector<16x128xf32> to vector<1x128xf32>
    %447 = vector.broadcast %446 : vector<1x128xf32> to vector<16x128xf32>
    %448 = arith.mulf %447, %121 : vector<16x128xf32>
    %449 = math.exp %448 : vector<16x128xf32>
    %450 = vector.extract_strided_slice %118 {offsets = [13, 0], sizes = [1, 16], strides = [1, 1]} : vector<16x16xf32> to vector<1x16xf32>
    %cst_115 = arith.constant 0.000000e+00 : f32
    %451 = vector.shape_cast %450 : vector<1x16xf32> to vector<1x16xf32>
    %452 = vector.broadcast %451 : vector<1x16xf32> to vector<16x16xf32>
    %453 = vector.broadcast %cst_115 : f32 to vector<16x16xf32>
    %454 = arith.select %124, %452, %453 : vector<16x16xi1>, vector<16x16xf32>
    %cst_116 = arith.constant dense<0.000000e+00> : vector<16xf32>
    %455 = vector.multi_reduction <add>, %454, %cst_116 [1] : vector<16x16xf32> to vector<16xf32>
    %456 = vector.shape_cast %455 : vector<16xf32> to vector<16x1xf32>
    %457 = vector.extract_strided_slice %119 {offsets = [13, 0], sizes = [1, 16], strides = [1, 1]} : vector<16x16xf32> to vector<1x16xf32>
    %cst_117 = arith.constant 0.000000e+00 : f32
    %458 = vector.shape_cast %457 : vector<1x16xf32> to vector<1x16xf32>
    %459 = vector.broadcast %458 : vector<1x16xf32> to vector<16x16xf32>
    %460 = vector.broadcast %cst_117 : f32 to vector<16x16xf32>
    %461 = arith.select %124, %459, %460 : vector<16x16xi1>, vector<16x16xf32>
    %cst_118 = arith.constant dense<0.000000e+00> : vector<16xf32>
    %462 = vector.multi_reduction <add>, %461, %cst_118 [1] : vector<16x16xf32> to vector<16xf32>
    %463 = vector.shape_cast %462 : vector<16xf32> to vector<16x1xf32>
    %464 = arith.mulf %449, %411 : vector<16x128xf32>
    %465 = vector.extract_strided_slice %120 {offsets = [13, 0], sizes = [1, 128], strides = [1, 1]} : vector<16x128xf32> to vector<1x128xf32>
    %466 = vector.broadcast %465 : vector<1x128xf32> to vector<16x128xf32>
    %467 = vector.broadcast %456 : vector<16x1xf32> to vector<16x128xf32>
    %468 = arith.mulf %466, %467 : vector<16x128xf32>
    %469 = arith.addf %464, %468 : vector<16x128xf32>
    %470 = vector.broadcast %463 : vector<16x1xf32> to vector<16x128xf32>
    %471 = arith.mulf %469, %470 : vector<16x128xf32>
    %cst_119 = arith.constant dense<0.000000e+00> : vector<128xf32>
    %472 = vector.multi_reduction <add>, %471, %cst_119 [0] : vector<16x128xf32> to vector<128xf32>
    %473 = vector.shape_cast %472 : vector<128xf32> to vector<1x128xf32>
    %c13 = arith.constant 13 : index
    %c0_120 = arith.constant 0 : index
    %474 = vector.load %arg19[%c13, %c0_120] : memref<16x128xf32, #tpu.memory_space<vmem>>, vector<1x128xf32>
    tpu.vector_store %arg19[%c13, %c0_120], %473 {strides = array<i32>} : memref<16x128xf32, #tpu.memory_space<vmem>>, vector<1x128xf32>,
    %475 = vector.extract_strided_slice %117 {offsets = [6, 0], sizes = [1, 128], strides = [1, 1]} : vector<16x128xf32> to vector<1x128xf32>
    %476 = vector.broadcast %475 : vector<1x128xf32> to vector<16x128xf32>
    %477 = arith.mulf %476, %121 : vector<16x128xf32>
    %478 = math.exp %477 : vector<16x128xf32>
    %479 = vector.extract_strided_slice %118 {offsets = [6, 0], sizes = [1, 16], strides = [1, 1]} : vector<16x16xf32> to vector<1x16xf32>
    %cst_121 = arith.constant 0.000000e+00 : f32
    %480 = vector.shape_cast %479 : vector<1x16xf32> to vector<1x16xf32>
    %481 = vector.broadcast %480 : vector<1x16xf32> to vector<16x16xf32>
    %482 = vector.broadcast %cst_121 : f32 to vector<16x16xf32>
    %483 = arith.select %124, %481, %482 : vector<16x16xi1>, vector<16x16xf32>
    %cst_122 = arith.constant dense<0.000000e+00> : vector<16xf32>
    %484 = vector.multi_reduction <add>, %483, %cst_122 [1] : vector<16x16xf32> to vector<16xf32>
    %485 = vector.shape_cast %484 : vector<16xf32> to vector<16x1xf32>
    %486 = vector.extract_strided_slice %119 {offsets = [6, 0], sizes = [1, 16], strides = [1, 1]} : vector<16x16xf32> to vector<1x16xf32>
    %cst_123 = arith.constant 0.000000e+00 : f32
    %487 = vector.shape_cast %486 : vector<1x16xf32> to vector<1x16xf32>
    %488 = vector.broadcast %487 : vector<1x16xf32> to vector<16x16xf32>
    %489 = vector.broadcast %cst_123 : f32 to vector<16x16xf32>
    %490 = arith.select %124, %488, %489 : vector<16x16xi1>, vector<16x16xf32>
    %cst_124 = arith.constant dense<0.000000e+00> : vector<16xf32>
    %491 = vector.multi_reduction <add>, %490, %cst_124 [1] : vector<16x16xf32> to vector<16xf32>
    %492 = vector.shape_cast %491 : vector<16xf32> to vector<16x1xf32>
    %493 = arith.mulf %478, %440 : vector<16x128xf32>
    %494 = vector.extract_strided_slice %120 {offsets = [6, 0], sizes = [1, 128], strides = [1, 1]} : vector<16x128xf32> to vector<1x128xf32>
    %495 = vector.broadcast %494 : vector<1x128xf32> to vector<16x128xf32>
    %496 = vector.broadcast %485 : vector<16x1xf32> to vector<16x128xf32>
    %497 = arith.mulf %495, %496 : vector<16x128xf32>
    %498 = arith.addf %493, %497 : vector<16x128xf32>
    %499 = vector.broadcast %492 : vector<16x1xf32> to vector<16x128xf32>
    %500 = arith.mulf %498, %499 : vector<16x128xf32>
    %cst_125 = arith.constant dense<0.000000e+00> : vector<128xf32>
    %501 = vector.multi_reduction <add>, %500, %cst_125 [0] : vector<16x128xf32> to vector<128xf32>
    %502 = vector.shape_cast %501 : vector<128xf32> to vector<1x128xf32>
    %c6_126 = arith.constant 6 : index
    %c0_127 = arith.constant 0 : index
    %503 = vector.load %arg19[%c6_126, %c0_127] : memref<16x128xf32, #tpu.memory_space<vmem>>, vector<1x128xf32>
    tpu.vector_store %arg19[%c6_126, %c0_127], %502 {strides = array<i32>} : memref<16x128xf32, #tpu.memory_space<vmem>>, vector<1x128xf32>,
    %504 = vector.extract_strided_slice %117 {offsets = [14, 0], sizes = [1, 128], strides = [1, 1]} : vector<16x128xf32> to vector<1x128xf32>
    %505 = vector.broadcast %504 : vector<1x128xf32> to vector<16x128xf32>
    %506 = arith.mulf %505, %121 : vector<16x128xf32>
    %507 = math.exp %506 : vector<16x128xf32>
    %508 = vector.extract_strided_slice %118 {offsets = [14, 0], sizes = [1, 16], strides = [1, 1]} : vector<16x16xf32> to vector<1x16xf32>
    %cst_128 = arith.constant 0.000000e+00 : f32
    %509 = vector.shape_cast %508 : vector<1x16xf32> to vector<1x16xf32>
    %510 = vector.broadcast %509 : vector<1x16xf32> to vector<16x16xf32>
    %511 = vector.broadcast %cst_128 : f32 to vector<16x16xf32>
    %512 = arith.select %124, %510, %511 : vector<16x16xi1>, vector<16x16xf32>
    %cst_129 = arith.constant dense<0.000000e+00> : vector<16xf32>
    %513 = vector.multi_reduction <add>, %512, %cst_129 [1] : vector<16x16xf32> to vector<16xf32>
    %514 = vector.shape_cast %513 : vector<16xf32> to vector<16x1xf32>
    %515 = vector.extract_strided_slice %119 {offsets = [14, 0], sizes = [1, 16], strides = [1, 1]} : vector<16x16xf32> to vector<1x16xf32>
    %cst_130 = arith.constant 0.000000e+00 : f32
    %516 = vector.shape_cast %515 : vector<1x16xf32> to vector<1x16xf32>
    %517 = vector.broadcast %516 : vector<1x16xf32> to vector<16x16xf32>
    %518 = vector.broadcast %cst_130 : f32 to vector<16x16xf32>
    %519 = arith.select %124, %517, %518 : vector<16x16xi1>, vector<16x16xf32>
    %cst_131 = arith.constant dense<0.000000e+00> : vector<16xf32>
    %520 = vector.multi_reduction <add>, %519, %cst_131 [1] : vector<16x16xf32> to vector<16xf32>
    %521 = vector.shape_cast %520 : vector<16xf32> to vector<16x1xf32>
    %522 = arith.mulf %507, %469 : vector<16x128xf32>
    %523 = vector.extract_strided_slice %120 {offsets = [14, 0], sizes = [1, 128], strides = [1, 1]} : vector<16x128xf32> to vector<1x128xf32>
    %524 = vector.broadcast %523 : vector<1x128xf32> to vector<16x128xf32>
    %525 = vector.broadcast %514 : vector<16x1xf32> to vector<16x128xf32>
    %526 = arith.mulf %524, %525 : vector<16x128xf32>
    %527 = arith.addf %522, %526 : vector<16x128xf32>
    %528 = vector.broadcast %521 : vector<16x1xf32> to vector<16x128xf32>
    %529 = arith.mulf %527, %528 : vector<16x128xf32>
    %cst_132 = arith.constant dense<0.000000e+00> : vector<128xf32>
    %530 = vector.multi_reduction <add>, %529, %cst_132 [0] : vector<16x128xf32> to vector<128xf32>
    %531 = vector.shape_cast %530 : vector<128xf32> to vector<1x128xf32>
    %c14 = arith.constant 14 : index
    %c0_133 = arith.constant 0 : index
    %532 = vector.load %arg19[%c14, %c0_133] : memref<16x128xf32, #tpu.memory_space<vmem>>, vector<1x128xf32>
    tpu.vector_store %arg19[%c14, %c0_133], %531 {strides = array<i32>} : memref<16x128xf32, #tpu.memory_space<vmem>>, vector<1x128xf32>,
    %533 = vector.extract_strided_slice %117 {offsets = [7, 0], sizes = [1, 128], strides = [1, 1]} : vector<16x128xf32> to vector<1x128xf32>
    %534 = vector.broadcast %533 : vector<1x128xf32> to vector<16x128xf32>
    %535 = arith.mulf %534, %121 : vector<16x128xf32>
    %536 = math.exp %535 : vector<16x128xf32>
    %537 = vector.extract_strided_slice %118 {offsets = [7, 0], sizes = [1, 16], strides = [1, 1]} : vector<16x16xf32> to vector<1x16xf32>
    %cst_134 = arith.constant 0.000000e+00 : f32
    %538 = vector.shape_cast %537 : vector<1x16xf32> to vector<1x16xf32>
    %539 = vector.broadcast %538 : vector<1x16xf32> to vector<16x16xf32>
    %540 = vector.broadcast %cst_134 : f32 to vector<16x16xf32>
    %541 = arith.select %124, %539, %540 : vector<16x16xi1>, vector<16x16xf32>
    %cst_135 = arith.constant dense<0.000000e+00> : vector<16xf32>
    %542 = vector.multi_reduction <add>, %541, %cst_135 [1] : vector<16x16xf32> to vector<16xf32>
    %543 = vector.shape_cast %542 : vector<16xf32> to vector<16x1xf32>
    %544 = vector.extract_strided_slice %119 {offsets = [7, 0], sizes = [1, 16], strides = [1, 1]} : vector<16x16xf32> to vector<1x16xf32>
    %cst_136 = arith.constant 0.000000e+00 : f32
    %545 = vector.shape_cast %544 : vector<1x16xf32> to vector<1x16xf32>
    %546 = vector.broadcast %545 : vector<1x16xf32> to vector<16x16xf32>
    %547 = vector.broadcast %cst_136 : f32 to vector<16x16xf32>
    %548 = arith.select %124, %546, %547 : vector<16x16xi1>, vector<16x16xf32>
    %cst_137 = arith.constant dense<0.000000e+00> : vector<16xf32>
    %549 = vector.multi_reduction <add>, %548, %cst_137 [1] : vector<16x16xf32> to vector<16xf32>
    %550 = vector.shape_cast %549 : vector<16xf32> to vector<16x1xf32>
    %551 = arith.mulf %536, %498 : vector<16x128xf32>
    %552 = vector.extract_strided_slice %120 {offsets = [7, 0], sizes = [1, 128], strides = [1, 1]} : vector<16x128xf32> to vector<1x128xf32>
    %553 = vector.broadcast %552 : vector<1x128xf32> to vector<16x128xf32>
    %554 = vector.broadcast %543 : vector<16x1xf32> to vector<16x128xf32>
    %555 = arith.mulf %553, %554 : vector<16x128xf32>
    %556 = arith.addf %551, %555 : vector<16x128xf32>
    %557 = vector.broadcast %550 : vector<16x1xf32> to vector<16x128xf32>
    %558 = arith.mulf %556, %557 : vector<16x128xf32>
    %cst_138 = arith.constant dense<0.000000e+00> : vector<128xf32>
    %559 = vector.multi_reduction <add>, %558, %cst_138 [0] : vector<16x128xf32> to vector<128xf32>
    %560 = vector.shape_cast %559 : vector<128xf32> to vector<1x128xf32>
    %c7_139 = arith.constant 7 : index
    %c0_140 = arith.constant 0 : index
    %561 = vector.load %arg19[%c7_139, %c0_140] : memref<16x128xf32, #tpu.memory_space<vmem>>, vector<1x128xf32>
    tpu.vector_store %arg19[%c7_139, %c0_140], %560 {strides = array<i32>} : memref<16x128xf32, #tpu.memory_space<vmem>>, vector<1x128xf32>,
    %562 = vector.extract_strided_slice %117 {offsets = [15, 0], sizes = [1, 128], strides = [1, 1]} : vector<16x128xf32> to vector<1x128xf32>
    %563 = vector.broadcast %562 : vector<1x128xf32> to vector<16x128xf32>
    %564 = arith.mulf %563, %121 : vector<16x128xf32>
    %565 = math.exp %564 : vector<16x128xf32>
    %566 = vector.extract_strided_slice %118 {offsets = [15, 0], sizes = [1, 16], strides = [1, 1]} : vector<16x16xf32> to vector<1x16xf32>
    %cst_141 = arith.constant 0.000000e+00 : f32
    %567 = vector.shape_cast %566 : vector<1x16xf32> to vector<1x16xf32>
    %568 = vector.broadcast %567 : vector<1x16xf32> to vector<16x16xf32>
    %569 = vector.broadcast %cst_141 : f32 to vector<16x16xf32>
    %570 = arith.select %124, %568, %569 : vector<16x16xi1>, vector<16x16xf32>
    %cst_142 = arith.constant dense<0.000000e+00> : vector<16xf32>
    %571 = vector.multi_reduction <add>, %570, %cst_142 [1] : vector<16x16xf32> to vector<16xf32>
    %572 = vector.shape_cast %571 : vector<16xf32> to vector<16x1xf32>
    %573 = vector.extract_strided_slice %119 {offsets = [15, 0], sizes = [1, 16], strides = [1, 1]} : vector<16x16xf32> to vector<1x16xf32>
    %cst_143 = arith.constant 0.000000e+00 : f32
    %574 = vector.shape_cast %573 : vector<1x16xf32> to vector<1x16xf32>
    %575 = vector.broadcast %574 : vector<1x16xf32> to vector<16x16xf32>
    %576 = vector.broadcast %cst_143 : f32 to vector<16x16xf32>
    %577 = arith.select %124, %575, %576 : vector<16x16xi1>, vector<16x16xf32>
    %cst_144 = arith.constant dense<0.000000e+00> : vector<16xf32>
    %578 = vector.multi_reduction <add>, %577, %cst_144 [1] : vector<16x16xf32> to vector<16xf32>
    %579 = vector.shape_cast %578 : vector<16xf32> to vector<16x1xf32>
    %580 = arith.mulf %565, %527 : vector<16x128xf32>
    %581 = vector.extract_strided_slice %120 {offsets = [15, 0], sizes = [1, 128], strides = [1, 1]} : vector<16x128xf32> to vector<1x128xf32>
    %582 = vector.broadcast %581 : vector<1x128xf32> to vector<16x128xf32>
    %583 = vector.broadcast %572 : vector<16x1xf32> to vector<16x128xf32>
    %584 = arith.mulf %582, %583 : vector<16x128xf32>
    %585 = arith.addf %580, %584 : vector<16x128xf32>
    %586 = vector.broadcast %579 : vector<16x1xf32> to vector<16x128xf32>
    %587 = arith.mulf %585, %586 : vector<16x128xf32>
    %cst_145 = arith.constant dense<0.000000e+00> : vector<128xf32>
    %588 = vector.multi_reduction <add>, %587, %cst_145 [0] : vector<16x128xf32> to vector<128xf32>
    %589 = vector.shape_cast %588 : vector<128xf32> to vector<1x128xf32>
    %c15 = arith.constant 15 : index
    %c0_146 = arith.constant 0 : index
    %590 = vector.load %arg19[%c15, %c0_146] : memref<16x128xf32, #tpu.memory_space<vmem>>, vector<1x128xf32>
    tpu.vector_store %arg19[%c15, %c0_146], %589 {strides = array<i32>} : memref<16x128xf32, #tpu.memory_space<vmem>>, vector<1x128xf32>,
    %c0_147 = arith.constant 0 : index
    %c0_148 = arith.constant 0 : index
    %591 = vector.load %arg19[%c0_147, %c0_148] : memref<16x128xf32, #tpu.memory_space<vmem>>, vector<16x128xf32>
    %c0_149 = arith.constant 0 : index
    %c0_150 = arith.constant 0 : index
    %592 = vector.load %arg7[%c0_149, %c0_150] : memref<1x128xf32, #tpu.memory_space<vmem>>, vector<1x128xf32>
    %593 = vector.broadcast %592 : vector<1x128xf32> to vector<16x128xf32>
    %594 = arith.mulf %593, %102 : vector<16x128xf32>
    %595 = arith.addf %591, %594 : vector<16x128xf32>
    %596 = arith.negf %4 : vector<16x128xf32>
    %597 = math.exp %596 : vector<16x128xf32>
    %cst_151 = arith.constant 1.000000e+00 : f32
    %598 = vector.broadcast %cst_151 : f32 to vector<16x128xf32>
    %599 = arith.addf %598, %597 : vector<16x128xf32>
    %600 = arith.divf %598, %599 : vector<16x128xf32>
    %601 = arith.mulf %4, %600 : vector<16x128xf32>
    %602 = arith.mulf %595, %601 : vector<16x128xf32>
    %c0_152 = arith.constant 0 : index
    %c0_153 = arith.constant 0 : index
    %603 = vector.load %arg8[%c0_152, %c0_153] : memref<128x128xf32, #tpu.memory_space<vmem>>, vector<128x128xf32>
    %cst_154 = arith.constant dense<0.000000e+00> : vector<16x128xf32>
    %604 = tpu.matmul %602, %603, %cst_154 {dimension_numbers = #tpu.dot_dimension_numbers<[1], [0], [0], [1], [0, 0, 1, 1], [], []>} : vector<16x128xf32>, vector<128x128xf32>, vector<16x128xf32> -> vector<16x128xf32>
    %cst_155 = arith.constant dense<0.000000e+00> : vector<128xf32>
    %605 = vector.multi_reduction <add>, %604, %cst_155 [0] : vector<16x128xf32> to vector<128xf32>
    %606 = vector.shape_cast %605 : vector<128xf32> to vector<1x128xf32>
    %cst_156 = arith.constant 1.600000e+01 : f32
    %607 = vector.broadcast %cst_156 : f32 to vector<1x128xf32>
    %608 = arith.divf %606, %607 : vector<1x128xf32>
    %609 = vector.broadcast %608 : vector<1x128xf32> to vector<16x128xf32>
    %610 = arith.subf %604, %609 : vector<16x128xf32>
    %611 = arith.mulf %610, %610 : vector<16x128xf32>
    %cst_157 = arith.constant dense<0.000000e+00> : vector<128xf32>
    %612 = vector.multi_reduction <add>, %611, %cst_157 [0] : vector<16x128xf32> to vector<128xf32>
    %613 = vector.shape_cast %612 : vector<128xf32> to vector<1x128xf32>
    %cst_158 = arith.constant 1.600000e+01 : f32
    %614 = vector.broadcast %cst_158 : f32 to vector<1x128xf32>
    %615 = arith.divf %613, %614 : vector<1x128xf32>
    %616 = vector.broadcast %608 : vector<1x128xf32> to vector<16x128xf32>
    %617 = arith.subf %604, %616 : vector<16x128xf32>
    %cst_159 = arith.constant 9.99999974E-6 : f32
    %618 = vector.broadcast %cst_159 : f32 to vector<1x128xf32>
    %619 = arith.addf %615, %618 : vector<1x128xf32>
    %620 = math.rsqrt %619 : vector<1x128xf32>
    %621 = vector.broadcast %620 : vector<1x128xf32> to vector<16x128xf32>
    %622 = arith.mulf %617, %621 : vector<16x128xf32>
    %c0_160 = arith.constant 0 : index
    %c0_161 = arith.constant 0 : index
    %623 = vector.load %arg9[%c0_160, %c0_161] : memref<1x128xf32, #tpu.memory_space<vmem>>, vector<1x128xf32>
    %624 = vector.broadcast %623 : vector<1x128xf32> to vector<16x128xf32>
    %625 = arith.mulf %622, %624 : vector<16x128xf32>
    %c0_162 = arith.constant 0 : index
    %c0_163 = arith.constant 0 : index
    %626 = vector.load %arg10[%c0_162, %c0_163] : memref<1x128xf32, #tpu.memory_space<vmem>>, vector<1x128xf32>
    %627 = vector.broadcast %626 : vector<1x128xf32> to vector<16x128xf32>
    %628 = arith.addf %625, %627 : vector<16x128xf32>
    %c0_164 = arith.constant 0 : index
    %c0_165 = arith.constant 0 : index
    %629 = vector.load %arg11[%c0_164, %c0_165] : memref<128x128xf32, #tpu.memory_space<vmem>>, vector<128x128xf32>
    %cst_166 = arith.constant dense<0.000000e+00> : vector<16x128xf32>
    %630 = tpu.matmul %628, %629, %cst_166 {dimension_numbers = #tpu.dot_dimension_numbers<[1], [0], [0], [1], [0, 0, 1, 1], [], []>} : vector<16x128xf32>, vector<128x128xf32>, vector<16x128xf32> -> vector<16x128xf32>
    %c0_167 = arith.constant 0 : index
    %c0_168 = arith.constant 0 : index
    %631 = vector.load %arg12[%c0_167, %c0_168] : memref<1x128xf32, #tpu.memory_space<vmem>>, vector<1x128xf32>
    %632 = vector.broadcast %631 : vector<1x128xf32> to vector<16x128xf32>
    %633 = arith.addf %630, %632 : vector<16x128xf32>
    %cst_169 = arith.constant 0.000000e+00 : f32
    %634 = vector.broadcast %cst_169 : f32 to vector<16x128xf32>
    %635 = arith.maximumf %633, %634 : vector<16x128xf32>
    %c0_170 = arith.constant 0 : index
    %c0_171 = arith.constant 0 : index
    %636 = vector.load %arg13[%c0_170, %c0_171] : memref<128x128xf32, #tpu.memory_space<vmem>>, vector<128x128xf32>
    %cst_172 = arith.constant dense<0.000000e+00> : vector<16x128xf32>
    %637 = tpu.matmul %635, %636, %cst_172 {dimension_numbers = #tpu.dot_dimension_numbers<[1], [0], [0], [1], [0, 0, 1, 1], [], []>} : vector<16x128xf32>, vector<128x128xf32>, vector<16x128xf32> -> vector<16x128xf32>
    %c0_173 = arith.constant 0 : index
    %c0_174 = arith.constant 0 : index
    %638 = vector.load %arg14[%c0_173, %c0_174] : memref<1x128xf32, #tpu.memory_space<vmem>>, vector<1x128xf32>
    %639 = vector.broadcast %638 : vector<1x128xf32> to vector<16x128xf32>
    %640 = arith.addf %637, %639 : vector<16x128xf32>
    %641 = arith.addf %628, %640 : vector<16x128xf32>
    %cst_175 = arith.constant dense<0.000000e+00> : vector<128xf32>
    %642 = vector.multi_reduction <add>, %641, %cst_175 [0] : vector<16x128xf32> to vector<128xf32>
    %643 = vector.shape_cast %642 : vector<128xf32> to vector<1x128xf32>
    %cst_176 = arith.constant 1.600000e+01 : f32
    %644 = vector.broadcast %cst_176 : f32 to vector<1x128xf32>
    %645 = arith.divf %643, %644 : vector<1x128xf32>
    %646 = vector.broadcast %645 : vector<1x128xf32> to vector<16x128xf32>
    %647 = arith.subf %641, %646 : vector<16x128xf32>
    %648 = arith.mulf %647, %647 : vector<16x128xf32>
    %cst_177 = arith.constant dense<0.000000e+00> : vector<128xf32>
    %649 = vector.multi_reduction <add>, %648, %cst_177 [0] : vector<16x128xf32> to vector<128xf32>
    %650 = vector.shape_cast %649 : vector<128xf32> to vector<1x128xf32>
    %cst_178 = arith.constant 1.600000e+01 : f32
    %651 = vector.broadcast %cst_178 : f32 to vector<1x128xf32>
    %652 = arith.divf %650, %651 : vector<1x128xf32>
    %653 = vector.broadcast %645 : vector<1x128xf32> to vector<16x128xf32>
    %654 = arith.subf %641, %653 : vector<16x128xf32>
    %cst_179 = arith.constant 9.99999974E-6 : f32
    %655 = vector.broadcast %cst_179 : f32 to vector<1x128xf32>
    %656 = arith.addf %652, %655 : vector<1x128xf32>
    %657 = math.rsqrt %656 : vector<1x128xf32>
    %658 = vector.broadcast %657 : vector<1x128xf32> to vector<16x128xf32>
    %659 = arith.mulf %654, %658 : vector<16x128xf32>
    %c0_180 = arith.constant 0 : index
    %c0_181 = arith.constant 0 : index
    %660 = vector.load %arg15[%c0_180, %c0_181] : memref<1x128xf32, #tpu.memory_space<vmem>>, vector<1x128xf32>
    %661 = vector.broadcast %660 : vector<1x128xf32> to vector<16x128xf32>
    %662 = arith.mulf %659, %661 : vector<16x128xf32>
    %c0_182 = arith.constant 0 : index
    %c0_183 = arith.constant 0 : index
    %663 = vector.load %arg16[%c0_182, %c0_183] : memref<1x128xf32, #tpu.memory_space<vmem>>, vector<1x128xf32>
    %664 = vector.broadcast %663 : vector<1x128xf32> to vector<16x128xf32>
    %665 = arith.addf %662, %664 : vector<16x128xf32>
    %c0_184 = arith.constant 0 : index
    %c0_185 = arith.constant 0 : index
    %666 = vector.load %arg17[%c0_184, %c0_185] : memref<16x128xf32, #tpu.memory_space<vmem>>, vector<16x128xf32>
    tpu.vector_store %arg17[%c0_184, %c0_185], %665 {strides = array<i32>} : memref<16x128xf32, #tpu.memory_space<vmem>>, vector<16x128xf32>,
    return
  }
}

</mosaic_0001>

<llo_original>
// kernel: tpu_custom_call.1
$region0: #{tpu_custom_call.1}
  #allocation0 [shape = 'u32[]', space=smem, size = 0x4, offset = 0x4, fixed_abs, tag = 'smem constant byte address 0x4 - core index']
  #allocation1 [shape = 'u32[144,128]{1,0:T(1,128)}', space=vmem, size = 0x12000, scoped, tag = 'internal scratch']
  #allocation2 [shape = 'f32[24,128]{1,0:T(8,128)}', space=vmem, size = 0x3000, scoped, tag = 'scratch operand']
  #allocation3 [shape = 'f32[16,128]{1,0:T(8,128)}', space=vmem, size = 0x2000, scoped, tag = 'scratch operand']
  %s0 = inlined_call_operand.hbm [shape: f32[16,128], index: 0, kind: input, shape index: {}]
  %s1 = inlined_call_operand.hbm [shape: f32[128,256], index: 1, kind: input, shape index: {}]
  %s2 = inlined_call_operand.vmem [shape: f32[4,128], index: 2, kind: input, shape index: {}]
  %s3 = inlined_call_operand.vmem [shape: f32[1,128], index: 3, kind: input, shape index: {}]
  %s4 = inlined_call_operand.hbm [shape: f32[128,384], index: 4, kind: input, shape index: {}]
  %s5 = inlined_call_operand.vmem [shape: f32[1,128], index: 5, kind: input, shape index: {}]
  %s6 = inlined_call_operand.vmem [shape: f32[16,128], index: 6, kind: input, shape index: {}]
  %s7 = inlined_call_operand.vmem [shape: f32[1,128], index: 7, kind: input, shape index: {}]
  %s8 = inlined_call_operand.hbm [shape: f32[128,128], index: 8, kind: input, shape index: {}]
  %s9 = inlined_call_operand.vmem [shape: f32[1,128], index: 9, kind: input, shape index: {}]
  %s10 = inlined_call_operand.vmem [shape: f32[1,128], index: 10, kind: input, shape index: {}]
  %s11 = inlined_call_operand.hbm [shape: f32[128,128], index: 11, kind: input, shape index: {}]
  %s12 = inlined_call_operand.vmem [shape: f32[1,128], index: 12, kind: input, shape index: {}]
  %s13 = inlined_call_operand.hbm [shape: f32[128,128], index: 13, kind: input, shape index: {}]
  %s14 = inlined_call_operand.vmem [shape: f32[1,128], index: 14, kind: input, shape index: {}]
  %s15 = inlined_call_operand.vmem [shape: f32[1,128], index: 15, kind: input, shape index: {}]
  %s16 = inlined_call_operand.vmem [shape: f32[1,128], index: 16, kind: input, shape index: {}]
  %s17 = inlined_call_operand.hbm [shape: f32[16,128], index: 17, kind: output, shape index: {}]
  %s18 = sld [smem:[#allocation0]]
  $region102: #{tpu_custom_call.1} parent=0
    _
  %s20 = ssub.s32 1, %s18
  %s21 = scalar_select 0, %s20, %s18
  $region1: #{tpu_custom_call.1} parent=0
    #allocation4 [shape = 'u8[8192]{0}', space=vmem, size = 0x2000, scoped, tag = 'input window, operand 0, single buffered']
    #allocation5 [shape = 's32[1]{0}', space=sflag, size = 0x4, scoped, tag = 'scoped memory for tpu_custom_call.1']
    #allocation6 [shape = 's32[1]{0}', space=sflag, size = 0x4, scoped, tag = 'scoped memory for tpu_custom_call.1']
    #allocation7 [shape = 'u8[131072]{0}', space=vmem, size = 0x20000, scoped, tag = 'input window, operand 1, single buffered']
    #allocation8 [shape = 's32[1]{0}', space=sflag, size = 0x4, scoped, tag = 'scoped memory for tpu_custom_call.1']
    #allocation9 [shape = 'u8[196608]{0}', space=vmem, size = 0x30000, scoped, tag = 'input window, operand 4, single buffered']
    #allocation10 [shape = 'u8[65536]{0}', space=vmem, size = 0x10000, scoped, tag = 'input window, operand 8, single buffered']
    #allocation11 [shape = 's32[1]{0}', space=sflag, size = 0x4, scoped, tag = 'scoped memory for tpu_custom_call.1']
    #allocation12 [shape = 'u8[65536]{0}', space=vmem, size = 0x10000, scoped, tag = 'input window, operand 11, single buffered']
    #allocation13 [shape = 'u8[65536]{0}', space=vmem, size = 0x10000, scoped, tag = 'input window, operand 13, single buffered']
    #allocation14 [shape = 's32[1]{0}', space=sflag, size = 0x4, scoped, tag = 'scoped memory for tpu_custom_call.1']
    #allocation15 [shape = 'u8[8192]{0}', space=vmem, size = 0x2000, scoped, tag = 'output window, operand 0, single buffered']
    %22 = vsyncpa [#allocation5], 0
    %23 = vsyncpa [#allocation8], 0
    %24 = vsyncpa [#allocation11], 0
    %25 = vsyncpa [#allocation14], 0
    %26 = vsyncpa [#allocation6], 0
    // Predicated region
    $region2: #{tpu_custom_call.1} parent=1 // pred_check
      _
    $region3: #{tpu_custom_call.1} parent=1 // pred_check_branch
      %28 = sbr.rel (0) target = $region5
    $region4: #{tpu_custom_call.1} parent=1 // pred_region
      %s30 = ssub.s32 256, 256
      %31 = vsyncadd [#allocation5], %s30
      %s32 = sshll.u32 [#allocation4], 4
      %s33 = int_to_ptr.vmem [resolvable:$true] %s32
      %38 = dma.hbm_to_vmem [thread:$0]  %s0, 256, %s33, [#allocation5], 128, 128, 8
    $region5: #{tpu_custom_call.1} parent=1 // pred_fallthru
      _
    // Predicated region
    $region6: #{tpu_custom_call.1} parent=1 // pred_check
      _
    $region7: #{tpu_custom_call.1} parent=1 // pred_check_branch
      %40 = sbr.rel (0) target = $region9
    $region8: #{tpu_custom_call.1} parent=1 // pred_region
      %s42 = ssub.s32 4096, 4096
      %43 = vsyncadd [#allocation8], %s42
      %s44 = sshll.u32 [#allocation7], 4
      %s45 = int_to_ptr.vmem [resolvable:$true] %s44
      %50 = dma.hbm_to_vmem [thread:$0]  %s1, 4096, %s45, [#allocation8], 256, 256, 16
    $region9: #{tpu_custom_call.1} parent=1 // pred_fallthru
      _
    // Predicated region
    $region10: #{tpu_custom_call.1} parent=1 // pred_check
      _
    $region11: #{tpu_custom_call.1} parent=1 // pred_check_branch
      %52 = sbr.rel (0) target = $region13
    $region12: #{tpu_custom_call.1} parent=1 // pred_region
      _
    $region13: #{tpu_custom_call.1} parent=1 // pred_fallthru
      _
    // Predicated region
    $region14: #{tpu_custom_call.1} parent=1 // pred_check
      _
    $region15: #{tpu_custom_call.1} parent=1 // pred_check_branch
      %54 = sbr.rel (0) target = $region17
    $region16: #{tpu_custom_call.1} parent=1 // pred_region
      _
    $region17: #{tpu_custom_call.1} parent=1 // pred_fallthru
      _
    // Predicated region
    $region18: #{tpu_custom_call.1} parent=1 // pred_check
      _
    $region19: #{tpu_custom_call.1} parent=1 // pred_check_branch
      %56 = sbr.rel (0) target = $region21
    $region20: #{tpu_custom_call.1} parent=1 // pred_region
      %s58 = ssub.s32 6144, 6144
      %59 = vsyncadd [#allocation8], %s58
      %s60 = sshll.u32 [#allocation9], 4
      %s61 = int_to_ptr.vmem [resolvable:$true] %s60
      %66 = dma.hbm_to_vmem [thread:$0]  %s4, 6144, %s61, [#allocation8], 384, 384, 24
    $region21: #{tpu_custom_call.1} parent=1 // pred_fallthru
      _
    // Predicated region
    $region22: #{tpu_custom_call.1} parent=1 // pred_check
      _
    $region23: #{tpu_custom_call.1} parent=1 // pred_check_branch
      %68 = sbr.rel (0) target = $region25
    $region24: #{tpu_custom_call.1} parent=1 // pred_region
      _
    $region25: #{tpu_custom_call.1} parent=1 // pred_fallthru
      _
    // Predicated region
    $region26: #{tpu_custom_call.1} parent=1 // pred_check
      _
    $region27: #{tpu_custom_call.1} parent=1 // pred_check_branch
      %70 = sbr.rel (0) target = $region29
    $region28: #{tpu_custom_call.1} parent=1 // pred_region
      _
    $region29: #{tpu_custom_call.1} parent=1 // pred_fallthru
      _
    // Predicated region
    $region30: #{tpu_custom_call.1} parent=1 // pred_check
      _
    $region31: #{tpu_custom_call.1} parent=1 // pred_check_branch
      %72 = sbr.rel (0) target = $region33
    $region32: #{tpu_custom_call.1} parent=1 // pred_region
      _
    $region33: #{tpu_custom_call.1} parent=1 // pred_fallthru
      _
    // Predicated region
    $region34: #{tpu_custom_call.1} parent=1 // pred_check
      _
    $region35: #{tpu_custom_call.1} parent=1 // pred_check_branch
      %74 = sbr.rel (0) target = $region37
    $region36: #{tpu_custom_call.1} parent=1 // pred_region
      %s76 = ssub.s32 2048, 2048
      %77 = vsyncadd [#allocation11], %s76
      %s78 = sshll.u32 [#allocation10], 4
      %s79 = int_to_ptr.vmem [resolvable:$true] %s78
      %84 = dma.hbm_to_vmem [thread:$0]  %s8, 2048, %s79, [#allocation11], 128, 128, 8
    $region37: #{tpu_custom_call.1} parent=1 // pred_fallthru
      _
    // Predicated region
    $region38: #{tpu_custom_call.1} parent=1 // pred_check
      _
    $region39: #{tpu_custom_call.1} parent=1 // pred_check_branch
      %86 = sbr.rel (0) target = $region41
    $region40: #{tpu_custom_call.1} parent=1 // pred_region
      _
    $region41: #{tpu_custom_call.1} parent=1 // pred_fallthru
      _
    // Predicated region
    $region42: #{tpu_custom_call.1} parent=1 // pred_check
      _
    $region43: #{tpu_custom_call.1} parent=1 // pred_check_branch
      %88 = sbr.rel (0) target = $region45
    $region44: #{tpu_custom_call.1} parent=1 // pred_region
      _
    $region45: #{tpu_custom_call.1} parent=1 // pred_fallthru
      _
    // Predicated region
    $region46: #{tpu_custom_call.1} parent=1 // pred_check
      _
    $region47: #{tpu_custom_call.1} parent=1 // pred_check_branch
      %90 = sbr.rel (0) target = $region49
    $region48: #{tpu_custom_call.1} parent=1 // pred_region
      %s92 = ssub.s32 2048, 2048
      %93 = vsyncadd [#allocation11], %s92
      %s94 = sshll.u32 [#allocation12], 4
      %s95 = int_to_ptr.vmem [resolvable:$true] %s94
      %100 = dma.hbm_to_vmem [thread:$0]  %s11, 2048, %s95, [#allocation11], 128, 128, 8
    $region49: #{tpu_custom_call.1} parent=1 // pred_fallthru
      _
    // Predicated region
    $region50: #{tpu_custom_call.1} parent=1 // pred_check
      _
    $region51: #{tpu_custom_call.1} parent=1 // pred_check_branch
      %102 = sbr.rel (0) target = $region53
    $region52: #{tpu_custom_call.1} parent=1 // pred_region
      _
    $region53: #{tpu_custom_call.1} parent=1 // pred_fallthru
      _
    // Predicated region
    $region54: #{tpu_custom_call.1} parent=1 // pred_check
      _
    $region55: #{tpu_custom_call.1} parent=1 // pred_check_branch
      %104 = sbr.rel (0) target = $region57
    $region56: #{tpu_custom_call.1} parent=1 // pred_region
      %s106 = ssub.s32 2048, 2048
      %107 = vsyncadd [#allocation14], %s106
      %s108 = sshll.u32 [#allocation13], 4
      %s109 = int_to_ptr.vmem [resolvable:$true] %s108
      %114 = dma.hbm_to_vmem [thread:$0]  %s13, 2048, %s109, [#allocation14], 128, 128, 8
    $region57: #{tpu_custom_call.1} parent=1 // pred_fallthru
      _
    // Predicated region
    $region58: #{tpu_custom_call.1} parent=1 // pred_check
      _
    $region59: #{tpu_custom_call.1} parent=1 // pred_check_branch
      %116 = sbr.rel (0) target = $region61
    $region60: #{tpu_custom_call.1} parent=1 // pred_region
      _
    $region61: #{tpu_custom_call.1} parent=1 // pred_fallthru
      _
    // Predicated region
    $region62: #{tpu_custom_call.1} parent=1 // pred_check
      _
    $region63: #{tpu_custom_call.1} parent=1 // pred_check_branch
      %118 = sbr.rel (0) target = $region65
    $region64: #{tpu_custom_call.1} parent=1 // pred_region
      _
    $region65: #{tpu_custom_call.1} parent=1 // pred_fallthru
      _
    // Predicated region
    $region66: #{tpu_custom_call.1} parent=1 // pred_check
      _
    $region67: #{tpu_custom_call.1} parent=1 // pred_check_branch
      %120 = sbr.rel (0) target = $region69
    $region68: #{tpu_custom_call.1} parent=1 // pred_region
      _
    $region69: #{tpu_custom_call.1} parent=1 // pred_fallthru
      _
    // Predicated region
    $region70: #{tpu_custom_call.1} parent=1 // pred_check
      _
    $region71: #{tpu_custom_call.1} parent=1 // pred_check_branch
      %122 = sbr.rel (0) target = $region73
    $region72: #{tpu_custom_call.1} parent=1 // pred_region
      %123 = dma.done [#allocation5], 256
    $region73: #{tpu_custom_call.1} parent=1 // pred_fallthru
      _
    // Predicated region
    $region74: #{tpu_custom_call.1} parent=1 // pred_check
      _
    $region75: #{tpu_custom_call.1} parent=1 // pred_check_branch
      %125 = sbr.rel (0) target = $region77
    $region76: #{tpu_custom_call.1} parent=1 // pred_region
      %126 = dma.done [#allocation8], 4096
    $region77: #{tpu_custom_call.1} parent=1 // pred_fallthru
      _
    // Predicated region
    $region78: #{tpu_custom_call.1} parent=1 // pred_check
      _
    $region79: #{tpu_custom_call.1} parent=1 // pred_check_branch
      %128 = sbr.rel (0) target = $region81
    $region80: #{tpu_custom_call.1} parent=1 // pred_region
      %129 = dma.done [#allocation8], 6144
    $region81: #{tpu_custom_call.1} parent=1 // pred_fallthru
      _
    // Predicated region
    $region82: #{tpu_custom_call.1} parent=1 // pred_check
      _
    $region83: #{tpu_custom_call.1} parent=1 // pred_check_branch
      %131 = sbr.rel (0) target = $region85
    $region84: #{tpu_custom_call.1} parent=1 // pred_region
      %132 = dma.done [#allocation11], 2048
    $region85: #{tpu_custom_call.1} parent=1 // pred_fallthru
      _
    // Predicated region
    $region86: #{tpu_custom_call.1} parent=1 // pred_check
      _
    $region87: #{tpu_custom_call.1} parent=1 // pred_check_branch
      %134 = sbr.rel (0) target = $region89
    $region88: #{tpu_custom_call.1} parent=1 // pred_region
      %135 = dma.done [#allocation11], 2048
    $region89: #{tpu_custom_call.1} parent=1 // pred_fallthru
      _
    // Predicated region
    $region90: #{tpu_custom_call.1} parent=1 // pred_check
      _
    $region91: #{tpu_custom_call.1} parent=1 // pred_check_branch
      %137 = sbr.rel (0) target = $region93
    $region92: #{tpu_custom_call.1} parent=1 // pred_region
      %138 = dma.done [#allocation14], 2048
    $region93: #{tpu_custom_call.1} parent=1 // pred_fallthru
      _
    %v139 = vld [vmem:[#allocation4] sm:$0xff]
    %v140 = vld [vmem:[#allocation4 + $0x8] sm:$0xff]
    %v141 = vld [vmem:[#allocation7] sm:$0xff]
    %v142 = vld [vmem:[#allocation7 + $0x8] sm:$0xff]
    %v143 = vld [vmem:[#allocation7 + $0x10] sm:$0xff]
    %v144 = vld [vmem:[#allocation7 + $0x18] sm:$0xff]
    %v145 = vld [vmem:[#allocation7 + $0x20] sm:$0xff]
    %v146 = vld [vmem:[#allocation7 + $0x28] sm:$0xff]
    %v147 = vld [vmem:[#allocation7 + $0x30] sm:$0xff]
    %v148 = vld [vmem:[#allocation7 + $0x38] sm:$0xff]
    %v149 = vld [vmem:[#allocation7 + $0x40] sm:$0xff]
    %v150 = vld [vmem:[#allocation7 + $0x48] sm:$0xff]
    %v151 = vld [vmem:[#allocation7 + $0x50] sm:$0xff]
    %v152 = vld [vmem:[#allocation7 + $0x58] sm:$0xff]
    %v153 = vld [vmem:[#allocation7 + $0x60] sm:$0xff]
    %v154 = vld [vmem:[#allocation7 + $0x68] sm:$0xff]
    %v155 = vld [vmem:[#allocation7 + $0x70] sm:$0xff]
    %v156 = vld [vmem:[#allocation7 + $0x78] sm:$0xff]
    %v157 = vld [vmem:[#allocation7 + $0x80] sm:$0xff]
    %v158 = vld [vmem:[#allocation7 + $0x88] sm:$0xff]
    %v159 = vld [vmem:[#allocation7 + $0x90] sm:$0xff]
    %v160 = vld [vmem:[#allocation7 + $0x98] sm:$0xff]
    %v161 = vld [vmem:[#allocation7 + $0xa0] sm:$0xff]
    %v162 = vld [vmem:[#allocation7 + $0xa8] sm:$0xff]
    %v163 = vld [vmem:[#allocation7 + $0xb0] sm:$0xff]
    %v164 = vld [vmem:[#allocation7 + $0xb8] sm:$0xff]
    %v165 = vld [vmem:[#allocation7 + $0xc0] sm:$0xff]
    %v166 = vld [vmem:[#allocation7 + $0xc8] sm:$0xff]
    %v167 = vld [vmem:[#allocation7 + $0xd0] sm:$0xff]
    %v168 = vld [vmem:[#allocation7 + $0xd8] sm:$0xff]
    %v169 = vld [vmem:[#allocation7 + $0xe0] sm:$0xff]
    %v170 = vld [vmem:[#allocation7 + $0xe8] sm:$0xff]
    %v171 = vld [vmem:[#allocation7 + $0xf0] sm:$0xff]
    %v172 = vld [vmem:[#allocation7 + $0xf8] sm:$0xff]
    %173 = vmatprep.subr.mxu0 %v142
    %174 = vmatpush1.msra.mxu0 %v141
    %175 = vmatprep.subr.mxu0 %v144
    %176 = vmatpush1.msra.mxu0 %v143
    %177 = vmatprep.subr.mxu0 %v146
    %178 = vmatpush1.msra.mxu0 %v145
    %179 = vmatprep.subr.mxu0 %v148
    %180 = vmatpush1.msra.mxu0 %v147
    %181 = vmatprep.subr.mxu0 %v150
    %182 = vmatpush1.msra.mxu0 %v149
    %183 = vmatprep.subr.mxu0 %v152
    %184 = vmatpush1.msra.mxu0 %v151
    %185 = vmatprep.subr.mxu0 %v154
    %186 = vmatpush1.msra.mxu0 %v153
    %187 = vmatprep.subr.mxu0 %v156
    %188 = vmatpush1.msra.mxu0 %v155
    %189 = vmatprep.subr.mxu0 %v158
    %190 = vmatpush1.msra.mxu0 %v157
    %191 = vmatprep.subr.mxu0 %v160
    %192 = vmatpush1.msra.mxu0 %v159
    %193 = vmatprep.subr.mxu0 %v162
    %194 = vmatpush1.msra.mxu0 %v161
    %195 = vmatprep.subr.mxu0 %v164
    %196 = vmatpush1.msra.mxu0 %v163
    %197 = vmatprep.subr.mxu0 %v166
    %198 = vmatpush1.msra.mxu0 %v165
    %199 = vmatprep.subr.mxu0 %v168
    %200 = vmatpush1.msra.mxu0 %v167
    %201 = vmatprep.subr.mxu0 %v170
    %202 = vmatpush1.msra.mxu0 %v169
    %203 = vmatprep.subr.mxu0 %v172
    %204 = vmatpush1.msra.mxu0 %v171
    %205 = vmatprep.subr.mxu0 0.0
    %206 = vmatpush1.msra.mxu0 0.0
    %207 = vmatprep.subr.mxu0 0.0
    %208 = vmatpush1.msra.mxu0 0.0
    %209 = vmatprep.subr.mxu0 0.0
    %210 = vmatpush1.msra.mxu0 0.0
    %211 = vmatprep.subr.mxu0 0.0
    %212 = vmatpush1.msra.mxu0 0.0
    %213 = vmatprep.subr.mxu0 0.0
    %214 = vmatpush1.msra.mxu0 0.0
    %215 = vmatprep.subr.mxu0 0.0
    %216 = vmatpush1.msra.mxu0 0.0
    %217 = vmatprep.subr.mxu0 0.0
    %218 = vmatpush1.msra.mxu0 0.0
    %219 = vmatprep.subr.mxu0 0.0
    %220 = vmatpush1.msra.mxu0 0.0
    %221 = vmatprep.subr.mxu0 0.0
    %222 = vmatpush1.msra.mxu0 0.0
    %223 = vmatprep.subr.mxu0 0.0
    %224 = vmatpush1.msra.mxu0 0.0
    %225 = vmatprep.subr.mxu0 0.0
    %226 = vmatpush1.msra.mxu0 0.0
    %227 = vmatprep.subr.mxu0 0.0
    %228 = vmatpush1.msra.mxu0 0.0
    %229 = vmatprep.subr.mxu0 0.0
    %230 = vmatpush1.msra.mxu0 0.0
    %231 = vmatprep.subr.mxu0 0.0
    %232 = vmatpush1.msra.mxu0 0.0
    %233 = vmatprep.subr.mxu0 0.0
    %234 = vmatpush1.msra.mxu0 0.0
    %235 = vmatprep.subr.mxu0 0.0
    %236 = vmatpush1.msra.mxu0 0.0
    %237 = vmatprep.mubr.f32.mxu0 0.0
    %238 = vmatmul.mubr.f32.gmra.mrb[0].mxu0 %v139
    %v239 = vpop.f32.mrb[0].mxu0
    %v240 = vadd.f32 0.0, %v239
    %v241 = vpop.f32.mrb[0].mxu0
    %v242 = vadd.f32 0.0, %v241
    %243 = vmatprep.mubr.f32.mxu0 0.0
    %244 = vmatmul.mubr.f32.gmra.mrb[0].mxu0 %v140
    %v245 = vpop.f32.mrb[0].mxu0
    %v246 = vadd.f32 0.0, %v245
    %v247 = vpop.f32.mrb[0].mxu0
    %v248 = vadd.f32 0.0, %v247
    %249 = vdwg.mxu0
    %250 = vst [vmem:[#allocation2] sm:$0xff] 0.0
    %251 = vst [vmem:[#allocation2 + $0x8] sm:$0xff] %v240
    %252 = vst [vmem:[#allocation2 + $0x10] sm:$0xff] %v246
    %v253 = vld [vmem:[%s2] sm:$0xf]
    %v254 = vlaneseq
    %v255 = vshrl.u32 %v254, 7
    %v256 = vsub.s32 3, %v255
    %v257 = vrot.slane %v253, %v256
    %v258 = vmul.f32 %v240, %v257
    %v259 = vmul.f32 %v246, %v257
    %v260 = vld [vmem:[%s3] sm:$0x1]
    %v262 = vlaneseq
    %v263 = vshrl.u32 %v262, 7
    %v264 = vsub.s32 0, %v263
    %v265 = vrot.slane %v260, %v264
    %v267 = vadd.f32 %v258, %v265
    %v268 = vadd.f32 %v259, %v265
    %v269 = vlaneseq
    %v270 = vshrl.u32 %v269, 7
    %v271 = vadd.s32 %v270, 8
    %v272 = vld [vmem:[#allocation2 + $0x7] sm:$0xff]
    %v273 = vld [vmem:[#allocation2 + $0xf] sm:$0xff]
    %vm274 = vcmp.lt.s32.totalorder %v270, 0
    %v275 = vsub.s32 0, %v270
    %v276 = vsel %vm274, %v275, %v270
    %v277 = vshrl.u32 %v276, 3
    %v278 = vand.u32 %v276, 7
    %v279 = vsub.s32 0, %v278
    %v280 = vsel %vm274, %v279, %v278
    %vm281 = vcmp.lt.s32.totalorder %v271, 0
    %v282 = vsub.s32 0, %v271
    %v283 = vsel %vm281, %v282, %v271
    %v284 = vshrl.u32 %v283, 3
    %v285 = vand.u32 %v283, 7
    %v286 = vsub.s32 0, %v285
    %v287 = vsel %vm281, %v286, %v285
    %vm288 = vcmp.ne.s32.totalorder %v280, 0
    %vm289 = vcmp.ne.s32.totalorder %v287, 0
    %vm290 = vcmp.lt.s32.totalorder %v280, 0
    %vm291 = vcmp.lt.s32.totalorder %v287, 0
    %vm292 = vmand %vm290, %vm288
    %vm293 = vmand %vm291, %vm289
    %v294 = vadd.s32 %v280, 8
    %v295 = vadd.s32 %v287, 8
    %v296 = vsel %vm292, %v294, %v280
    %v297 = vsel %vm293, %v295, %v287
    %vm298 = vcmp.ge.s32.totalorder %v296, 1
    %vm299 = vcmp.ge.s32.totalorder %v297, 1
    %v300 = vsel %vm298, 1, 0
    %v301 = vsel %vm299, 1, 0
    %vm302 = vcmp.eq.s32.totalorder %v300, 1
    %vm303 = vcmp.eq.s32.totalorder %v301, 1
    %v304 = vsel %vm302, %v272, 0.0
    %v305 = vsel %vm303, %v273, 0.0
    %v306 = vlaneseq
    %v307 = vshrl.u32 %v306, 7
    %v308 = vsub.s32 2, %v307
    %v309 = vrot.slane %v253, %v308
    %v310 = vmul.f32 %v309, %v304
    %v311 = vmul.f32 %v309, %v305
    %v312 = vadd.f32 %v267, %v310
    %v313 = vadd.f32 %v268, %v311
    %v314 = vld [vmem:[#allocation2 + $0x6] sm:$0xff]
    %v315 = vld [vmem:[#allocation2 + $0xe] sm:$0xff]
    %vm316 = vcmp.ge.s32.totalorder %v296, 2
    %vm317 = vcmp.ge.s32.totalorder %v297, 2
    %v318 = vsel %vm316, 1, 0
    %v319 = vsel %vm317, 1, 0
    %vm320 = vcmp.eq.s32.totalorder %v318, 1
    %vm321 = vcmp.eq.s32.totalorder %v319, 1
    %v322 = vsel %vm320, %v314, 0.0
    %v323 = vsel %vm321, %v315, 0.0
    %v324 = vlaneseq
    %v325 = vshrl.u32 %v324, 7
    %v326 = vsub.s32 1, %v325
    %v327 = vrot.slane %v253, %v326
    %v328 = vmul.f32 %v327, %v322
    %v329 = vmul.f32 %v327, %v323
    %v330 = vadd.f32 %v312, %v328
    %v331 = vadd.f32 %v313, %v329
    %v332 = vld [vmem:[#allocation2 + $0x5] sm:$0xff]
    %v333 = vld [vmem:[#allocation2 + $0xd] sm:$0xff]
    %vm334 = vcmp.ge.s32.totalorder %v296, 3
    %vm335 = vcmp.ge.s32.totalorder %v297, 3
    %v336 = vsel %vm334, 1, 0
    %v337 = vsel %vm335, 1, 0
    %vm338 = vcmp.eq.s32.totalorder %v336, 1
    %vm339 = vcmp.eq.s32.totalorder %v337, 1
    %v340 = vsel %vm338, %v332, 0.0
    %v341 = vsel %vm339, %v333, 0.0
    %v342 = vlaneseq
    %v343 = vshrl.u32 %v342, 7
    %v344 = vsub.s32 0, %v343
    %v345 = vrot.slane %v253, %v344
    %v346 = vmul.f32 %v345, %v340
    %v347 = vmul.f32 %v345, %v341
    %v348 = vadd.f32 %v330, %v346
    %v349 = vadd.f32 %v331, %v347
    %v350 = vxor.u32 %v348, 2147483648
    %v351 = vxor.u32 %v349, 2147483648
    %v352 = vmul.f32 %v350, 1.442695
    %v353 = vpow.pop %v352
    %v354 = vmul.f32 %v351, 1.442695
    %v355 = vpow.pop %v354
    %v356 = vadd.f32 %v353, 1.0
    %v357 = vadd.f32 %v355, 1.0
    %v358 = vrcp.pop %v356
    %v359 = vmul.f32 1.0, %v358
    %v360 = vrcp.pop %v357
    %v361 = vmul.f32 1.0, %v360
    %v362 = vmul.f32 %v348, %v359
    %v363 = vmul.f32 %v349, %v361
    %v364 = vld [vmem:[#allocation9] sm:$0xff]
    %v365 = vld [vmem:[#allocation9 + $0x8] sm:$0xff]
    %v366 = vld [vmem:[#allocation9 + $0x10] sm:$0xff]
    %v367 = vld [vmem:[#allocation9 + $0x18] sm:$0xff]
    %v368 = vld [vmem:[#allocation9 + $0x20] sm:$0xff]
    %v369 = vld [vmem:[#allocation9 + $0x28] sm:$0xff]
    %v370 = vld [vmem:[#allocation9 + $0x30] sm:$0xff]
    %v371 = vld [vmem:[#allocation9 + $0x38] sm:$0xff]
    %v372 = vld [vmem:[#allocation9 + $0x40] sm:$0xff]
    %v373 = vld [vmem:[#allocation9 + $0x48] sm:$0xff]
    %v374 = vld [vmem:[#allocation9 + $0x50] sm:$0xff]
    %v375 = vld [vmem:[#allocation9 + $0x58] sm:$0xff]
    %v376 = vld [vmem:[#allocation9 + $0x60] sm:$0xff]
    %v377 = vld [vmem:[#allocation9 + $0x68] sm:$0xff]
    %v378 = vld [vmem:[#allocation9 + $0x70] sm:$0xff]
    %v379 = vld [vmem:[#allocation9 + $0x78] sm:$0xff]
    %v380 = vld [vmem:[#allocation9 + $0x80] sm:$0xff]
    %v381 = vld [vmem:[#allocation9 + $0x88] sm:$0xff]
    %v382 = vld [vmem:[#allocation9 + $0x90] sm:$0xff]
    %v383 = vld [vmem:[#allocation9 + $0x98] sm:$0xff]
    %v384 = vld [vmem:[#allocation9 + $0xa0] sm:$0xff]
    %v385 = vld [vmem:[#allocation9 + $0xa8] sm:$0xff]
    %v386 = vld [vmem:[#allocation9 + $0xb0] sm:$0xff]
    %v387 = vld [vmem:[#allocation9 + $0xb8] sm:$0xff]
    %v388 = vld [vmem:[#allocation9 + $0xc0] sm:$0xff]
    %v389 = vld [vmem:[#allocation9 + $0xc8] sm:$0xff]
    %v390 = vld [vmem:[#allocation9 + $0xd0] sm:$0xff]
    %v391 = vld [vmem:[#allocation9 + $0xd8] sm:$0xff]
    %v392 = vld [vmem:[#allocation9 + $0xe0] sm:$0xff]
    %v393 = vld [vmem:[#allocation9 + $0xe8] sm:$0xff]
    %v394 = vld [vmem:[#allocation9 + $0xf0] sm:$0xff]
    %v395 = vld [vmem:[#allocation9 + $0xf8] sm:$0xff]
    %v396 = vld [vmem:[#allocation9 + $0x100] sm:$0xff]
    %v397 = vld [vmem:[#allocation9 + $0x108] sm:$0xff]
    %v398 = vld [vmem:[#allocation9 + $0x110] sm:$0xff]
    %v399 = vld [vmem:[#allocation9 + $0x118] sm:$0xff]
    %v400 = vld [vmem:[#allocation9 + $0x120] sm:$0xff]
    %v401 = vld [vmem:[#allocation9 + $0x128] sm:$0xff]
    %v402 = vld [vmem:[#allocation9 + $0x130] sm:$0xff]
    %v403 = vld [vmem:[#allocation9 + $0x138] sm:$0xff]
    %v404 = vld [vmem:[#allocation9 + $0x140] sm:$0xff]
    %v405 = vld [vmem:[#allocation9 + $0x148] sm:$0xff]
    %v406 = vld [vmem:[#allocation9 + $0x150] sm:$0xff]
    %v407 = vld [vmem:[#allocation9 + $0x158] sm:$0xff]
    %v408 = vld [vmem:[#allocation9 + $0x160] sm:$0xff]
    %v409 = vld [vmem:[#allocation9 + $0x168] sm:$0xff]
    %v410 = vld [vmem:[#allocation9 + $0x170] sm:$0xff]
    %v411 = vld [vmem:[#allocation9 + $0x178] sm:$0xff]
    %412 = vmatprep.subr.mxu0 %v365
    %413 = vmatpush1.msra.mxu0 %v364
    %414 = vmatprep.subr.mxu0 %v368
    %415 = vmatpush1.msra.mxu0 %v367
    %416 = vmatprep.subr.mxu0 %v371
    %417 = vmatpush1.msra.mxu0 %v370
    %418 = vmatprep.subr.mxu0 %v374
    %419 = vmatpush1.msra.mxu0 %v373
    %420 = vmatprep.subr.mxu0 %v377
    %421 = vmatpush1.msra.mxu0 %v376
    %422 = vmatprep.subr.mxu0 %v380
    %423 = vmatpush1.msra.mxu0 %v379
    %424 = vmatprep.subr.mxu0 %v383
    %425 = vmatpush1.msra.mxu0 %v382
    %426 = vmatprep.subr.mxu0 %v386
    %427 = vmatpush1.msra.mxu0 %v385
    %428 = vmatprep.subr.mxu0 %v389
    %429 = vmatpush1.msra.mxu0 %v388
    %430 = vmatprep.subr.mxu0 %v392
    %431 = vmatpush1.msra.mxu0 %v391
    %432 = vmatprep.subr.mxu0 %v395
    %433 = vmatpush1.msra.mxu0 %v394
    %434 = vmatprep.subr.mxu0 %v398
    %435 = vmatpush1.msra.mxu0 %v397
    %436 = vmatprep.subr.mxu0 %v401
    %437 = vmatpush1.msra.mxu0 %v400
    %438 = vmatprep.subr.mxu0 %v404
    %439 = vmatpush1.msra.mxu0 %v403
    %440 = vmatprep.subr.mxu0 %v407
    %441 = vmatpush1.msra.mxu0 %v406
    %442 = vmatprep.subr.mxu0 %v410
    %443 = vmatpush1.msra.mxu0 %v409
    %444 = vmatprep.subr.mxu0 0.0
    %445 = vmatpush1.msra.mxu0 0.0
    %446 = vmatprep.subr.mxu0 0.0
    %447 = vmatpush1.msra.mxu0 0.0
    %448 = vmatprep.subr.mxu0 0.0
    %449 = vmatpush1.msra.mxu0 0.0
    %450 = vmatprep.subr.mxu0 0.0
    %451 = vmatpush1.msra.mxu0 0.0
    %452 = vmatprep.subr.mxu0 0.0
    %453 = vmatpush1.msra.mxu0 0.0
    %454 = vmatprep.subr.mxu0 0.0
    %455 = vmatpush1.msra.mxu0 0.0
    %456 = vmatprep.subr.mxu0 0.0
    %457 = vmatpush1.msra.mxu0 0.0
    %458 = vmatprep.subr.mxu0 0.0
    %459 = vmatpush1.msra.mxu0 0.0
    %460 = vmatprep.subr.mxu0 0.0
    %461 = vmatpush1.msra.mxu0 0.0
    %462 = vmatprep.subr.mxu0 0.0
    %463 = vmatpush1.msra.mxu0 0.0
    %464 = vmatprep.subr.mxu0 0.0
    %465 = vmatpush1.msra.mxu0 0.0
    %466 = vmatprep.subr.mxu0 0.0
    %467 = vmatpush1.msra.mxu0 0.0
    %468 = vmatprep.subr.mxu0 0.0
    %469 = vmatpush1.msra.mxu0 0.0
    %470 = vmatprep.subr.mxu0 0.0
    %471 = vmatpush1.msra.mxu0 0.0
    %472 = vmatprep.subr.mxu0 0.0
    %473 = vmatpush1.msra.mxu0 0.0
    %474 = vmatprep.subr.mxu0 0.0
    %475 = vmatpush1.msra.mxu0 0.0
    %476 = vmatprep.mubr.f32.mxu0 0.0
    %477 = vmatmul.mubr.f32.gmra.mrb[0].mxu0 %v362
    %v478 = vpop.f32.mrb[0].mxu0
    %v479 = vadd.f32 0.0, %v478
    %v480 = vpop.f32.mrb[0].mxu0
    %v481 = vadd.f32 0.0, %v480
    %482 = vmatprep.mubr.f32.mxu0 0.0
    %483 = vmatmul.mubr.f32.gmra.mrb[0].mxu0 %v363
    %v484 = vpop.f32.mrb[0].mxu0
    %v485 = vadd.f32 0.0, %v484
    %v486 = vpop.f32.mrb[0].mxu0
    %v487 = vadd.f32 0.0, %v486
    %488 = vdwg.mxu0
    %489 = vmatprep.subr.mxu0 0.0
    %490 = vmatpush1.msra.mxu0 %v366
    %491 = vmatprep.subr.mxu0 0.0
    %492 = vmatpush1.msra.mxu0 %v369
    %493 = vmatprep.subr.mxu0 0.0
    %494 = vmatpush1.msra.mxu0 %v372
    %495 = vmatprep.subr.mxu0 0.0
    %496 = vmatpush1.msra.mxu0 %v375
    %497 = vmatprep.subr.mxu0 0.0
    %498 = vmatpush1.msra.mxu0 %v378
    %499 = vmatprep.subr.mxu0 0.0
    %500 = vmatpush1.msra.mxu0 %v381
    %501 = vmatprep.subr.mxu0 0.0
    %502 = vmatpush1.msra.mxu0 %v384
    %503 = vmatprep.subr.mxu0 0.0
    %504 = vmatpush1.msra.mxu0 %v387
    %505 = vmatprep.subr.mxu0 0.0
    %506 = vmatpush1.msra.mxu0 %v390
    %507 = vmatprep.subr.mxu0 0.0
    %508 = vmatpush1.msra.mxu0 %v393
    %509 = vmatprep.subr.mxu0 0.0
    %510 = vmatpush1.msra.mxu0 %v396
    %511 = vmatprep.subr.mxu0 0.0
    %512 = vmatpush1.msra.mxu0 %v399
    %513 = vmatprep.subr.mxu0 0.0
    %514 = vmatpush1.msra.mxu0 %v402
    %515 = vmatprep.subr.mxu0 0.0
    %516 = vmatpush1.msra.mxu0 %v405
    %517 = vmatprep.subr.mxu0 0.0
    %518 = vmatpush1.msra.mxu0 %v408
    %519 = vmatprep.subr.mxu0 0.0
    %520 = vmatpush1.msra.mxu0 %v411
    %521 = vmatprep.subr.mxu0 0.0
    %522 = vmatpush1.msra.mxu0 0.0
    %523 = vmatprep.subr.mxu0 0.0
    %524 = vmatpush1.msra.mxu0 0.0
    %525 = vmatprep.subr.mxu0 0.0
    %526 = vmatpush1.msra.mxu0 0.0
    %527 = vmatprep.subr.mxu0 0.0
    %528 = vmatpush1.msra.mxu0 0.0
    %529 = vmatprep.subr.mxu0 0.0
    %530 = vmatpush1.msra.mxu0 0.0
    %531 = vmatprep.subr.mxu0 0.0
    %532 = vmatpush1.msra.mxu0 0.0
    %533 = vmatprep.subr.mxu0 0.0
    %534 = vmatpush1.msra.mxu0 0.0
    %535 = vmatprep.subr.mxu0 0.0
    %536 = vmatpush1.msra.mxu0 0.0
    %537 = vmatprep.subr.mxu0 0.0
    %538 = vmatpush1.msra.mxu0 0.0
    %539 = vmatprep.subr.mxu0 0.0
    %540 = vmatpush1.msra.mxu0 0.0
    %541 = vmatprep.subr.mxu0 0.0
    %542 = vmatpush1.msra.mxu0 0.0
    %543 = vmatprep.subr.mxu0 0.0
    %544 = vmatpush1.msra.mxu0 0.0
    %545 = vmatprep.subr.mxu0 0.0
    %546 = vmatpush1.msra.mxu0 0.0
    %547 = vmatprep.subr.mxu0 0.0
    %548 = vmatpush1.msra.mxu0 0.0
    %549 = vmatprep.subr.mxu0 0.0
    %550 = vmatpush1.msra.mxu0 0.0
    %551 = vmatprep.subr.mxu0 0.0
    %552 = vmatpush1.msra.mxu0 0.0
    %553 = vmatprep.mubr.f32.mxu0 0.0
    %554 = vmatmul.mubr.f32.gmra.mrb[0].mxu0 %v362
    %v555 = vpop.f32.mrb[0].mxu0
    %v556 = vadd.f32 0.0, %v555
    %v557 = vpop.f32.mrb[0].mxu0
    %558 = vmatprep.mubr.f32.mxu0 0.0
    %559 = vmatmul.mubr.f32.gmra.mrb[0].mxu0 %v363
    %v560 = vpop.f32.mrb[0].mxu0
    %v561 = vadd.f32 0.0, %v560
    %v562 = vpop.f32.mrb[0].mxu0
    %563 = vdwg.mxu0
    %v564 = vld [vmem:[%s5] sm:$0x1]
    %v566 = vlaneseq
    %v567 = vshrl.u32 %v566, 7
    %v568 = vsub.s32 0, %v567
    %v569 = vrot.slane %v564, %v568
    %v571 = vadd.f32 %v479, %v569
    %v572 = vadd.f32 %v485, %v569
    %vm573 = vcmp.gt.f32.partialorder %v571, 20.0
    %vm574 = vcmp.gt.f32.partialorder %v572, 20.0
    %v575 = vmin.f32 %v571, 20.0
    %v576 = vmin.f32 %v572, 20.0
    %v577 = vmul.f32 %v575, 1.442695
    %v578 = vpow.pop %v577
    %v579 = vmul.f32 %v576, 1.442695
    %v580 = vpow.pop %v579
    %v581 = vadd.f32 %v578, 1.0
    %v582 = vadd.f32 %v580, 1.0
    %v583 = vlog2.pop %v581
    %v584 = vmul.f32 %v583, 0.6931472
    %v585 = vlog2.pop %v582
    %v586 = vmul.f32 %v585, 0.6931472
    %v587 = vsel %vm573, %v571, %v584
    %v588 = vsel %vm574, %v572, %v586
    %v589 = vmul.f32 %v587, %v362
    %v590 = vmul.f32 %v588, %v363
    %v591 = vld [vmem:[%s6] sm:$0xff]
    %v592 = vld [vmem:[%s6 + $0x8] sm:$0xff]
    %v593 = vlaneseq
    %v594 = vand.u32 %v593, 127
    %vm595 = vcmp.eq.s32.totalorder %v270, %v594
    %vm596 = vcmp.eq.s32.totalorder %v271, %v594
    %v597 = vlaneseq
    %v598 = vshrl.u32 %v597, 7
    %v599 = vsub.s32 0, %v598
    %v600 = vrot.slane %v587, %v599
    %v601 = vmul.f32 %v600, %v591
    %v602 = vmul.f32 %v600, %v592
    %v603 = vmul.f32 %v601, 1.442695
    %v604 = vpow.pop %v603
    %v605 = vmul.f32 %v602, 1.442695
    %v606 = vpow.pop %v605
    %v607 = vlaneseq
    %v608 = vshrl.u32 %v607, 7
    %v609 = vsub.s32 0, %v608
    %v610 = vrot.slane %v481, %v609
    %v611 = vsel %vm595, %v610, 0.0
    %v612 = vsel %vm596, %v610, 0.0
    %vm613 = vcmask 130048
    %v614 = vsel %vm613, %v611, 0.0
    %615 = vadd.xlane.f32.xlu0 %v614
    %v616 = vpop.xlane.xlu0 %615
    %v617 = vsel %vm613, %v612, 0.0
    %618 = vadd.xlane.f32.xlu0 %v617
    %v619 = vpop.xlane.xlu0 %618
    %v620 = vlaneseq
    %v621 = vshrl.u32 %v620, 7
    %v622 = vsub.s32 0, %v621
    %v623 = vrot.slane %v556, %v622
    %v624 = vsel %vm595, %v623, 0.0
    %v625 = vsel %vm596, %v623, 0.0
    %v626 = vsel %vm613, %v624, 0.0
    %627 = vadd.xlane.f32.xlu0 %v626
    %v628 = vpop.xlane.xlu0 %627
    %v629 = vsel %vm613, %v625, 0.0
    %630 = vadd.xlane.f32.xlu0 %v629
    %v631 = vpop.xlane.xlu0 %630
    %v632 = vmul.f32 %v604, 0.0
    %v633 = vmul.f32 %v606, 0.0
    %v634 = vlaneseq
    %v635 = vshrl.u32 %v634, 7
    %v636 = vsub.s32 0, %v635
    %v637 = vrot.slane %v589, %v636
    %v638 = vmul.f32 %v637, %v616
    %v639 = vmul.f32 %v637, %v619
    %v640 = vadd.f32 %v632, %v638
    %v641 = vadd.f32 %v633, %v639
    %v642 = vmul.f32 %v640, %v628
    %v643 = vmul.f32 %v641, %v631
    %v644 = vadd.f32 %v642, %v643
    %v645 = vrot.slane %v644, 4
    %v646 = vadd.f32 %v644, %v645
    %v647 = vrot.slane %v646, 2
    %v648 = vadd.f32 %v646, %v647
    %v649 = vrot.slane %v648, 1
    %v650 = vadd.f32 %v648, %v649
    %651 = vst [vmem:[#allocation3] sm:$0x1] %v650
    %v652 = vlaneseq
    %v653 = vshrl.u32 %v652, 7
    %v654 = vsub.s32 0, %v653
    %v655 = vrot.slane %v588, %v654
    %v656 = vmul.f32 %v655, %v591
    %v657 = vmul.f32 %v655, %v592
    %v658 = vmul.f32 %v656, 1.442695
    %v659 = vpow.pop %v658
    %v660 = vmul.f32 %v657, 1.442695
    %v661 = vpow.pop %v660
    %v662 = vlaneseq
    %v663 = vshrl.u32 %v662, 7
    %v664 = vsub.s32 0, %v663
    %v665 = vrot.slane %v487, %v664
    %v666 = vsel %vm595, %v665, 0.0
    %v667 = vsel %vm596, %v665, 0.0
    %v668 = vsel %vm613, %v666, 0.0
    %669 = vadd.xlane.f32.xlu0 %v668
    %v670 = vpop.xlane.xlu0 %669
    %v671 = vsel %vm613, %v667, 0.0
    %672 = vadd.xlane.f32.xlu0 %v671
    %v673 = vpop.xlane.xlu0 %672
    %v674 = vlaneseq
    %v675 = vshrl.u32 %v674, 7
    %v676 = vsub.s32 0, %v675
    %v677 = vrot.slane %v561, %v676
    %v678 = vsel %vm595, %v677, 0.0
    %v679 = vsel %vm596, %v677, 0.0
    %v680 = vsel %vm613, %v678, 0.0
    %681 = vadd.xlane.f32.xlu0 %v680
    %v682 = vpop.xlane.xlu0 %681
    %v683 = vsel %vm613, %v679, 0.0
    %684 = vadd.xlane.f32.xlu0 %v683
    %v685 = vpop.xlane.xlu0 %684
    %v686 = vmul.f32 %v659, 0.0
    %v687 = vmul.f32 %v661, 0.0
    %v688 = vlaneseq
    %v689 = vshrl.u32 %v688, 7
    %v690 = vsub.s32 0, %v689
    %v691 = vrot.slane %v590, %v690
    %v692 = vmul.f32 %v691, %v670
    %v693 = vmul.f32 %v691, %v673
    %v694 = vadd.f32 %v686, %v692
    %v695 = vadd.f32 %v687, %v693
    %v696 = vmul.f32 %v694, %v682
    %v697 = vmul.f32 %v695, %v685
    %v698 = vadd.f32 %v696, %v697
    %v699 = vrot.slane %v698, 4
    %v700 = vadd.f32 %v698, %v699
    %v701 = vrot.slane %v700, 2
    %v702 = vadd.f32 %v700, %v701
    %v703 = vrot.slane %v702, 1
    %v704 = vadd.f32 %v702, %v703
    %705 = vst [vmem:[#allocation3 + $0x8] sm:$0x1] %v704
    %v706 = vlaneseq
    %v707 = vshrl.u32 %v706, 7
    %v708 = vsub.s32 1, %v707
    %v709 = vrot.slane %v587, %v708
    %v710 = vmul.f32 %v709, %v591
    %v711 = vmul.f32 %v709, %v592
    %v712 = vmul.f32 %v710, 1.442695
    %v713 = vpow.pop %v712
    %v714 = vmul.f32 %v711, 1.442695
    %v715 = vpow.pop %v714
    %v716 = vlaneseq
    %v717 = vshrl.u32 %v716, 7
    %v718 = vsub.s32 1, %v717
    %v719 = vrot.slane %v481, %v718
    %v720 = vsel %vm595, %v719, 0.0
    %v721 = vsel %vm596, %v719, 0.0
    %v722 = vsel %vm613, %v720, 0.0
    %723 = vadd.xlane.f32.xlu0 %v722
    %v724 = vpop.xlane.xlu0 %723
    %v725 = vsel %vm613, %v721, 0.0
    %726 = vadd.xlane.f32.xlu0 %v725
    %v727 = vpop.xlane.xlu0 %726
    %v728 = vlaneseq
    %v729 = vshrl.u32 %v728, 7
    %v730 = vsub.s32 1, %v729
    %v731 = vrot.slane %v556, %v730
    %v732 = vsel %vm595, %v731, 0.0
    %v733 = vsel %vm596, %v731, 0.0
    %v734 = vsel %vm613, %v732, 0.0
    %735 = vadd.xlane.f32.xlu0 %v734
    %v736 = vpop.xlane.xlu0 %735
    %v737 = vsel %vm613, %v733, 0.0
    %738 = vadd.xlane.f32.xlu0 %v737
    %v739 = vpop.xlane.xlu0 %738
    %v740 = vmul.f32 %v713, %v640
    %v741 = vmul.f32 %v715, %v641
    %v742 = vlaneseq
    %v743 = vshrl.u32 %v742, 7
    %v744 = vsub.s32 1, %v743
    %v745 = vrot.slane %v589, %v744
    %v746 = vmul.f32 %v745, %v724
    %v747 = vmul.f32 %v745, %v727
    %v748 = vadd.f32 %v740, %v746
    %v749 = vadd.f32 %v741, %v747
    %v750 = vmul.f32 %v748, %v736
    %v751 = vmul.f32 %v749, %v739
    %v752 = vadd.f32 %v750, %v751
    %v753 = vrot.slane %v752, 4
    %v754 = vadd.f32 %v752, %v753
    %v755 = vrot.slane %v754, 2
    %v756 = vadd.f32 %v754, %v755
    %v757 = vrot.slane %v756, 1
    %v758 = vadd.f32 %v756, %v757
    %759 = vst [vmem:[#allocation3 + $0x1] sm:$0x1] %v758
    %v760 = vlaneseq
    %v761 = vshrl.u32 %v760, 7
    %v762 = vsub.s32 1, %v761
    %v763 = vrot.slane %v588, %v762
    %v764 = vmul.f32 %v763, %v591
    %v765 = vmul.f32 %v763, %v592
    %v766 = vmul.f32 %v764, 1.442695
    %v767 = vpow.pop %v766
    %v768 = vmul.f32 %v765, 1.442695
    %v769 = vpow.pop %v768
    %v770 = vlaneseq
    %v771 = vshrl.u32 %v770, 7
    %v772 = vsub.s32 1, %v771
    %v773 = vrot.slane %v487, %v772
    %v774 = vsel %vm595, %v773, 0.0
    %v775 = vsel %vm596, %v773, 0.0
    %v776 = vsel %vm613, %v774, 0.0
    %777 = vadd.xlane.f32.xlu0 %v776
    %v778 = vpop.xlane.xlu0 %777
    %v779 = vsel %vm613, %v775, 0.0
    %780 = vadd.xlane.f32.xlu0 %v779
    %v781 = vpop.xlane.xlu0 %780
    %v782 = vlaneseq
    %v783 = vshrl.u32 %v782, 7
    %v784 = vsub.s32 1, %v783
    %v785 = vrot.slane %v561, %v784
    %v786 = vsel %vm595, %v785, 0.0
    %v787 = vsel %vm596, %v785, 0.0
    %v788 = vsel %vm613, %v786, 0.0
    %789 = vadd.xlane.f32.xlu0 %v788
    %v790 = vpop.xlane.xlu0 %789
    %v791 = vsel %vm613, %v787, 0.0
    %792 = vadd.xlane.f32.xlu0 %v791
    %v793 = vpop.xlane.xlu0 %792
    %v794 = vmul.f32 %v767, %v694
    %v795 = vmul.f32 %v769, %v695
    %v796 = vlaneseq
    %v797 = vshrl.u32 %v796, 7
    %v798 = vsub.s32 1, %v797
    %v799 = vrot.slane %v590, %v798
    %v800 = vmul.f32 %v799, %v778
    %v801 = vmul.f32 %v799, %v781
    %v802 = vadd.f32 %v794, %v800
    %v803 = vadd.f32 %v795, %v801
    %v804 = vmul.f32 %v802, %v790
    %v805 = vmul.f32 %v803, %v793
    %v806 = vadd.f32 %v804, %v805
    %v807 = vrot.slane %v806, 4
    %v808 = vadd.f32 %v806, %v807
    %v809 = vrot.slane %v808, 2
    %v810 = vadd.f32 %v808, %v809
    %v811 = vrot.slane %v810, 1
    %v812 = vadd.f32 %v810, %v811
    %813 = vst [vmem:[#allocation3 + $0x9] sm:$0x1] %v812
    %v814 = vlaneseq
    %v815 = vshrl.u32 %v814, 7
    %v816 = vsub.s32 2, %v815
    %v817 = vrot.slane %v587, %v816
    %v818 = vmul.f32 %v817, %v591
    %v819 = vmul.f32 %v817, %v592
    %v820 = vmul.f32 %v818, 1.442695
    %v821 = vpow.pop %v820
    %v822 = vmul.f32 %v819, 1.442695
    %v823 = vpow.pop %v822
    %v824 = vlaneseq
    %v825 = vshrl.u32 %v824, 7
    %v826 = vsub.s32 2, %v825
    %v827 = vrot.slane %v481, %v826
    %v828 = vsel %vm595, %v827, 0.0
    %v829 = vsel %vm596, %v827, 0.0
    %v830 = vsel %vm613, %v828, 0.0
    %831 = vadd.xlane.f32.xlu0 %v830
    %v832 = vpop.xlane.xlu0 %831
    %v833 = vsel %vm613, %v829, 0.0
    %834 = vadd.xlane.f32.xlu0 %v833
    %v835 = vpop.xlane.xlu0 %834
    %v836 = vlaneseq
    %v837 = vshrl.u32 %v836, 7
    %v838 = vsub.s32 2, %v837
    %v839 = vrot.slane %v556, %v838
    %v840 = vsel %vm595, %v839, 0.0
    %v841 = vsel %vm596, %v839, 0.0
    %v842 = vsel %vm613, %v840, 0.0
    %843 = vadd.xlane.f32.xlu0 %v842
    %v844 = vpop.xlane.xlu0 %843
    %v845 = vsel %vm613, %v841, 0.0
    %846 = vadd.xlane.f32.xlu0 %v845
    %v847 = vpop.xlane.xlu0 %846
    %v848 = vmul.f32 %v821, %v748
    %v849 = vmul.f32 %v823, %v749
    %v850 = vlaneseq
    %v851 = vshrl.u32 %v850, 7
    %v852 = vsub.s32 2, %v851
    %v853 = vrot.slane %v589, %v852
    %v854 = vmul.f32 %v853, %v832
    %v855 = vmul.f32 %v853, %v835
    %v856 = vadd.f32 %v848, %v854
    %v857 = vadd.f32 %v849, %v855
    %v858 = vmul.f32 %v856, %v844
    %v859 = vmul.f32 %v857, %v847
    %v860 = vadd.f32 %v858, %v859
    %v861 = vrot.slane %v860, 4
    %v862 = vadd.f32 %v860, %v861
    %v863 = vrot.slane %v862, 2
    %v864 = vadd.f32 %v862, %v863
    %v865 = vrot.slane %v864, 1
    %v866 = vadd.f32 %v864, %v865
    %867 = vst [vmem:[#allocation3 + $0x2] sm:$0x1] %v866
    %v868 = vlaneseq
    %v869 = vshrl.u32 %v868, 7
    %v870 = vsub.s32 2, %v869
    %v871 = vrot.slane %v588, %v870
    %v872 = vmul.f32 %v871, %v591
    %v873 = vmul.f32 %v871, %v592
    %v874 = vmul.f32 %v872, 1.442695
    %v875 = vpow.pop %v874
    %v876 = vmul.f32 %v873, 1.442695
    %v877 = vpow.pop %v876
    %v878 = vlaneseq
    %v879 = vshrl.u32 %v878, 7
    %v880 = vsub.s32 2, %v879
    %v881 = vrot.slane %v487, %v880
    %v882 = vsel %vm595, %v881, 0.0
    %v883 = vsel %vm596, %v881, 0.0
    %v884 = vsel %vm613, %v882, 0.0
    %885 = vadd.xlane.f32.xlu0 %v884
    %v886 = vpop.xlane.xlu0 %885
    %v887 = vsel %vm613, %v883, 0.0
    %888 = vadd.xlane.f32.xlu0 %v887
    %v889 = vpop.xlane.xlu0 %888
    %v890 = vlaneseq
    %v891 = vshrl.u32 %v890, 7
    %v892 = vsub.s32 2, %v891
    %v893 = vrot.slane %v561, %v892
    %v894 = vsel %vm595, %v893, 0.0
    %v895 = vsel %vm596, %v893, 0.0
    %v896 = vsel %vm613, %v894, 0.0
    %897 = vadd.xlane.f32.xlu0 %v896
    %v898 = vpop.xlane.xlu0 %897
    %v899 = vsel %vm613, %v895, 0.0
    %900 = vadd.xlane.f32.xlu0 %v899
    %v901 = vpop.xlane.xlu0 %900
    %v902 = vmul.f32 %v875, %v802
    %v903 = vmul.f32 %v877, %v803
    %v904 = vlaneseq
    %v905 = vshrl.u32 %v904, 7
    %v906 = vsub.s32 2, %v905
    %v907 = vrot.slane %v590, %v906
    %v908 = vmul.f32 %v907, %v886
    %v909 = vmul.f32 %v907, %v889
    %v910 = vadd.f32 %v902, %v908
    %v911 = vadd.f32 %v903, %v909
    %v912 = vmul.f32 %v910, %v898
    %v913 = vmul.f32 %v911, %v901
    %v914 = vadd.f32 %v912, %v913
    %v915 = vrot.slane %v914, 4
    %v916 = vadd.f32 %v914, %v915
    %v917 = vrot.slane %v916, 2
    %v918 = vadd.f32 %v916, %v917
    %v919 = vrot.slane %v918, 1
    %v920 = vadd.f32 %v918, %v919
    %921 = vst [vmem:[#allocation3 + $0xa] sm:$0x1] %v920
    %v922 = vlaneseq
    %v923 = vshrl.u32 %v922, 7
    %v924 = vsub.s32 3, %v923
    %v925 = vrot.slane %v587, %v924
    %v926 = vmul.f32 %v925, %v591
    %v927 = vmul.f32 %v925, %v592
    %v928 = vmul.f32 %v926, 1.442695
    %v929 = vpow.pop %v928
    %v930 = vmul.f32 %v927, 1.442695
    %v931 = vpow.pop %v930
    %v932 = vlaneseq
    %v933 = vshrl.u32 %v932, 7
    %v934 = vsub.s32 3, %v933
    %v935 = vrot.slane %v481, %v934
    %v936 = vsel %vm595, %v935, 0.0
    %v937 = vsel %vm596, %v935, 0.0
    %v938 = vsel %vm613, %v936, 0.0
    %939 = vadd.xlane.f32.xlu0 %v938
    %v940 = vpop.xlane.xlu0 %939
    %v941 = vsel %vm613, %v937, 0.0
    %942 = vadd.xlane.f32.xlu0 %v941
    %v943 = vpop.xlane.xlu0 %942
    %v944 = vlaneseq
    %v945 = vshrl.u32 %v944, 7
    %v946 = vsub.s32 3, %v945
    %v947 = vrot.slane %v556, %v946
    %v948 = vsel %vm595, %v947, 0.0
    %v949 = vsel %vm596, %v947, 0.0
    %v950 = vsel %vm613, %v948, 0.0
    %951 = vadd.xlane.f32.xlu0 %v950
    %v952 = vpop.xlane.xlu0 %951
    %v953 = vsel %vm613, %v949, 0.0
    %954 = vadd.xlane.f32.xlu0 %v953
    %v955 = vpop.xlane.xlu0 %954
    %v956 = vmul.f32 %v929, %v856
    %v957 = vmul.f32 %v931, %v857
    %v958 = vlaneseq
    %v959 = vshrl.u32 %v958, 7
    %v960 = vsub.s32 3, %v959
    %v961 = vrot.slane %v589, %v960
    %v962 = vmul.f32 %v961, %v940
    %v963 = vmul.f32 %v961, %v943
    %v964 = vadd.f32 %v956, %v962
    %v965 = vadd.f32 %v957, %v963
    %v966 = vmul.f32 %v964, %v952
    %v967 = vmul.f32 %v965, %v955
    %v968 = vadd.f32 %v966, %v967
    %v969 = vrot.slane %v968, 4
    %v970 = vadd.f32 %v968, %v969
    %v971 = vrot.slane %v970, 2
    %v972 = vadd.f32 %v970, %v971
    %v973 = vrot.slane %v972, 1
    %v974 = vadd.f32 %v972, %v973
    %975 = vst [vmem:[#allocation3 + $0x3] sm:$0x1] %v974
    %v976 = vlaneseq
    %v977 = vshrl.u32 %v976, 7
    %v978 = vsub.s32 3, %v977
    %v979 = vrot.slane %v588, %v978
    %v980 = vmul.f32 %v979, %v591
    %v981 = vmul.f32 %v979, %v592
    %v982 = vmul.f32 %v980, 1.442695
    %v983 = vpow.pop %v982
    %v984 = vmul.f32 %v981, 1.442695
    %v985 = vpow.pop %v984
    %v986 = vlaneseq
    %v987 = vshrl.u32 %v986, 7
    %v988 = vsub.s32 3, %v987
    %v989 = vrot.slane %v487, %v988
    %v990 = vsel %vm595, %v989, 0.0
    %v991 = vsel %vm596, %v989, 0.0
    %v992 = vsel %vm613, %v990, 0.0
    %993 = vadd.xlane.f32.xlu0 %v992
    %v994 = vpop.xlane.xlu0 %993
    %v995 = vsel %vm613, %v991, 0.0
    %996 = vadd.xlane.f32.xlu0 %v995
    %v997 = vpop.xlane.xlu0 %996
    %v998 = vlaneseq
    %v999 = vshrl.u32 %v998, 7
    %v1000 = vsub.s32 3, %v999
    %v1001 = vrot.slane %v561, %v1000
    %v1002 = vsel %vm595, %v1001, 0.0
    %v1003 = vsel %vm596, %v1001, 0.0
    %v1004 = vsel %vm613, %v1002, 0.0
    %1005 = vadd.xlane.f32.xlu0 %v1004
    %v1006 = vpop.xlane.xlu0 %1005
    %v1007 = vsel %vm613, %v1003, 0.0
    %1008 = vadd.xlane.f32.xlu0 %v1007
    %v1009 = vpop.xlane.xlu0 %1008
    %v1010 = vmul.f32 %v983, %v910
    %v1011 = vmul.f32 %v985, %v911
    %v1012 = vlaneseq
    %v1013 = vshrl.u32 %v1012, 7
    %v1014 = vsub.s32 3, %v1013
    %v1015 = vrot.slane %v590, %v1014
    %v1016 = vmul.f32 %v1015, %v994
    %v1017 = vmul.f32 %v1015, %v997
    %v1018 = vadd.f32 %v1010, %v1016
    %v1019 = vadd.f32 %v1011, %v1017
    %v1020 = vmul.f32 %v1018, %v1006
    %v1021 = vmul.f32 %v1019, %v1009
    %v1022 = vadd.f32 %v1020, %v1021
    %v1023 = vrot.slane %v1022, 4
    %v1024 = vadd.f32 %v1022, %v1023
    %v1025 = vrot.slane %v1024, 2
    %v1026 = vadd.f32 %v1024, %v1025
    %v1027 = vrot.slane %v1026, 1
    %v1028 = vadd.f32 %v1026, %v1027
    %1029 = vst [vmem:[#allocation3 + $0xb] sm:$0x1] %v1028
    %v1030 = vlaneseq
    %v1031 = vshrl.u32 %v1030, 7
    %v1032 = vsub.s32 4, %v1031
    %v1033 = vrot.slane %v587, %v1032
    %v1034 = vmul.f32 %v1033, %v591
    %v1035 = vmul.f32 %v1033, %v592
    %v1036 = vmul.f32 %v1034, 1.442695
    %v1037 = vpow.pop %v1036
    %v1038 = vmul.f32 %v1035, 1.442695
    %v1039 = vpow.pop %v1038
    %v1040 = vlaneseq
    %v1041 = vshrl.u32 %v1040, 7
    %v1042 = vsub.s32 4, %v1041
    %v1043 = vrot.slane %v481, %v1042
    %v1044 = vsel %vm595, %v1043, 0.0
    %v1045 = vsel %vm596, %v1043, 0.0
    %v1046 = vsel %vm613, %v1044, 0.0
    %1047 = vadd.xlane.f32.xlu0 %v1046
    %v1048 = vpop.xlane.xlu0 %1047
    %v1049 = vsel %vm613, %v1045, 0.0
    %1050 = vadd.xlane.f32.xlu0 %v1049
    %v1051 = vpop.xlane.xlu0 %1050
    %v1052 = vlaneseq
    %v1053 = vshrl.u32 %v1052, 7
    %v1054 = vsub.s32 4, %v1053
    %v1055 = vrot.slane %v556, %v1054
    %v1056 = vsel %vm595, %v1055, 0.0
    %v1057 = vsel %vm596, %v1055, 0.0
    %v1058 = vsel %vm613, %v1056, 0.0
    %1059 = vadd.xlane.f32.xlu0 %v1058
    %v1060 = vpop.xlane.xlu0 %1059
    %v1061 = vsel %vm613, %v1057, 0.0
    %1062 = vadd.xlane.f32.xlu0 %v1061
    %v1063 = vpop.xlane.xlu0 %1062
    %v1064 = vmul.f32 %v1037, %v964
    %v1065 = vmul.f32 %v1039, %v965
    %v1066 = vlaneseq
    %v1067 = vshrl.u32 %v1066, 7
    %v1068 = vsub.s32 4, %v1067
    %v1069 = vrot.slane %v589, %v1068
    %v1070 = vmul.f32 %v1069, %v1048
    %v1071 = vmul.f32 %v1069, %v1051
    %v1072 = vadd.f32 %v1064, %v1070
    %v1073 = vadd.f32 %v1065, %v1071
    %v1074 = vmul.f32 %v1072, %v1060
    %v1075 = vmul.f32 %v1073, %v1063
    %v1076 = vadd.f32 %v1074, %v1075
    %v1077 = vrot.slane %v1076, 4
    %v1078 = vadd.f32 %v1076, %v1077
    %v1079 = vrot.slane %v1078, 2
    %v1080 = vadd.f32 %v1078, %v1079
    %v1081 = vrot.slane %v1080, 1
    %v1082 = vadd.f32 %v1080, %v1081
    %1083 = vst [vmem:[#allocation3 + $0x4] sm:$0x1] %v1082
    %v1084 = vlaneseq
    %v1085 = vshrl.u32 %v1084, 7
    %v1086 = vsub.s32 4, %v1085
    %v1087 = vrot.slane %v588, %v1086
    %v1088 = vmul.f32 %v1087, %v591
    %v1089 = vmul.f32 %v1087, %v592
    %v1090 = vmul.f32 %v1088, 1.442695
    %v1091 = vpow.pop %v1090
    %v1092 = vmul.f32 %v1089, 1.442695
    %v1093 = vpow.pop %v1092
    %v1094 = vlaneseq
    %v1095 = vshrl.u32 %v1094, 7
    %v1096 = vsub.s32 4, %v1095
    %v1097 = vrot.slane %v487, %v1096
    %v1098 = vsel %vm595, %v1097, 0.0
    %v1099 = vsel %vm596, %v1097, 0.0
    %v1100 = vsel %vm613, %v1098, 0.0
    %1101 = vadd.xlane.f32.xlu0 %v1100
    %v1102 = vpop.xlane.xlu0 %1101
    %v1103 = vsel %vm613, %v1099, 0.0
    %1104 = vadd.xlane.f32.xlu0 %v1103
    %v1105 = vpop.xlane.xlu0 %1104
    %v1106 = vlaneseq
    %v1107 = vshrl.u32 %v1106, 7
    %v1108 = vsub.s32 4, %v1107
    %v1109 = vrot.slane %v561, %v1108
    %v1110 = vsel %vm595, %v1109, 0.0
    %v1111 = vsel %vm596, %v1109, 0.0
    %v1112 = vsel %vm613, %v1110, 0.0
    %1113 = vadd.xlane.f32.xlu0 %v1112
    %v1114 = vpop.xlane.xlu0 %1113
    %v1115 = vsel %vm613, %v1111, 0.0
    %1116 = vadd.xlane.f32.xlu0 %v1115
    %v1117 = vpop.xlane.xlu0 %1116
    %v1118 = vmul.f32 %v1091, %v1018
    %v1119 = vmul.f32 %v1093, %v1019
    %v1120 = vlaneseq
    %v1121 = vshrl.u32 %v1120, 7
    %v1122 = vsub.s32 4, %v1121
    %v1123 = vrot.slane %v590, %v1122
    %v1124 = vmul.f32 %v1123, %v1102
    %v1125 = vmul.f32 %v1123, %v1105
    %v1126 = vadd.f32 %v1118, %v1124
    %v1127 = vadd.f32 %v1119, %v1125
    %v1128 = vmul.f32 %v1126, %v1114
    %v1129 = vmul.f32 %v1127, %v1117
    %v1130 = vadd.f32 %v1128, %v1129
    %v1131 = vrot.slane %v1130, 4
    %v1132 = vadd.f32 %v1130, %v1131
    %v1133 = vrot.slane %v1132, 2
    %v1134 = vadd.f32 %v1132, %v1133
    %v1135 = vrot.slane %v1134, 1
    %v1136 = vadd.f32 %v1134, %v1135
    %1137 = vst [vmem:[#allocation3 + $0xc] sm:$0x1] %v1136
    %v1138 = vlaneseq
    %v1139 = vshrl.u32 %v1138, 7
    %v1140 = vsub.s32 5, %v1139
    %v1141 = vrot.slane %v587, %v1140
    %v1142 = vmul.f32 %v1141, %v591
    %v1143 = vmul.f32 %v1141, %v592
    %v1144 = vmul.f32 %v1142, 1.442695
    %v1145 = vpow.pop %v1144
    %v1146 = vmul.f32 %v1143, 1.442695
    %v1147 = vpow.pop %v1146
    %v1148 = vlaneseq
    %v1149 = vshrl.u32 %v1148, 7
    %v1150 = vsub.s32 5, %v1149
    %v1151 = vrot.slane %v481, %v1150
    %v1152 = vsel %vm595, %v1151, 0.0
    %v1153 = vsel %vm596, %v1151, 0.0
    %v1154 = vsel %vm613, %v1152, 0.0
    %1155 = vadd.xlane.f32.xlu0 %v1154
    %v1156 = vpop.xlane.xlu0 %1155
    %v1157 = vsel %vm613, %v1153, 0.0
    %1158 = vadd.xlane.f32.xlu0 %v1157
    %v1159 = vpop.xlane.xlu0 %1158
    %v1160 = vlaneseq
    %v1161 = vshrl.u32 %v1160, 7
    %v1162 = vsub.s32 5, %v1161
    %v1163 = vrot.slane %v556, %v1162
    %v1164 = vsel %vm595, %v1163, 0.0
    %v1165 = vsel %vm596, %v1163, 0.0
    %v1166 = vsel %vm613, %v1164, 0.0
    %1167 = vadd.xlane.f32.xlu0 %v1166
    %v1168 = vpop.xlane.xlu0 %1167
    %v1169 = vsel %vm613, %v1165, 0.0
    %1170 = vadd.xlane.f32.xlu0 %v1169
    %v1171 = vpop.xlane.xlu0 %1170
    %v1172 = vmul.f32 %v1145, %v1072
    %v1173 = vmul.f32 %v1147, %v1073
    %v1174 = vlaneseq
    %v1175 = vshrl.u32 %v1174, 7
    %v1176 = vsub.s32 5, %v1175
    %v1177 = vrot.slane %v589, %v1176
    %v1178 = vmul.f32 %v1177, %v1156
    %v1179 = vmul.f32 %v1177, %v1159
    %v1180 = vadd.f32 %v1172, %v1178
    %v1181 = vadd.f32 %v1173, %v1179
    %v1182 = vmul.f32 %v1180, %v1168
    %v1183 = vmul.f32 %v1181, %v1171
    %v1184 = vadd.f32 %v1182, %v1183
    %v1185 = vrot.slane %v1184, 4
    %v1186 = vadd.f32 %v1184, %v1185
    %v1187 = vrot.slane %v1186, 2
    %v1188 = vadd.f32 %v1186, %v1187
    %v1189 = vrot.slane %v1188, 1
    %v1190 = vadd.f32 %v1188, %v1189
    %1191 = vst [vmem:[#allocation3 + $0x5] sm:$0x1] %v1190
    %v1192 = vlaneseq
    %v1193 = vshrl.u32 %v1192, 7
    %v1194 = vsub.s32 5, %v1193
    %v1195 = vrot.slane %v588, %v1194
    %v1196 = vmul.f32 %v1195, %v591
    %v1197 = vmul.f32 %v1195, %v592
    %v1198 = vmul.f32 %v1196, 1.442695
    %v1199 = vpow.pop %v1198
    %v1200 = vmul.f32 %v1197, 1.442695
    %v1201 = vpow.pop %v1200
    %v1202 = vlaneseq
    %v1203 = vshrl.u32 %v1202, 7
    %v1204 = vsub.s32 5, %v1203
    %v1205 = vrot.slane %v487, %v1204
    %v1206 = vsel %vm595, %v1205, 0.0
    %v1207 = vsel %vm596, %v1205, 0.0
    %v1208 = vsel %vm613, %v1206, 0.0
    %1209 = vadd.xlane.f32.xlu0 %v1208
    %v1210 = vpop.xlane.xlu0 %1209
    %v1211 = vsel %vm613, %v1207, 0.0
    %1212 = vadd.xlane.f32.xlu0 %v1211
    %v1213 = vpop.xlane.xlu0 %1212
    %v1214 = vlaneseq
    %v1215 = vshrl.u32 %v1214, 7
    %v1216 = vsub.s32 5, %v1215
    %v1217 = vrot.slane %v561, %v1216
    %v1218 = vsel %vm595, %v1217, 0.0
    %v1219 = vsel %vm596, %v1217, 0.0
    %v1220 = vsel %vm613, %v1218, 0.0
    %1221 = vadd.xlane.f32.xlu0 %v1220
    %v1222 = vpop.xlane.xlu0 %1221
    %v1223 = vsel %vm613, %v1219, 0.0
    %1224 = vadd.xlane.f32.xlu0 %v1223
    %v1225 = vpop.xlane.xlu0 %1224
    %v1226 = vmul.f32 %v1199, %v1126
    %v1227 = vmul.f32 %v1201, %v1127
    %v1228 = vlaneseq
    %v1229 = vshrl.u32 %v1228, 7
    %v1230 = vsub.s32 5, %v1229
    %v1231 = vrot.slane %v590, %v1230
    %v1232 = vmul.f32 %v1231, %v1210
    %v1233 = vmul.f32 %v1231, %v1213
    %v1234 = vadd.f32 %v1226, %v1232
    %v1235 = vadd.f32 %v1227, %v1233
    %v1236 = vmul.f32 %v1234, %v1222
    %v1237 = vmul.f32 %v1235, %v1225
    %v1238 = vadd.f32 %v1236, %v1237
    %v1239 = vrot.slane %v1238, 4
    %v1240 = vadd.f32 %v1238, %v1239
    %v1241 = vrot.slane %v1240, 2
    %v1242 = vadd.f32 %v1240, %v1241
    %v1243 = vrot.slane %v1242, 1
    %v1244 = vadd.f32 %v1242, %v1243
    %1245 = vst [vmem:[#allocation3 + $0xd] sm:$0x1] %v1244
    %v1246 = vlaneseq
    %v1247 = vshrl.u32 %v1246, 7
    %v1248 = vsub.s32 6, %v1247
    %v1249 = vrot.slane %v587, %v1248
    %v1250 = vmul.f32 %v1249, %v591
    %v1251 = vmul.f32 %v1249, %v592
    %v1252 = vmul.f32 %v1250, 1.442695
    %v1253 = vpow.pop %v1252
    %v1254 = vmul.f32 %v1251, 1.442695
    %v1255 = vpow.pop %v1254
    %v1256 = vlaneseq
    %v1257 = vshrl.u32 %v1256, 7
    %v1258 = vsub.s32 6, %v1257
    %v1259 = vrot.slane %v481, %v1258
    %v1260 = vsel %vm595, %v1259, 0.0
    %v1261 = vsel %vm596, %v1259, 0.0
    %v1262 = vsel %vm613, %v1260, 0.0
    %1263 = vadd.xlane.f32.xlu0 %v1262
    %v1264 = vpop.xlane.xlu0 %1263
    %v1265 = vsel %vm613, %v1261, 0.0
    %1266 = vadd.xlane.f32.xlu0 %v1265
    %v1267 = vpop.xlane.xlu0 %1266
    %v1268 = vlaneseq
    %v1269 = vshrl.u32 %v1268, 7
    %v1270 = vsub.s32 6, %v1269
    %v1271 = vrot.slane %v556, %v1270
    %v1272 = vsel %vm595, %v1271, 0.0
    %v1273 = vsel %vm596, %v1271, 0.0
    %v1274 = vsel %vm613, %v1272, 0.0
    %1275 = vadd.xlane.f32.xlu0 %v1274
    %v1276 = vpop.xlane.xlu0 %1275
    %v1277 = vsel %vm613, %v1273, 0.0
    %1278 = vadd.xlane.f32.xlu0 %v1277
    %v1279 = vpop.xlane.xlu0 %1278
    %v1280 = vmul.f32 %v1253, %v1180
    %v1281 = vmul.f32 %v1255, %v1181
    %v1282 = vlaneseq
    %v1283 = vshrl.u32 %v1282, 7
    %v1284 = vsub.s32 6, %v1283
    %v1285 = vrot.slane %v589, %v1284
    %v1286 = vmul.f32 %v1285, %v1264
    %v1287 = vmul.f32 %v1285, %v1267
    %v1288 = vadd.f32 %v1280, %v1286
    %v1289 = vadd.f32 %v1281, %v1287
    %v1290 = vmul.f32 %v1288, %v1276
    %v1291 = vmul.f32 %v1289, %v1279
    %v1292 = vadd.f32 %v1290, %v1291
    %v1293 = vrot.slane %v1292, 4
    %v1294 = vadd.f32 %v1292, %v1293
    %v1295 = vrot.slane %v1294, 2
    %v1296 = vadd.f32 %v1294, %v1295
    %v1297 = vrot.slane %v1296, 1
    %v1298 = vadd.f32 %v1296, %v1297
    %1299 = vst [vmem:[#allocation3 + $0x6] sm:$0x1] %v1298
    %v1300 = vlaneseq
    %v1301 = vshrl.u32 %v1300, 7
    %v1302 = vsub.s32 6, %v1301
    %v1303 = vrot.slane %v588, %v1302
    %v1304 = vmul.f32 %v1303, %v591
    %v1305 = vmul.f32 %v1303, %v592
    %v1306 = vmul.f32 %v1304, 1.442695
    %v1307 = vpow.pop %v1306
    %v1308 = vmul.f32 %v1305, 1.442695
    %v1309 = vpow.pop %v1308
    %v1310 = vlaneseq
    %v1311 = vshrl.u32 %v1310, 7
    %v1312 = vsub.s32 6, %v1311
    %v1313 = vrot.slane %v487, %v1312
    %v1314 = vsel %vm595, %v1313, 0.0
    %v1315 = vsel %vm596, %v1313, 0.0
    %v1316 = vsel %vm613, %v1314, 0.0
    %1317 = vadd.xlane.f32.xlu0 %v1316
    %v1318 = vpop.xlane.xlu0 %1317
    %v1319 = vsel %vm613, %v1315, 0.0
    %1320 = vadd.xlane.f32.xlu0 %v1319
    %v1321 = vpop.xlane.xlu0 %1320
    %v1322 = vlaneseq
    %v1323 = vshrl.u32 %v1322, 7
    %v1324 = vsub.s32 6, %v1323
    %v1325 = vrot.slane %v561, %v1324
    %v1326 = vsel %vm595, %v1325, 0.0
    %v1327 = vsel %vm596, %v1325, 0.0
    %v1328 = vsel %vm613, %v1326, 0.0
    %1329 = vadd.xlane.f32.xlu0 %v1328
    %v1330 = vpop.xlane.xlu0 %1329
    %v1331 = vsel %vm613, %v1327, 0.0
    %1332 = vadd.xlane.f32.xlu0 %v1331
    %v1333 = vpop.xlane.xlu0 %1332
    %v1334 = vmul.f32 %v1307, %v1234
    %v1335 = vmul.f32 %v1309, %v1235
    %v1336 = vlaneseq
    %v1337 = vshrl.u32 %v1336, 7
    %v1338 = vsub.s32 6, %v1337
    %v1339 = vrot.slane %v590, %v1338
    %v1340 = vmul.f32 %v1339, %v1318
    %v1341 = vmul.f32 %v1339, %v1321
    %v1342 = vadd.f32 %v1334, %v1340
    %v1343 = vadd.f32 %v1335, %v1341
    %v1344 = vmul.f32 %v1342, %v1330
    %v1345 = vmul.f32 %v1343, %v1333
    %v1346 = vadd.f32 %v1344, %v1345
    %v1347 = vrot.slane %v1346, 4
    %v1348 = vadd.f32 %v1346, %v1347
    %v1349 = vrot.slane %v1348, 2
    %v1350 = vadd.f32 %v1348, %v1349
    %v1351 = vrot.slane %v1350, 1
    %v1352 = vadd.f32 %v1350, %v1351
    %1353 = vst [vmem:[#allocation3 + $0xe] sm:$0x1] %v1352
    %v1354 = vlaneseq
    %v1355 = vshrl.u32 %v1354, 7
    %v1356 = vsub.s32 7, %v1355
    %v1357 = vrot.slane %v587, %v1356
    %v1358 = vmul.f32 %v1357, %v591
    %v1359 = vmul.f32 %v1357, %v592
    %v1360 = vmul.f32 %v1358, 1.442695
    %v1361 = vpow.pop %v1360
    %v1362 = vmul.f32 %v1359, 1.442695
    %v1363 = vpow.pop %v1362
    %v1364 = vlaneseq
    %v1365 = vshrl.u32 %v1364, 7
    %v1366 = vsub.s32 7, %v1365
    %v1367 = vrot.slane %v481, %v1366
    %v1368 = vsel %vm595, %v1367, 0.0
    %v1369 = vsel %vm596, %v1367, 0.0
    %v1370 = vsel %vm613, %v1368, 0.0
    %1371 = vadd.xlane.f32.xlu0 %v1370
    %v1372 = vpop.xlane.xlu0 %1371
    %v1373 = vsel %vm613, %v1369, 0.0
    %1374 = vadd.xlane.f32.xlu0 %v1373
    %v1375 = vpop.xlane.xlu0 %1374
    %v1376 = vlaneseq
    %v1377 = vshrl.u32 %v1376, 7
    %v1378 = vsub.s32 7, %v1377
    %v1379 = vrot.slane %v556, %v1378
    %v1380 = vsel %vm595, %v1379, 0.0
    %v1381 = vsel %vm596, %v1379, 0.0
    %v1382 = vsel %vm613, %v1380, 0.0
    %1383 = vadd.xlane.f32.xlu0 %v1382
    %v1384 = vpop.xlane.xlu0 %1383
    %v1385 = vsel %vm613, %v1381, 0.0
    %1386 = vadd.xlane.f32.xlu0 %v1385
    %v1387 = vpop.xlane.xlu0 %1386
    %v1388 = vmul.f32 %v1361, %v1288
    %v1389 = vmul.f32 %v1363, %v1289
    %v1390 = vlaneseq
    %v1391 = vshrl.u32 %v1390, 7
    %v1392 = vsub.s32 7, %v1391
    %v1393 = vrot.slane %v589, %v1392
    %v1394 = vmul.f32 %v1393, %v1372
    %v1395 = vmul.f32 %v1393, %v1375
    %v1396 = vadd.f32 %v1388, %v1394
    %v1397 = vadd.f32 %v1389, %v1395
    %v1398 = vmul.f32 %v1396, %v1384
    %v1399 = vmul.f32 %v1397, %v1387
    %v1400 = vadd.f32 %v1398, %v1399
    %v1401 = vrot.slane %v1400, 4
    %v1402 = vadd.f32 %v1400, %v1401
    %v1403 = vrot.slane %v1402, 2
    %v1404 = vadd.f32 %v1402, %v1403
    %v1405 = vrot.slane %v1404, 1
    %v1406 = vadd.f32 %v1404, %v1405
    %1407 = vst [vmem:[#allocation3 + $0x7] sm:$0x1] %v1406
    %v1408 = vlaneseq
    %v1409 = vshrl.u32 %v1408, 7
    %v1410 = vsub.s32 7, %v1409
    %v1411 = vrot.slane %v588, %v1410
    %v1412 = vmul.f32 %v1411, %v591
    %v1413 = vmul.f32 %v1411, %v592
    %v1414 = vmul.f32 %v1412, 1.442695
    %v1415 = vpow.pop %v1414
    %v1416 = vmul.f32 %v1413, 1.442695
    %v1417 = vpow.pop %v1416
    %v1418 = vlaneseq
    %v1419 = vshrl.u32 %v1418, 7
    %v1420 = vsub.s32 7, %v1419
    %v1421 = vrot.slane %v487, %v1420
    %v1422 = vsel %vm595, %v1421, 0.0
    %v1423 = vsel %vm596, %v1421, 0.0
    %v1424 = vsel %vm613, %v1422, 0.0
    %1425 = vadd.xlane.f32.xlu0 %v1424
    %v1426 = vpop.xlane.xlu0 %1425
    %v1427 = vsel %vm613, %v1423, 0.0
    %1428 = vadd.xlane.f32.xlu0 %v1427
    %v1429 = vpop.xlane.xlu0 %1428
    %v1430 = vlaneseq
    %v1431 = vshrl.u32 %v1430, 7
    %v1432 = vsub.s32 7, %v1431
    %v1433 = vrot.slane %v561, %v1432
    %v1434 = vsel %vm595, %v1433, 0.0
    %v1435 = vsel %vm596, %v1433, 0.0
    %v1436 = vsel %vm613, %v1434, 0.0
    %1437 = vadd.xlane.f32.xlu0 %v1436
    %v1438 = vpop.xlane.xlu0 %1437
    %v1439 = vsel %vm613, %v1435, 0.0
    %1440 = vadd.xlane.f32.xlu0 %v1439
    %v1441 = vpop.xlane.xlu0 %1440
    %v1442 = vmul.f32 %v1415, %v1342
    %v1443 = vmul.f32 %v1417, %v1343
    %v1444 = vlaneseq
    %v1445 = vshrl.u32 %v1444, 7
    %v1446 = vsub.s32 7, %v1445
    %v1447 = vrot.slane %v590, %v1446
    %v1448 = vmul.f32 %v1447, %v1426
    %v1449 = vmul.f32 %v1447, %v1429
    %v1450 = vadd.f32 %v1442, %v1448
    %v1451 = vadd.f32 %v1443, %v1449
    %v1452 = vmul.f32 %v1450, %v1438
    %v1453 = vmul.f32 %v1451, %v1441
    %v1454 = vadd.f32 %v1452, %v1453
    %v1455 = vrot.slane %v1454, 4
    %v1456 = vadd.f32 %v1454, %v1455
    %v1457 = vrot.slane %v1456, 2
    %v1458 = vadd.f32 %v1456, %v1457
    %v1459 = vrot.slane %v1458, 1
    %v1460 = vadd.f32 %v1458, %v1459
    %1461 = vst [vmem:[#allocation3 + $0xf] sm:$0x1] %v1460
    %v1462 = vld [vmem:[#allocation3] sm:$0xff]
    %v1463 = vld [vmem:[#allocation3 + $0x8] sm:$0xff]
    %v1464 = vld [vmem:[%s7] sm:$0x1]
    %v1466 = vlaneseq
    %v1467 = vshrl.u32 %v1466, 7
    %v1468 = vsub.s32 0, %v1467
    %v1469 = vrot.slane %v1464, %v1468
    %v1471 = vmul.f32 %v1469, %v362
    %v1472 = vmul.f32 %v1469, %v363
    %v1473 = vadd.f32 %v1462, %v1471
    %v1474 = vadd.f32 %v1463, %v1472
    %v1475 = vxor.u32 %v242, 2147483648
    %v1476 = vxor.u32 %v248, 2147483648
    %v1477 = vmul.f32 %v1475, 1.442695
    %v1478 = vpow.pop %v1477
    %v1479 = vmul.f32 %v1476, 1.442695
    %v1480 = vpow.pop %v1479
    %v1481 = vadd.f32 %v1478, 1.0
    %v1482 = vadd.f32 %v1480, 1.0
    %v1483 = vrcp.pop %v1481
    %v1484 = vmul.f32 1.0, %v1483
    %v1485 = vrcp.pop %v1482
    %v1486 = vmul.f32 1.0, %v1485
    %v1487 = vmul.f32 %v242, %v1484
    %v1488 = vmul.f32 %v248, %v1486
    %v1489 = vmul.f32 %v1473, %v1487
    %v1490 = vmul.f32 %v1474, %v1488
    %v1491 = vld [vmem:[#allocation10] sm:$0xff]
    %v1492 = vld [vmem:[#allocation10 + $0x8] sm:$0xff]
    %v1493 = vld [vmem:[#allocation10 + $0x10] sm:$0xff]
    %v1494 = vld [vmem:[#allocation10 + $0x18] sm:$0xff]
    %v1495 = vld [vmem:[#allocation10 + $0x20] sm:$0xff]
    %v1496 = vld [vmem:[#allocation10 + $0x28] sm:$0xff]
    %v1497 = vld [vmem:[#allocation10 + $0x30] sm:$0xff]
    %v1498 = vld [vmem:[#allocation10 + $0x38] sm:$0xff]
    %v1499 = vld [vmem:[#allocation10 + $0x40] sm:$0xff]
    %v1500 = vld [vmem:[#allocation10 + $0x48] sm:$0xff]
    %v1501 = vld [vmem:[#allocation10 + $0x50] sm:$0xff]
    %v1502 = vld [vmem:[#allocation10 + $0x58] sm:$0xff]
    %v1503 = vld [vmem:[#allocation10 + $0x60] sm:$0xff]
    %v1504 = vld [vmem:[#allocation10 + $0x68] sm:$0xff]
    %v1505 = vld [vmem:[#allocation10 + $0x70] sm:$0xff]
    %v1506 = vld [vmem:[#allocation10 + $0x78] sm:$0xff]
    %1507 = vmatprep.subr.mxu0 0.0
    %1508 = vmatpush1.msra.mxu0 %v1491
    %1509 = vmatprep.subr.mxu0 0.0
    %1510 = vmatpush1.msra.mxu0 %v1492
    %1511 = vmatprep.subr.mxu0 0.0
    %1512 = vmatpush1.msra.mxu0 %v1493
    %1513 = vmatprep.subr.mxu0 0.0
    %1514 = vmatpush1.msra.mxu0 %v1494
    %1515 = vmatprep.subr.mxu0 0.0
    %1516 = vmatpush1.msra.mxu0 %v1495
    %1517 = vmatprep.subr.mxu0 0.0
    %1518 = vmatpush1.msra.mxu0 %v1496
    %1519 = vmatprep.subr.mxu0 0.0
    %1520 = vmatpush1.msra.mxu0 %v1497
    %1521 = vmatprep.subr.mxu0 0.0
    %1522 = vmatpush1.msra.mxu0 %v1498
    %1523 = vmatprep.subr.mxu0 0.0
    %1524 = vmatpush1.msra.mxu0 %v1499
    %1525 = vmatprep.subr.mxu0 0.0
    %1526 = vmatpush1.msra.mxu0 %v1500
    %1527 = vmatprep.subr.mxu0 0.0
    %1528 = vmatpush1.msra.mxu0 %v1501
    %1529 = vmatprep.subr.mxu0 0.0
    %1530 = vmatpush1.msra.mxu0 %v1502
    %1531 = vmatprep.subr.mxu0 0.0
    %1532 = vmatpush1.msra.mxu0 %v1503
    %1533 = vmatprep.subr.mxu0 0.0
    %1534 = vmatpush1.msra.mxu0 %v1504
    %1535 = vmatprep.subr.mxu0 0.0
    %1536 = vmatpush1.msra.mxu0 %v1505
    %1537 = vmatprep.subr.mxu0 0.0
    %1538 = vmatpush1.msra.mxu0 %v1506
    %1539 = vmatprep.subr.mxu0 0.0
    %1540 = vmatpush1.msra.mxu0 0.0
    %1541 = vmatprep.subr.mxu0 0.0
    %1542 = vmatpush1.msra.mxu0 0.0
    %1543 = vmatprep.subr.mxu0 0.0
    %1544 = vmatpush1.msra.mxu0 0.0
    %1545 = vmatprep.subr.mxu0 0.0
    %1546 = vmatpush1.msra.mxu0 0.0
    %1547 = vmatprep.subr.mxu0 0.0
    %1548 = vmatpush1.msra.mxu0 0.0
    %1549 = vmatprep.subr.mxu0 0.0
    %1550 = vmatpush1.msra.mxu0 0.0
    %1551 = vmatprep.subr.mxu0 0.0
    %1552 = vmatpush1.msra.mxu0 0.0
    %1553 = vmatprep.subr.mxu0 0.0
    %1554 = vmatpush1.msra.mxu0 0.0
    %1555 = vmatprep.subr.mxu0 0.0
    %1556 = vmatpush1.msra.mxu0 0.0
    %1557 = vmatprep.subr.mxu0 0.0
    %1558 = vmatpush1.msra.mxu0 0.0
    %1559 = vmatprep.subr.mxu0 0.0
    %1560 = vmatpush1.msra.mxu0 0.0
    %1561 = vmatprep.subr.mxu0 0.0
    %1562 = vmatpush1.msra.mxu0 0.0
    %1563 = vmatprep.subr.mxu0 0.0
    %1564 = vmatpush1.msra.mxu0 0.0
    %1565 = vmatprep.subr.mxu0 0.0
    %1566 = vmatpush1.msra.mxu0 0.0
    %1567 = vmatprep.subr.mxu0 0.0
    %1568 = vmatpush1.msra.mxu0 0.0
    %1569 = vmatprep.subr.mxu0 0.0
    %1570 = vmatpush1.msra.mxu0 0.0
    %1571 = vmatprep.mubr.f32.mxu0 0.0
    %1572 = vmatmul.mubr.f32.gmra.mrb[0].mxu0 %v1489
    %v1573 = vpop.f32.mrb[0].mxu0
    %v1574 = vadd.f32 0.0, %v1573
    %v1575 = vpop.f32.mrb[0].mxu0
    %1576 = vmatprep.mubr.f32.mxu0 0.0
    %1577 = vmatmul.mubr.f32.gmra.mrb[0].mxu0 %v1490
    %v1578 = vpop.f32.mrb[0].mxu0
    %v1579 = vadd.f32 0.0, %v1578
    %v1580 = vpop.f32.mrb[0].mxu0
    %1581 = vdwg.mxu0
    %v1582 = vadd.f32 %v1574, %v1579
    %v1583 = vrot.slane %v1582, 4
    %v1584 = vadd.f32 %v1582, %v1583
    %v1585 = vrot.slane %v1584, 2
    %v1586 = vadd.f32 %v1584, %v1585
    %v1587 = vrot.slane %v1586, 1
    %v1588 = vadd.f32 %v1586, %v1587
    %v1589 = vrcp.pop 16.0
    %v1590 = vmul.f32 %v1588, %v1589
    %v1591 = vsub.f32 %v1574, %v1590
    %v1592 = vsub.f32 %v1579, %v1590
    %v1593 = vmul.f32 %v1591, %v1591
    %v1594 = vmul.f32 %v1592, %v1592
    %v1595 = vadd.f32 %v1593, %v1594
    %v1596 = vrot.slane %v1595, 4
    %v1597 = vadd.f32 %v1595, %v1596
    %v1598 = vrot.slane %v1597, 2
    %v1599 = vadd.f32 %v1597, %v1598
    %v1600 = vrot.slane %v1599, 1
    %v1601 = vadd.f32 %v1599, %v1600
    %v1602 = vmul.f32 %v1601, %v1589
    %v1603 = vadd.f32 %v1602, 1e-05
    %v1604 = vrsqrt.pop %v1603
    %v1605 = vmul.f32 %v1591, %v1604
    %v1606 = vmul.f32 %v1592, %v1604
    %v1607 = vld [vmem:[%s9] sm:$0x1]
    %v1609 = vlaneseq
    %v1610 = vshrl.u32 %v1609, 7
    %v1611 = vsub.s32 0, %v1610
    %v1612 = vrot.slane %v1607, %v1611
    %v1614 = vmul.f32 %v1605, %v1612
    %v1615 = vmul.f32 %v1606, %v1612
    %v1616 = vld [vmem:[%s10] sm:$0x1]
    %v1618 = vlaneseq
    %v1619 = vshrl.u32 %v1618, 7
    %v1620 = vsub.s32 0, %v1619
    %v1621 = vrot.slane %v1616, %v1620
    %v1623 = vadd.f32 %v1614, %v1621
    %v1624 = vadd.f32 %v1615, %v1621
    %v1625 = vld [vmem:[#allocation12] sm:$0xff]
    %v1626 = vld [vmem:[#allocation12 + $0x8] sm:$0xff]
    %v1627 = vld [vmem:[#allocation12 + $0x10] sm:$0xff]
    %v1628 = vld [vmem:[#allocation12 + $0x18] sm:$0xff]
    %v1629 = vld [vmem:[#allocation12 + $0x20] sm:$0xff]
    %v1630 = vld [vmem:[#allocation12 + $0x28] sm:$0xff]
    %v1631 = vld [vmem:[#allocation12 + $0x30] sm:$0xff]
    %v1632 = vld [vmem:[#allocation12 + $0x38] sm:$0xff]
    %v1633 = vld [vmem:[#allocation12 + $0x40] sm:$0xff]
    %v1634 = vld [vmem:[#allocation12 + $0x48] sm:$0xff]
    %v1635 = vld [vmem:[#allocation12 + $0x50] sm:$0xff]
    %v1636 = vld [vmem:[#allocation12 + $0x58] sm:$0xff]
    %v1637 = vld [vmem:[#allocation12 + $0x60] sm:$0xff]
    %v1638 = vld [vmem:[#allocation12 + $0x68] sm:$0xff]
    %v1639 = vld [vmem:[#allocation12 + $0x70] sm:$0xff]
    %v1640 = vld [vmem:[#allocation12 + $0x78] sm:$0xff]
    %v1641 = vld [vmem:[%s12] sm:$0x1]
    %v1643 = vlaneseq
    %v1644 = vshrl.u32 %v1643, 7
    %v1645 = vsub.s32 0, %v1644
    %v1646 = vrot.slane %v1641, %v1645
    %1648 = vmatprep.subr.mxu0 0.0
    %1649 = vmatpush1.msra.mxu0 %v1625
    %1650 = vmatprep.subr.mxu0 0.0
    %1651 = vmatpush1.msra.mxu0 %v1626
    %1652 = vmatprep.subr.mxu0 0.0
    %1653 = vmatpush1.msra.mxu0 %v1627
    %1654 = vmatprep.subr.mxu0 0.0
    %1655 = vmatpush1.msra.mxu0 %v1628
    %1656 = vmatprep.subr.mxu0 0.0
    %1657 = vmatpush1.msra.mxu0 %v1629
    %1658 = vmatprep.subr.mxu0 0.0
    %1659 = vmatpush1.msra.mxu0 %v1630
    %1660 = vmatprep.subr.mxu0 0.0
    %1661 = vmatpush1.msra.mxu0 %v1631
    %1662 = vmatprep.subr.mxu0 0.0
    %1663 = vmatpush1.msra.mxu0 %v1632
    %1664 = vmatprep.subr.mxu0 0.0
    %1665 = vmatpush1.msra.mxu0 %v1633
    %1666 = vmatprep.subr.mxu0 0.0
    %1667 = vmatpush1.msra.mxu0 %v1634
    %1668 = vmatprep.subr.mxu0 0.0
    %1669 = vmatpush1.msra.mxu0 %v1635
    %1670 = vmatprep.subr.mxu0 0.0
    %1671 = vmatpush1.msra.mxu0 %v1636
    %1672 = vmatprep.subr.mxu0 0.0
    %1673 = vmatpush1.msra.mxu0 %v1637
    %1674 = vmatprep.subr.mxu0 0.0
    %1675 = vmatpush1.msra.mxu0 %v1638
    %1676 = vmatprep.subr.mxu0 0.0
    %1677 = vmatpush1.msra.mxu0 %v1639
    %1678 = vmatprep.subr.mxu0 0.0
    %1679 = vmatpush1.msra.mxu0 %v1640
    %1680 = vmatprep.subr.mxu0 0.0
    %1681 = vmatpush1.msra.mxu0 0.0
    %1682 = vmatprep.subr.mxu0 0.0
    %1683 = vmatpush1.msra.mxu0 0.0
    %1684 = vmatprep.subr.mxu0 0.0
    %1685 = vmatpush1.msra.mxu0 0.0
    %1686 = vmatprep.subr.mxu0 0.0
    %1687 = vmatpush1.msra.mxu0 0.0
    %1688 = vmatprep.subr.mxu0 0.0
    %1689 = vmatpush1.msra.mxu0 0.0
    %1690 = vmatprep.subr.mxu0 0.0
    %1691 = vmatpush1.msra.mxu0 0.0
    %1692 = vmatprep.subr.mxu0 0.0
    %1693 = vmatpush1.msra.mxu0 0.0
    %1694 = vmatprep.subr.mxu0 0.0
    %1695 = vmatpush1.msra.mxu0 0.0
    %1696 = vmatprep.subr.mxu0 0.0
    %1697 = vmatpush1.msra.mxu0 0.0
    %1698 = vmatprep.subr.mxu0 0.0
    %1699 = vmatpush1.msra.mxu0 0.0
    %1700 = vmatprep.subr.mxu0 0.0
    %1701 = vmatpush1.msra.mxu0 0.0
    %1702 = vmatprep.subr.mxu0 0.0
    %1703 = vmatpush1.msra.mxu0 0.0
    %1704 = vmatprep.subr.mxu0 0.0
    %1705 = vmatpush1.msra.mxu0 0.0
    %1706 = vmatprep.subr.mxu0 0.0
    %1707 = vmatpush1.msra.mxu0 0.0
    %1708 = vmatprep.subr.mxu0 0.0
    %1709 = vmatpush1.msra.mxu0 0.0
    %1710 = vmatprep.subr.mxu0 0.0
    %1711 = vmatpush1.msra.mxu0 0.0
    %1712 = vmatprep.mubr.f32.mxu0 0.0
    %1713 = vmatmul.mubr.f32.gmra.mrb[0].mxu0 %v1623
    %v1714 = vpop.f32.mrb[0].mxu0
    %v1715 = vadd.f32 %v1646, %v1714
    %v1716 = vpop.f32.mrb[0].mxu0
    %1717 = vmatprep.mubr.f32.mxu0 0.0
    %1718 = vmatmul.mubr.f32.gmra.mrb[0].mxu0 %v1624
    %v1719 = vpop.f32.mrb[0].mxu0
    %v1720 = vadd.f32 %v1646, %v1719
    %v1721 = vpop.f32.mrb[0].mxu0
    %1722 = vdwg.mxu0
    %v1723 = vmax.f32 %v1715, 0.0
    %v1724 = vmax.f32 %v1720, 0.0
    %v1725 = vld [vmem:[#allocation13] sm:$0xff]
    %v1726 = vld [vmem:[#allocation13 + $0x8] sm:$0xff]
    %v1727 = vld [vmem:[#allocation13 + $0x10] sm:$0xff]
    %v1728 = vld [vmem:[#allocation13 + $0x18] sm:$0xff]
    %v1729 = vld [vmem:[#allocation13 + $0x20] sm:$0xff]
    %v1730 = vld [vmem:[#allocation13 + $0x28] sm:$0xff]
    %v1731 = vld [vmem:[#allocation13 + $0x30] sm:$0xff]
    %v1732 = vld [vmem:[#allocation13 + $0x38] sm:$0xff]
    %v1733 = vld [vmem:[#allocation13 + $0x40] sm:$0xff]
    %v1734 = vld [vmem:[#allocation13 + $0x48] sm:$0xff]
    %v1735 = vld [vmem:[#allocation13 + $0x50] sm:$0xff]
    %v1736 = vld [vmem:[#allocation13 + $0x58] sm:$0xff]
    %v1737 = vld [vmem:[#allocation13 + $0x60] sm:$0xff]
    %v1738 = vld [vmem:[#allocation13 + $0x68] sm:$0xff]
    %v1739 = vld [vmem:[#allocation13 + $0x70] sm:$0xff]
    %v1740 = vld [vmem:[#allocation13 + $0x78] sm:$0xff]
    %v1741 = vld [vmem:[%s14] sm:$0x1]
    %v1743 = vlaneseq
    %v1744 = vshrl.u32 %v1743, 7
    %v1745 = vsub.s32 0, %v1744
    %v1746 = vrot.slane %v1741, %v1745
    %1748 = vmatprep.subr.mxu0 0.0
    %1749 = vmatpush1.msra.mxu0 %v1725
    %1750 = vmatprep.subr.mxu0 0.0
    %1751 = vmatpush1.msra.mxu0 %v1726
    %1752 = vmatprep.subr.mxu0 0.0
    %1753 = vmatpush1.msra.mxu0 %v1727
    %1754 = vmatprep.subr.mxu0 0.0
    %1755 = vmatpush1.msra.mxu0 %v1728
    %1756 = vmatprep.subr.mxu0 0.0
    %1757 = vmatpush1.msra.mxu0 %v1729
    %1758 = vmatprep.subr.mxu0 0.0
    %1759 = vmatpush1.msra.mxu0 %v1730
    %1760 = vmatprep.subr.mxu0 0.0
    %1761 = vmatpush1.msra.mxu0 %v1731
    %1762 = vmatprep.subr.mxu0 0.0
    %1763 = vmatpush1.msra.mxu0 %v1732
    %1764 = vmatprep.subr.mxu0 0.0
    %1765 = vmatpush1.msra.mxu0 %v1733
    %1766 = vmatprep.subr.mxu0 0.0
    %1767 = vmatpush1.msra.mxu0 %v1734
    %1768 = vmatprep.subr.mxu0 0.0
    %1769 = vmatpush1.msra.mxu0 %v1735
    %1770 = vmatprep.subr.mxu0 0.0
    %1771 = vmatpush1.msra.mxu0 %v1736
    %1772 = vmatprep.subr.mxu0 0.0
    %1773 = vmatpush1.msra.mxu0 %v1737
    %1774 = vmatprep.subr.mxu0 0.0
    %1775 = vmatpush1.msra.mxu0 %v1738
    %1776 = vmatprep.subr.mxu0 0.0
    %1777 = vmatpush1.msra.mxu0 %v1739
    %1778 = vmatprep.subr.mxu0 0.0
    %1779 = vmatpush1.msra.mxu0 %v1740
    %1780 = vmatprep.subr.mxu0 0.0
    %1781 = vmatpush1.msra.mxu0 0.0
    %1782 = vmatprep.subr.mxu0 0.0
    %1783 = vmatpush1.msra.mxu0 0.0
    %1784 = vmatprep.subr.mxu0 0.0
    %1785 = vmatpush1.msra.mxu0 0.0
    %1786 = vmatprep.subr.mxu0 0.0
    %1787 = vmatpush1.msra.mxu0 0.0
    %1788 = vmatprep.subr.mxu0 0.0
    %1789 = vmatpush1.msra.mxu0 0.0
    %1790 = vmatprep.subr.mxu0 0.0
    %1791 = vmatpush1.msra.mxu0 0.0
    %1792 = vmatprep.subr.mxu0 0.0
    %1793 = vmatpush1.msra.mxu0 0.0
    %1794 = vmatprep.subr.mxu0 0.0
    %1795 = vmatpush1.msra.mxu0 0.0
    %1796 = vmatprep.subr.mxu0 0.0
    %1797 = vmatpush1.msra.mxu0 0.0
    %1798 = vmatprep.subr.mxu0 0.0
    %1799 = vmatpush1.msra.mxu0 0.0
    %1800 = vmatprep.subr.mxu0 0.0
    %1801 = vmatpush1.msra.mxu0 0.0
    %1802 = vmatprep.subr.mxu0 0.0
    %1803 = vmatpush1.msra.mxu0 0.0
    %1804 = vmatprep.subr.mxu0 0.0
    %1805 = vmatpush1.msra.mxu0 0.0
    %1806 = vmatprep.subr.mxu0 0.0
    %1807 = vmatpush1.msra.mxu0 0.0
    %1808 = vmatprep.subr.mxu0 0.0
    %1809 = vmatpush1.msra.mxu0 0.0
    %1810 = vmatprep.subr.mxu0 0.0
    %1811 = vmatpush1.msra.mxu0 0.0
    %1812 = vmatprep.mubr.f32.mxu0 0.0
    %1813 = vmatmul.mubr.f32.gmra.mrb[0].mxu0 %v1723
    %v1814 = vpop.f32.mrb[0].mxu0
    %v1815 = vadd.f32 %v1746, %v1814
    %v1816 = vpop.f32.mrb[0].mxu0
    %1817 = vmatprep.mubr.f32.mxu0 0.0
    %1818 = vmatmul.mubr.f32.gmra.mrb[0].mxu0 %v1724
    %v1819 = vpop.f32.mrb[0].mxu0
    %v1820 = vadd.f32 %v1746, %v1819
    %v1821 = vpop.f32.mrb[0].mxu0
    %1822 = vdwg.mxu0
    %v1823 = vadd.f32 %v1623, %v1815
    %v1824 = vadd.f32 %v1624, %v1820
    %v1825 = vadd.f32 %v1823, %v1824
    %v1826 = vrot.slane %v1825, 4
    %v1827 = vadd.f32 %v1825, %v1826
    %v1828 = vrot.slane %v1827, 2
    %v1829 = vadd.f32 %v1827, %v1828
    %v1830 = vrot.slane %v1829, 1
    %v1831 = vadd.f32 %v1829, %v1830
    %v1832 = vmul.f32 %v1831, %v1589
    %v1833 = vsub.f32 %v1823, %v1832
    %v1834 = vsub.f32 %v1824, %v1832
    %v1835 = vmul.f32 %v1833, %v1833
    %v1836 = vmul.f32 %v1834, %v1834
    %v1837 = vadd.f32 %v1835, %v1836
    %v1838 = vrot.slane %v1837, 4
    %v1839 = vadd.f32 %v1837, %v1838
    %v1840 = vrot.slane %v1839, 2
    %v1841 = vadd.f32 %v1839, %v1840
    %v1842 = vrot.slane %v1841, 1
    %v1843 = vadd.f32 %v1841, %v1842
    %v1844 = vmul.f32 %v1843, %v1589
    %v1845 = vadd.f32 %v1844, 1e-05
    %v1846 = vrsqrt.pop %v1845
    %v1847 = vmul.f32 %v1833, %v1846
    %v1848 = vmul.f32 %v1834, %v1846
    %v1849 = vld [vmem:[%s15] sm:$0x1]
    %v1851 = vlaneseq
    %v1852 = vshrl.u32 %v1851, 7
    %v1853 = vsub.s32 0, %v1852
    %v1854 = vrot.slane %v1849, %v1853
    %v1856 = vmul.f32 %v1847, %v1854
    %v1857 = vmul.f32 %v1848, %v1854
    %v1858 = vld [vmem:[%s16] sm:$0x1]
    %v1860 = vlaneseq
    %v1861 = vshrl.u32 %v1860, 7
    %v1862 = vsub.s32 0, %v1861
    %v1863 = vrot.slane %v1858, %v1862
    %v1865 = vadd.f32 %v1856, %v1863
    %v1866 = vadd.f32 %v1857, %v1863
    %1867 = vst [vmem:[#allocation15] sm:$0xff] %v1865
    %1868 = vst [vmem:[#allocation15 + $0x8] sm:$0xff] %v1866
    // Predicated region
    $region94: #{tpu_custom_call.1} parent=1 // pred_check
      _
    $region95: #{tpu_custom_call.1} parent=1 // pred_check_branch
      %1870 = sbr.rel (0) target = $region97
    $region96: #{tpu_custom_call.1} parent=1 // pred_region
      %s1872 = ssub.s32 256, 256
      %1873 = vsyncadd [#allocation6], %s1872
      %s1874 = sshll.u32 [#allocation15], 4
      %s1875 = int_to_ptr.vmem [resolvable:$true] %s1874
      %1880 = dma.vmem_to_hbm [thread:$0]  %s1875, 256, %s17, [#allocation6], 128, 128, 8
    $region97: #{tpu_custom_call.1} parent=1 // pred_fallthru
      _
    // Predicated region
    $region98: #{tpu_custom_call.1} parent=1 // pred_check
      _
    $region99: #{tpu_custom_call.1} parent=1 // pred_check_branch
      %1882 = sbr.rel (0) target = $region101
    $region100: #{tpu_custom_call.1} parent=1 // pred_region
      %1883 = dma.done [#allocation6], 256
    $region101: #{tpu_custom_call.1} parent=1 // pred_fallthru
      _
    %1884 = vsyncpa [#allocation5], 1
    %1885 = vsyncpa [#allocation8], 1
    %1886 = vsyncpa [#allocation11], 1
    %1887 = vsyncpa [#allocation14], 1
    %1888 = vsyncpa [#allocation6], 1

</llo_original>
